<compile_context>
chip_gen: v7x
topology: tpu7x:2x2x1
jax: 0.10.0
libtpu: 0.0.40
codegen_flags: <defaults>
</compile_context>

<pallas_src>
import math

import jax
import jax.numpy as jnp
from jax.experimental import pallas as pl
from jax.experimental.pallas import tpu as pltpu


_PARAM_ORDER = ["wq1", "bq1", "wq2", "bq2",
                "wk1", "bk1", "wk2", "bk2",
                "wv1", "bv1", "wv2", "bv2"]


# ---------------------------------------------------------------------------
# wrapper-side parameter preparation (runs once, outside the kernel)
# ---------------------------------------------------------------------------
def _frobenius_normalize(w, lipschitz_num):
    # torch: W.data = W / W.norm() * lipschitz_num   (Frobenius norm)
    return w * (lipschitz_num / jnp.sqrt(jnp.sum(w * w)))


def _pack_params(params, lipschitz_num, seq_len, hidden_dim):
    """Normalize and fuse the 12 per-branch parameters into 4 arrays."""
    S, H = seq_len, hidden_dim
    wq1, wk1, wv1 = (_frobenius_normalize(params[n], lipschitz_num)
                     for n in ("wq1", "wk1", "wv1"))            # (S, H)
    wq2, wk2, wv2 = (_frobenius_normalize(params[n], lipschitz_num)
                     for n in ("wq2", "wk2", "wv2"))            # (H, S)

    # Layer 1 fused across Q/K/V: one (S, 3H) GEMM operand.
    w1 = jnp.concatenate([wq1, wk1, wv1], axis=1)               # (S, 3H)
    b1 = jnp.concatenate([params["bq1"], params["bk1"], params["bv1"]],
                         axis=1)                                 # (1, 3H)

    # Layer 2 as a single block-diagonal (3H, 3S) operand:
    #   [h_q | h_k | h_v] @ blkdiag(wq2, wk2, wv2) == [h_q@wq2 | h_k@wk2 | h_v@wv2]
    w2 = jnp.zeros((3 * H, 3 * S), wq2.dtype)
    w2 = w2.at[0 * H:1 * H, 0 * S:1 * S].set(wq2)
    w2 = w2.at[1 * H:2 * H, 1 * S:2 * S].set(wk2)
    w2 = w2.at[2 * H:3 * H, 2 * S:3 * S].set(wv2)
    b2 = jnp.concatenate([params["bq2"], params["bk2"], params["bv2"]],
                         axis=1)                                 # (1, 3S)
    return w1, b1, w2, b2


# ---------------------------------------------------------------------------
# Pallas kernel: FeatureAttentionModule forward for `block_batch` matrices
# ---------------------------------------------------------------------------
def _make_kernel(block_batch, feat_dim, seq_len, inv_sqrt_d, mxu_dtype, flat_out):
    Bt, D, S = block_batch, feat_dim, seq_len

    def kernel(xt_ref, w1_ref, b1_ref, w2_ref, b2_ref, out_ref, scores_ref):
        # xt_ref: (Bt, D, S) == the already-transposed input matrices (f32).
        xt = xt_ref[...]
        x2d = xt.reshape(Bt * D, S)                  # leading-dim merge (free)

        # ---- fused residual MLPs (Q,K,V in 2 GEMMs) -----------------------
        h = jnp.dot(x2d.astype(mxu_dtype), w1_ref[...].astype(mxu_dtype),
                    preferred_element_type=jnp.float32) + b1_ref[...]
        h = jnp.maximum(h, 0.0)                      # (Bt*D, 3H), f32
        o = jnp.dot(h.astype(mxu_dtype), w2_ref[...].astype(mxu_dtype),
                    preferred_element_type=jnp.float32) + b2_ref[...]  # (Bt*D, 3S)
        # dropout == identity (inference); residual added in f32.
        q = (x2d + o[:, 0 * S:1 * S]).reshape(Bt, D, S)
        k = (x2d + o[:, 1 * S:2 * S]).reshape(Bt, D, S)
        v = (x2d + o[:, 2 * S:3 * S]).reshape(Bt, D, S)

        # ---- feature attention --------------------------------------------
        # 1/sqrt(input_dim) folded into Q with a single constant multiply.
        scores = jnp.einsum("bis,bjs->bij",
                            (q * inv_sqrt_d).astype(mxu_dtype),
                            k.astype(mxu_dtype),
                            preferred_element_type=jnp.float32)   # (Bt, D, D)

        # Numerically-stable softmax; exact reciprocal (EUP) so the returned
        # scores are true probabilities.
        scores = scores - jnp.max(scores, axis=-1, keepdims=True)
        e = jnp.exp(scores)
        p = e * pl.reciprocal(jnp.sum(e, axis=-1, keepdims=True), approx=False)

        attn = jnp.einsum("bij,bjs->bis",
                          p.astype(mxu_dtype), v.astype(mxu_dtype),
                          preferred_element_type=jnp.float32)     # (Bt, D, S)

        if flat_out:
            # Lane-dense stores: last dim D*S / D*D (multiples of 128 lanes).
            out_ref[0] = attn.reshape(Bt, D * S).astype(out_ref.dtype)
            scores_ref[0] = p.reshape(Bt, D * D).astype(scores_ref.dtype)
        else:
            out_ref[...] = attn.astype(out_ref.dtype)
            scores_ref[...] = p.astype(scores_ref.dtype)

    return kernel


# ---------------------------------------------------------------------------
# wrapper
# ---------------------------------------------------------------------------
def feature_attention(x, params, lipschitz_num=1.0, block_batch=None,
                      use_bf16_matmul=False, lane_dense_out=True):
    """x: (B, seq_len, input_dim). Returns (attention_output (B,S,D), scores (B,D,D))."""
    B, S, D = x.shape
    if block_batch is None:
        # v5e (single TC): one big grid step is best.  On v7x pick a smaller
        # block_batch so the grid length is a multiple of 2 (two TensorCores).
        block_batch = B
    assert B % block_batch == 0, "batch must be divisible by block_batch"
    G = B // block_batch
    H = params["wq1"].shape[1]

    # layout plumbing only (matrix.T): the kernel consumes (B, D, S)
    xt = jnp.swapaxes(x, 1, 2)

    # Frobenius normalisation + QKV weight fusion hoisted out of the kernel.
    w1, b1, w2, b2 = _pack_params(params, lipschitz_num, S, H)
    mxu_dtype = jnp.bfloat16 if use_bf16_matmul else jnp.float32

    def full_spec(a):
        nd = a.ndim
        return pl.BlockSpec(a.shape, lambda b, _nd=nd: (0,) * _nd)

    in_specs = ([pl.BlockSpec((block_batch, D, S), lambda b: (b, 0, 0))]
                + [full_spec(a) for a in (w1, b1, w2, b2)])

    # Rough per-step VMEM budget (double-buffered blocks + live intermediates);
    # explicit so larger block_batch / S / D does not silently hit the low
    # scoped-VMEM defaults (16 MiB v5e / 32 MiB v6e,v7x).
    blk_bytes = 4 * (2 * block_batch * D * S
                     + 2 * (S * 3 * H + 3 * H + 3 * H * 3 * S + 3 * S)
                     + 2 * (block_batch * D * S + block_batch * D * D)
                     + block_batch * D * (3 * H + 6 * S + 2 * D))
    vmem_limit = int(min(96 * 1024 * 1024, max(32 * 1024 * 1024, 2 * blk_bytes)))

    compiler_params = pltpu.CompilerParams(
        dimension_semantics=("parallel",),   # independent batch -> both TCs on v7x
        vmem_limit_bytes=vmem_limit)

    def run(flat):
        kernel = _make_kernel(block_batch, D, S, 1.0 / math.sqrt(D),
                              mxu_dtype, flat)
        if flat:
            out_shapes = (jax.ShapeDtypeStruct((G, block_batch, D * S), x.dtype),
                          jax.ShapeDtypeStruct((G, block_batch, D * D), x.dtype))
            out_specs = [pl.BlockSpec((1, block_batch, D * S), lambda b: (b, 0, 0)),
                         pl.BlockSpec((1, block_batch, D * D), lambda b: (b, 0, 0))]
        else:
            out_shapes = (jax.ShapeDtypeStruct((B, D, S), x.dtype),
                          jax.ShapeDtypeStruct((B, D, D), x.dtype))
            out_specs = [pl.BlockSpec((block_batch, D, S), lambda b: (b, 0, 0)),
                         pl.BlockSpec((block_batch, D, D), lambda b: (b, 0, 0))]

        attn_r, scores_r = pl.pallas_call(
            kernel,
            out_shape=out_shapes,
            grid_spec=pltpu.PrefetchScalarGridSpec(
                num_scalar_prefetch=0,
                grid=(G,),
                in_specs=in_specs,
                out_specs=out_specs),
            compiler_params=compiler_params,
        )(xt, w1, b1, w2, b2)

        # layout plumbing only: un-flatten (free in HBM) and undo output.T
        attn_t = attn_r.reshape(B, D, S)
        scores = scores_r.reshape(B, D, D)
        return jnp.swapaxes(attn_t, 1, 2), scores

    if lane_dense_out:
        try:
            res = run(flat=True)
            jax.block_until_ready(res)
            return res
        except Exception:
            # TODO(synk): the (Bt,D,S)->(Bt,D*S) minor-dim merge relayout is not
            # supported by every Mosaic version; fall back to the correct (but
            # lane-masked-store) 3-D output layout.
            return run(flat=False)
    return run(flat=False)


# ---------------------------------------------------------------------------
# pure-JAX reference (mirrors the PyTorch forward), used as a self-check
# ---------------------------------------------------------------------------
def reference(x, p, lipschitz_num=1.0):
    D = x.shape[2]

    def norm_w(w):
        return w / jnp.sqrt(jnp.sum(w * w)) * lipschitz_num

    xt = jnp.swapaxes(x, 1, 2)   # (B, D, S)

    def res_mlp(v, w1, b1, w2, b2):
        h = jnp.maximum(v @ norm_w(w1) + b1, 0.0)
        return v + (h @ norm_w(w2) + b2)

    Q = res_mlp(xt, p["wq1"], p["bq1"], p["wq2"], p["bq2"])
    K = res_mlp(xt, p["wk1"], p["bk1"], p["wk2"], p["bk2"])
    V = res_mlp(xt, p["wv1"], p["bv1"], p["wv2"], p["bv2"])

    scores = jnp.einsum("bis,bjs->bij", Q, K) / jnp.sqrt(jnp.asarray(D, jnp.float32))
    P = jax.nn.softmax(scores, axis=-1)
    out = jnp.einsum("bij,bjs->bis", P, V)
    return jnp.swapaxes(out, 1, 2), P


# ---------------------------------------------------------------------------
# deterministic parameter init (weights stored as (in_features, out_features))
# ---------------------------------------------------------------------------
def init_params(key, seq_len, hidden_dim, dtype=jnp.float32):
    S, H = seq_len, hidden_dim
    shapes = {
        "wq1": (S, H), "bq1": (1, H), "wq2": (H, S), "bq2": (1, S),
        "wk1": (S, H), "bk1": (1, H), "wk2": (H, S), "bk2": (1, S),
        "wv1": (S, H), "bv1": (1, H), "wv2": (H, S), "bv2": (1, S),
    }
    params = {}
    keys = jax.random.split(key, len(_PARAM_ORDER))
    for name, k in zip(_PARAM_ORDER, keys):
        params[name] = (0.1 * jax.random.normal(k, shapes[name])).astype(dtype)
    return params


if __name__ == "__main__":
    # matrix: (seq_len, input_dim); a small batch of independent matrices.
    B, SEQ, FEAT, HID = 4, 16, 32, 64
    LIPSCHITZ = 1.0

    key = jax.random.PRNGKey(0)
    kx, kp = jax.random.split(key)
    x = (0.5 * jax.random.normal(kx, (B, SEQ, FEAT))).astype(jnp.float32)
    params = init_params(kp, SEQ, HID)

    ref_out, ref_scores = reference(x, params, LIPSCHITZ)
    ref_out = jax.block_until_ready(ref_out)

    # ---- f32 MXU operands (default): tight check against the f32 reference --
    out, scores = feature_attention(x, params, LIPSCHITZ, block_batch=2)
    out = jax.block_until_ready(out)
    scores = jax.block_until_ready(scores)

    assert out.shape == (B, SEQ, FEAT)
    assert scores.shape == (B, FEAT, FEAT)
    assert jnp.allclose(out, ref_out, rtol=1e-4, atol=1e-4), (
        f"max abs err (output) {jnp.max(jnp.abs(out - ref_out))}")
    assert jnp.allclose(scores, ref_scores, rtol=1e-4, atol=1e-4), (
        f"max abs err (scores) {jnp.max(jnp.abs(scores - ref_scores))}")

    # ---- bf16 MXU operands (v6e/v7x fast path), gated + loose tolerance -----
    out_bf, scores_bf = feature_attention(x, params, LIPSCHITZ, block_batch=2,
                                          use_bf16_matmul=True)
    out_bf = jax.block_until_ready(out_bf)
    scores_bf = jax.block_until_ready(scores_bf)
    assert bool(jnp.all(jnp.isfinite(out_bf)))
    assert float(jnp.max(jnp.abs(out_bf - ref_out))) < 1e-1
    assert float(jnp.max(jnp.abs(scores_bf - ref_scores))) < 1e-1

    print("KERNEL_OK")
</pallas_src>

<mosaic_0001>
module attributes {stable_mosaic.version = 11 : i64} {
  func.func @kernel(%arg0: i32, %arg1: memref<2x32x16xf32, #tpu.memory_space<vmem>>, %arg2: memref<16x192xf32, #tpu.memory_space<vmem>>, %arg3: memref<1x192xf32, #tpu.memory_space<vmem>>, %arg4: memref<192x48xf32, #tpu.memory_space<vmem>>, %arg5: memref<1x48xf32, #tpu.memory_space<vmem>>, %arg6: memref<1x2x512xf32, #tpu.memory_space<vmem>>, %arg7: memref<1x2x1024xf32, #tpu.memory_space<vmem>>) attributes {dimension_semantics = [#tpu.dimension_semantics<parallel>], iteration_bounds = array<i64: 2>, scalar_prefetch = 0 : i64, scratch_operands = 0 : i64, tpu.core_type = #tpu.core_type<tc>, window_params = [{transform_indices = @transform_0, window_bounds = array<i64: 2, 32, 16>}, {pipeline_mode = #tpu.pipeline_mode<synchronous>, transform_indices = @transform_1, window_bounds = array<i64: 16, 192>}, {pipeline_mode = #tpu.pipeline_mode<synchronous>, transform_indices = @transform_2, window_bounds = array<i64: 1, 192>}, {pipeline_mode = #tpu.pipeline_mode<synchronous>, transform_indices = @transform_3, window_bounds = array<i64: 192, 48>}, {pipeline_mode = #tpu.pipeline_mode<synchronous>, transform_indices = @transform_4, window_bounds = array<i64: 1, 48>}, {transform_indices = @transform_5, window_bounds = array<i64: 1, 2, 512>}, {transform_indices = @transform_6, window_bounds = array<i64: 1, 2, 1024>}]} {
    %c0 = arith.constant 0 : index
    %c0_0 = arith.constant 0 : index
    %c0_1 = arith.constant 0 : index
    %0 = vector.load %arg1[%c0, %c0_0, %c0_1] : memref<2x32x16xf32, #tpu.memory_space<vmem>>, vector<2x32x16xf32>
    %1 = vector.shape_cast %0 : vector<2x32x16xf32> to vector<64x16xf32>
    %c0_2 = arith.constant 0 : index
    %c0_3 = arith.constant 0 : index
    %2 = vector.load %arg2[%c0_2, %c0_3] : memref<16x192xf32, #tpu.memory_space<vmem>>, vector<16x192xf32>
    %cst = arith.constant dense<0.000000e+00> : vector<64x192xf32>
    %3 = tpu.matmul %1, %2, %cst {dimension_numbers = #tpu.dot_dimension_numbers<[1], [0], [0], [1], [0, 0, 1, 1], [], []>} : vector<64x16xf32>, vector<16x192xf32>, vector<64x192xf32> -> vector<64x192xf32>
    %c0_4 = arith.constant 0 : index
    %c0_5 = arith.constant 0 : index
    %4 = vector.load %arg3[%c0_4, %c0_5] : memref<1x192xf32, #tpu.memory_space<vmem>>, vector<1x192xf32>
    %5 = vector.broadcast %4 : vector<1x192xf32> to vector<64x192xf32>
    %6 = arith.addf %3, %5 : vector<64x192xf32>
    %cst_6 = arith.constant 0.000000e+00 : f32
    %7 = vector.broadcast %cst_6 : f32 to vector<64x192xf32>
    %8 = arith.maximumf %6, %7 : vector<64x192xf32>
    %c0_7 = arith.constant 0 : index
    %c0_8 = arith.constant 0 : index
    %9 = vector.load %arg4[%c0_7, %c0_8] : memref<192x48xf32, #tpu.memory_space<vmem>>, vector<192x48xf32>
    %cst_9 = arith.constant dense<0.000000e+00> : vector<64x48xf32>
    %10 = tpu.matmul %8, %9, %cst_9 {dimension_numbers = #tpu.dot_dimension_numbers<[1], [0], [0], [1], [0, 0, 1, 1], [], []>} : vector<64x192xf32>, vector<192x48xf32>, vector<64x48xf32> -> vector<64x48xf32>
    %c0_10 = arith.constant 0 : index
    %c0_11 = arith.constant 0 : index
    %11 = vector.load %arg5[%c0_10, %c0_11] : memref<1x48xf32, #tpu.memory_space<vmem>>, vector<1x48xf32>
    %12 = vector.broadcast %11 : vector<1x48xf32> to vector<64x48xf32>
    %13 = arith.addf %10, %12 : vector<64x48xf32>
    %14 = vector.extract_strided_slice %13 {offsets = [0, 0], sizes = [64, 16], strides = [1, 1]} : vector<64x48xf32> to vector<64x16xf32>
    %15 = arith.addf %1, %14 : vector<64x16xf32>
    %16 = vector.shape_cast %15 : vector<64x16xf32> to vector<2x32x16xf32>
    %17 = vector.extract_strided_slice %13 {offsets = [0, 16], sizes = [64, 16], strides = [1, 1]} : vector<64x48xf32> to vector<64x16xf32>
    %18 = arith.addf %1, %17 : vector<64x16xf32>
    %19 = vector.shape_cast %18 : vector<64x16xf32> to vector<2x32x16xf32>
    %20 = vector.extract_strided_slice %13 {offsets = [0, 32], sizes = [64, 16], strides = [1, 1]} : vector<64x48xf32> to vector<64x16xf32>
    %21 = arith.addf %1, %20 : vector<64x16xf32>
    %22 = vector.shape_cast %21 : vector<64x16xf32> to vector<2x32x16xf32>
    %cst_12 = arith.constant 0.176776692 : f32
    %23 = vector.broadcast %cst_12 : f32 to vector<2x32x16xf32>
    %24 = arith.mulf %16, %23 : vector<2x32x16xf32>
    "tpu.trace_start"() <{level = 10 : i32, message = "bis,bjs->bij"}> : () -> ()
    %cst_13 = arith.constant dense<0.000000e+00> : vector<2x32x32xf32>
    %25 = tpu.matmul %24, %19, %cst_13 {dimension_numbers = #tpu.dot_dimension_numbers<[2], [2], [1], [1], [0, 0, 0, 1, 1, 1], [0], [0]>} : vector<2x32x16xf32>, vector<2x32x16xf32>, vector<2x32x32xf32> -> vector<2x32x32xf32>
    "tpu.trace_stop"() : () -> ()
    %cst_14 = arith.constant dense<0xFF800000> : vector<2x32xf32>
    %26 = vector.multi_reduction <maximumf>, %25, %cst_14 [2] : vector<2x32x32xf32> to vector<2x32xf32>
    %27 = vector.shape_cast %26 : vector<2x32xf32> to vector<2x32x1xf32>
    %28 = vector.broadcast %27 : vector<2x32x1xf32> to vector<2x32x32xf32>
    %29 = arith.subf %25, %28 : vector<2x32x32xf32>
    %30 = math.exp %29 : vector<2x32x32xf32>
    %cst_15 = arith.constant dense<0.000000e+00> : vector<2x32xf32>
    %31 = vector.multi_reduction <add>, %30, %cst_15 [2] : vector<2x32x32xf32> to vector<2x32xf32>
    %32 = vector.shape_cast %31 : vector<2x32xf32> to vector<2x32x1xf32>
    %33 = tpu.reciprocal %32 : vector<2x32x1xf32> -> vector<2x32x1xf32>
    %34 = vector.broadcast %33 : vector<2x32x1xf32> to vector<2x32x32xf32>
    %35 = arith.mulf %30, %34 : vector<2x32x32xf32>
    "tpu.trace_start"() <{level = 10 : i32, message = "bij,bjs->bis"}> : () -> ()
    %cst_16 = arith.constant dense<0.000000e+00> : vector<2x32x16xf32>
    %36 = tpu.matmul %35, %22, %cst_16 {dimension_numbers = #tpu.dot_dimension_numbers<[2], [1], [1], [2], [0, 0, 0, 1, 1, 2], [0], [0]>} : vector<2x32x32xf32>, vector<2x32x16xf32>, vector<2x32x16xf32> -> vector<2x32x16xf32>
    "tpu.trace_stop"() : () -> ()
    %37 = vector.shape_cast %36 : vector<2x32x16xf32> to vector<2x512xf32>
    %c0_17 = arith.constant 0 : index
    %c0_18 = arith.constant 0 : index
    %c0_19 = arith.constant 0 : index
    %38 = vector.load %arg6[%c0_17, %c0_18, %c0_19] : memref<1x2x512xf32, #tpu.memory_space<vmem>>, vector<1x2x512xf32>
    %39 = vector.shape_cast %38 : vector<1x2x512xf32> to vector<2x512xf32>
    %40 = vector.shape_cast %37 : vector<2x512xf32> to vector<1x2x512xf32>
    tpu.vector_store %arg6[%c0_17, %c0_18, %c0_19], %40 {strides = array<i32>} : memref<1x2x512xf32, #tpu.memory_space<vmem>>, vector<1x2x512xf32>,
    %41 = vector.shape_cast %35 : vector<2x32x32xf32> to vector<2x1024xf32>
    %c0_20 = arith.constant 0 : index
    %c0_21 = arith.constant 0 : index
    %c0_22 = arith.constant 0 : index
    %42 = vector.load %arg7[%c0_20, %c0_21, %c0_22] : memref<1x2x1024xf32, #tpu.memory_space<vmem>>, vector<1x2x1024xf32>
    %43 = vector.shape_cast %42 : vector<1x2x1024xf32> to vector<2x1024xf32>
    %44 = vector.shape_cast %41 : vector<2x1024xf32> to vector<1x2x1024xf32>
    tpu.vector_store %arg7[%c0_20, %c0_21, %c0_22], %44 {strides = array<i32>} : memref<1x2x1024xf32, #tpu.memory_space<vmem>>, vector<1x2x1024xf32>,
    return
  }
  func.func @transform_0(%arg0: i32) -> (i32, i32, i32) {
    %c0_i32 = arith.constant 0 : i32
    %c0_i32_0 = arith.constant 0 : i32
    %c0_i32_1 = arith.constant 0 : i32
    return %arg0, %c0_i32, %c0_i32_0 : i32, i32, i32
  }
  func.func @transform_1(%arg0: i32) -> (i32, i32) {
    %c0_i32 = arith.constant 0 : i32
    %c0_i32_0 = arith.constant 0 : i32
    %c0_i32_1 = arith.constant 0 : i32
    return %c0_i32, %c0_i32_0 : i32, i32
  }
  func.func @transform_2(%arg0: i32) -> (i32, i32) {
    %c0_i32 = arith.constant 0 : i32
    %c0_i32_0 = arith.constant 0 : i32
    %c0_i32_1 = arith.constant 0 : i32
    return %c0_i32, %c0_i32_0 : i32, i32
  }
  func.func @transform_3(%arg0: i32) -> (i32, i32) {
    %c0_i32 = arith.constant 0 : i32
    %c0_i32_0 = arith.constant 0 : i32
    %c0_i32_1 = arith.constant 0 : i32
    return %c0_i32, %c0_i32_0 : i32, i32
  }
  func.func @transform_4(%arg0: i32) -> (i32, i32) {
    %c0_i32 = arith.constant 0 : i32
    %c0_i32_0 = arith.constant 0 : i32
    %c0_i32_1 = arith.constant 0 : i32
    return %c0_i32, %c0_i32_0 : i32, i32
  }
  func.func @transform_5(%arg0: i32) -> (i32, i32, i32) {
    %c0_i32 = arith.constant 0 : i32
    %c0_i32_0 = arith.constant 0 : i32
    %c0_i32_1 = arith.constant 0 : i32
    return %arg0, %c0_i32, %c0_i32_0 : i32, i32, i32
  }
  func.func @transform_6(%arg0: i32) -> (i32, i32, i32) {
    %c0_i32 = arith.constant 0 : i32
    %c0_i32_0 = arith.constant 0 : i32
    %c0_i32_1 = arith.constant 0 : i32
    return %arg0, %c0_i32, %c0_i32_0 : i32, i32, i32
  }
}

module attributes {stable_mosaic.version = 11 : i64} {
  func.func @kernel(%arg0: i32, %arg1: memref<2x32x16xf32, #tpu.memory_space<vmem>>, %arg2: memref<16x192xf32, #tpu.memory_space<vmem>>, %arg3: memref<1x192xf32, #tpu.memory_space<vmem>>, %arg4: memref<192x48xf32, #tpu.memory_space<vmem>>, %arg5: memref<1x48xf32, #tpu.memory_space<vmem>>, %arg6: memref<2x32x16xf32, #tpu.memory_space<vmem>>, %arg7: memref<2x32x32xf32, #tpu.memory_space<vmem>>) attributes {dimension_semantics = [#tpu.dimension_semantics<parallel>], iteration_bounds = array<i64: 2>, scalar_prefetch = 0 : i64, scratch_operands = 0 : i64, tpu.core_type = #tpu.core_type<tc>, window_params = [{transform_indices = @transform_0, window_bounds = array<i64: 2, 32, 16>}, {pipeline_mode = #tpu.pipeline_mode<synchronous>, transform_indices = @transform_1, window_bounds = array<i64: 16, 192>}, {pipeline_mode = #tpu.pipeline_mode<synchronous>, transform_indices = @transform_2, window_bounds = array<i64: 1, 192>}, {pipeline_mode = #tpu.pipeline_mode<synchronous>, transform_indices = @transform_3, window_bounds = array<i64: 192, 48>}, {pipeline_mode = #tpu.pipeline_mode<synchronous>, transform_indices = @transform_4, window_bounds = array<i64: 1, 48>}, {transform_indices = @transform_5, window_bounds = array<i64: 2, 32, 16>}, {transform_indices = @transform_6, window_bounds = array<i64: 2, 32, 32>}]} {
    %c0 = arith.constant 0 : index
    %c0_0 = arith.constant 0 : index
    %c0_1 = arith.constant 0 : index
    %0 = vector.load %arg1[%c0, %c0_0, %c0_1] : memref<2x32x16xf32, #tpu.memory_space<vmem>>, vector<2x32x16xf32>
    %1 = vector.shape_cast %0 : vector<2x32x16xf32> to vector<64x16xf32>
    %c0_2 = arith.constant 0 : index
    %c0_3 = arith.constant 0 : index
    %2 = vector.load %arg2[%c0_2, %c0_3] : memref<16x192xf32, #tpu.memory_space<vmem>>, vector<16x192xf32>
    %cst = arith.constant dense<0.000000e+00> : vector<64x192xf32>
    %3 = tpu.matmul %1, %2, %cst {dimension_numbers = #tpu.dot_dimension_numbers<[1], [0], [0], [1], [0, 0, 1, 1], [], []>} : vector<64x16xf32>, vector<16x192xf32>, vector<64x192xf32> -> vector<64x192xf32>
    %c0_4 = arith.constant 0 : index
    %c0_5 = arith.constant 0 : index
    %4 = vector.load %arg3[%c0_4, %c0_5] : memref<1x192xf32, #tpu.memory_space<vmem>>, vector<1x192xf32>
    %5 = vector.broadcast %4 : vector<1x192xf32> to vector<64x192xf32>
    %6 = arith.addf %3, %5 : vector<64x192xf32>
    %cst_6 = arith.constant 0.000000e+00 : f32
    %7 = vector.broadcast %cst_6 : f32 to vector<64x192xf32>
    %8 = arith.maximumf %6, %7 : vector<64x192xf32>
    %c0_7 = arith.constant 0 : index
    %c0_8 = arith.constant 0 : index
    %9 = vector.load %arg4[%c0_7, %c0_8] : memref<192x48xf32, #tpu.memory_space<vmem>>, vector<192x48xf32>
    %cst_9 = arith.constant dense<0.000000e+00> : vector<64x48xf32>
    %10 = tpu.matmul %8, %9, %cst_9 {dimension_numbers = #tpu.dot_dimension_numbers<[1], [0], [0], [1], [0, 0, 1, 1], [], []>} : vector<64x192xf32>, vector<192x48xf32>, vector<64x48xf32> -> vector<64x48xf32>
    %c0_10 = arith.constant 0 : index
    %c0_11 = arith.constant 0 : index
    %11 = vector.load %arg5[%c0_10, %c0_11] : memref<1x48xf32, #tpu.memory_space<vmem>>, vector<1x48xf32>
    %12 = vector.broadcast %11 : vector<1x48xf32> to vector<64x48xf32>
    %13 = arith.addf %10, %12 : vector<64x48xf32>
    %14 = vector.extract_strided_slice %13 {offsets = [0, 0], sizes = [64, 16], strides = [1, 1]} : vector<64x48xf32> to vector<64x16xf32>
    %15 = arith.addf %1, %14 : vector<64x16xf32>
    %16 = vector.shape_cast %15 : vector<64x16xf32> to vector<2x32x16xf32>
    %17 = vector.extract_strided_slice %13 {offsets = [0, 16], sizes = [64, 16], strides = [1, 1]} : vector<64x48xf32> to vector<64x16xf32>
    %18 = arith.addf %1, %17 : vector<64x16xf32>
    %19 = vector.shape_cast %18 : vector<64x16xf32> to vector<2x32x16xf32>
    %20 = vector.extract_strided_slice %13 {offsets = [0, 32], sizes = [64, 16], strides = [1, 1]} : vector<64x48xf32> to vector<64x16xf32>
    %21 = arith.addf %1, %20 : vector<64x16xf32>
    %22 = vector.shape_cast %21 : vector<64x16xf32> to vector<2x32x16xf32>
    %cst_12 = arith.constant 0.176776692 : f32
    %23 = vector.broadcast %cst_12 : f32 to vector<2x32x16xf32>
    %24 = arith.mulf %16, %23 : vector<2x32x16xf32>
    "tpu.trace_start"() <{level = 10 : i32, message = "bis,bjs->bij"}> : () -> ()
    %cst_13 = arith.constant dense<0.000000e+00> : vector<2x32x32xf32>
    %25 = tpu.matmul %24, %19, %cst_13 {dimension_numbers = #tpu.dot_dimension_numbers<[2], [2], [1], [1], [0, 0, 0, 1, 1, 1], [0], [0]>} : vector<2x32x16xf32>, vector<2x32x16xf32>, vector<2x32x32xf32> -> vector<2x32x32xf32>
    "tpu.trace_stop"() : () -> ()
    %cst_14 = arith.constant dense<0xFF800000> : vector<2x32xf32>
    %26 = vector.multi_reduction <maximumf>, %25, %cst_14 [2] : vector<2x32x32xf32> to vector<2x32xf32>
    %27 = vector.shape_cast %26 : vector<2x32xf32> to vector<2x32x1xf32>
    %28 = vector.broadcast %27 : vector<2x32x1xf32> to vector<2x32x32xf32>
    %29 = arith.subf %25, %28 : vector<2x32x32xf32>
    %30 = math.exp %29 : vector<2x32x32xf32>
    %cst_15 = arith.constant dense<0.000000e+00> : vector<2x32xf32>
    %31 = vector.multi_reduction <add>, %30, %cst_15 [2] : vector<2x32x32xf32> to vector<2x32xf32>
    %32 = vector.shape_cast %31 : vector<2x32xf32> to vector<2x32x1xf32>
    %33 = tpu.reciprocal %32 : vector<2x32x1xf32> -> vector<2x32x1xf32>
    %34 = vector.broadcast %33 : vector<2x32x1xf32> to vector<2x32x32xf32>
    %35 = arith.mulf %30, %34 : vector<2x32x32xf32>
    "tpu.trace_start"() <{level = 10 : i32, message = "bij,bjs->bis"}> : () -> ()
    %cst_16 = arith.constant dense<0.000000e+00> : vector<2x32x16xf32>
    %36 = tpu.matmul %35, %22, %cst_16 {dimension_numbers = #tpu.dot_dimension_numbers<[2], [1], [1], [2], [0, 0, 0, 1, 1, 2], [0], [0]>} : vector<2x32x32xf32>, vector<2x32x16xf32>, vector<2x32x16xf32> -> vector<2x32x16xf32>
    "tpu.trace_stop"() : () -> ()
    %c0_17 = arith.constant 0 : index
    %c0_18 = arith.constant 0 : index
    %c0_19 = arith.constant 0 : index
    %37 = vector.load %arg6[%c0_17, %c0_18, %c0_19] : memref<2x32x16xf32, #tpu.memory_space<vmem>>, vector<2x32x16xf32>
    tpu.vector_store %arg6[%c0_17, %c0_18, %c0_19], %36 {strides = array<i32>} : memref<2x32x16xf32, #tpu.memory_space<vmem>>, vector<2x32x16xf32>,
    %c0_20 = arith.constant 0 : index
    %c0_21 = arith.constant 0 : index
    %c0_22 = arith.constant 0 : index
    %38 = vector.load %arg7[%c0_20, %c0_21, %c0_22] : memref<2x32x32xf32, #tpu.memory_space<vmem>>, vector<2x32x32xf32>
    tpu.vector_store %arg7[%c0_20, %c0_21, %c0_22], %35 {strides = array<i32>} : memref<2x32x32xf32, #tpu.memory_space<vmem>>, vector<2x32x32xf32>,
    return
  }
  func.func @transform_0(%arg0: i32) -> (i32, i32, i32) {
    %c0_i32 = arith.constant 0 : i32
    %c0_i32_0 = arith.constant 0 : i32
    %c0_i32_1 = arith.constant 0 : i32
    return %arg0, %c0_i32, %c0_i32_0 : i32, i32, i32
  }
  func.func @transform_1(%arg0: i32) -> (i32, i32) {
    %c0_i32 = arith.constant 0 : i32
    %c0_i32_0 = arith.constant 0 : i32
    %c0_i32_1 = arith.constant 0 : i32
    return %c0_i32, %c0_i32_0 : i32, i32
  }
  func.func @transform_2(%arg0: i32) -> (i32, i32) {
    %c0_i32 = arith.constant 0 : i32
    %c0_i32_0 = arith.constant 0 : i32
    %c0_i32_1 = arith.constant 0 : i32
    return %c0_i32, %c0_i32_0 : i32, i32
  }
  func.func @transform_3(%arg0: i32) -> (i32, i32) {
    %c0_i32 = arith.constant 0 : i32
    %c0_i32_0 = arith.constant 0 : i32
    %c0_i32_1 = arith.constant 0 : i32
    return %c0_i32, %c0_i32_0 : i32, i32
  }
  func.func @transform_4(%arg0: i32) -> (i32, i32) {
    %c0_i32 = arith.constant 0 : i32
    %c0_i32_0 = arith.constant 0 : i32
    %c0_i32_1 = arith.constant 0 : i32
    return %c0_i32, %c0_i32_0 : i32, i32
  }
  func.func @transform_5(%arg0: i32) -> (i32, i32, i32) {
    %c0_i32 = arith.constant 0 : i32
    %c0_i32_0 = arith.constant 0 : i32
    %c0_i32_1 = arith.constant 0 : i32
    return %arg0, %c0_i32, %c0_i32_0 : i32, i32, i32
  }
  func.func @transform_6(%arg0: i32) -> (i32, i32, i32) {
    %c0_i32 = arith.constant 0 : i32
    %c0_i32_0 = arith.constant 0 : i32
    %c0_i32_1 = arith.constant 0 : i32
    return %arg0, %c0_i32, %c0_i32_0 : i32, i32, i32
  }
}

</mosaic_0001>

<llo_original>
// kernel: tpu_custom_call.1
$region0: #{tpu_custom_call.1}
  #allocation0 [shape = 'u32[]', space=smem, size = 0x4, offset = 0x4, fixed_abs, tag = 'smem constant byte address 0x4 - core index']
  #allocation1 [shape = 'u32[144,128]{1,0:T(1,128)}', space=vmem, size = 0x12000, scoped, tag = 'internal scratch']
  %s0 = inlined_call_operand.vmem [shape: f32[4,32,16], index: 0, kind: input, shape index: {}]
  %s1 = inlined_call_operand.vmem [shape: f32[16,192], index: 1, kind: input, shape index: {}]
  %s2 = inlined_call_operand.vmem [shape: f32[1,192], index: 2, kind: input, shape index: {}]
  %s3 = inlined_call_operand.vmem [shape: f32[192,48], index: 3, kind: input, shape index: {}]
  %s4 = inlined_call_operand.vmem [shape: f32[1,48], index: 4, kind: input, shape index: {}]
  %s5 = inlined_call_operand.hbm [shape: f32[2,2,512], index: 5, kind: output, shape index: {0}]
  %s6 = inlined_call_operand.hbm [shape: f32[2,2,1024], index: 6, kind: output, shape index: {1}]
  %7 = xla_tuple %s5, %s6
  %s8 = sld [smem:[#allocation0]]
  $region61: #{tpu_custom_call.1} parent=0
    _
  %s10 = ssub.s32 1, %s8
  %s11 = scalar_select 0, %s10, %s8
  $region1: #{tpu_custom_call.1} parent=0
    #allocation2 [shape = 'u8[8192]{0}', space=vmem, size = 0x2000, scoped, tag = 'output window, operand 0']
    #allocation3 [shape = 's32[2]{0}', space=sflag, size = 0x8, scoped, tag = 'scoped memory for tpu_custom_call.1']
    #allocation4 [shape = 'u8[16384]{0}', space=vmem, size = 0x4000, scoped, tag = 'output window, operand 1']
    #allocation5 [shape = 's32[2]{0}', space=sflag, size = 0x8, scoped, tag = 'scoped memory for tpu_custom_call.1']
    %12 = vsyncpa [#allocation3], 0
    %s13 = scalar_lea.sflag [#allocation3], 1
    %14 = vsyncpa %s13, 0
    %15 = vsyncpa [#allocation5], 0
    %s16 = scalar_lea.sflag [#allocation5], 1
    %17 = vsyncpa %s16, 0
    loop: start=0, step=1, limit=4
    $region2: #{tpu_custom_call.1} parent=1 // loop_pre_header
      _
    $region3: #{tpu_custom_call.1} parent=1 // loop_header
      %s19 = sphi 0, %s23
      %p20 = scmp.ge.s32.totalorder %s19, 4
      %s29 = sphi 0, %s31
      %s32 = sphi 0, %s29
      %s33 = sphi 0, %s32
      %s49 = sphi 0, %s33
      %s53 = sphi 0, %s53
      %s55 = sphi 0, %s53
      %s56 = sphi 0, %s55
      %s70 = sphi 0, %s56
      %s74 = sphi 0, %s74
      %s76 = sphi 0, %s74
      %s77 = sphi 0, %s76
      %s91 = sphi 0, %s77
      %s95 = sphi 0, %s95
      %s97 = sphi 0, %s95
      %s98 = sphi 0, %s97
      %s112 = sphi 0, %s98
      %s116 = sphi 0, %s116
      %s118 = sphi 0, %s116
      %s119 = sphi 0, %s118
      %s133 = sphi 0, %s119
      %s139 = sphi 0, %s141
      %s142 = sphi 0, %s139
      %s143 = sphi 0, %s142
      %s159 = sphi 0, %s143
      %s165 = sphi 0, %s167
      %s168 = sphi 0, %s165
      %s169 = sphi 0, %s168
      %s185 = sphi 0, %s169
    $region4: #{tpu_custom_call.1} parent=1 // loop_header_branch
      %22 = sbr.rel (%p20) target = $region8
    $region5: #{tpu_custom_call.1} parent=1 // loop_body
      %s24 = ssub.s32 %s19, 1
      %s25 = ssub.s32 %s19, 2
      %s26 = sadd.s32 %s19, 1
      %s27 = ssub.s32 %s19, %s26
      %p28 = scmp.eq.s32.totalorder %s27, 0
      %s30 = sadd.s32 %s29, 1
      %s31 = scalar_select %p28, %s29, %s30
      %p34 = pneg %p28
      %p35 = scmp.eq.s32.totalorder %s19, 1
      %p36 = por %p34, %p35
      %p37 = scmp.ne.s32.totalorder %s29, %s32
      %p38 = scmp.eq.s32.totalorder %s19, 0
      %p39 = por %p37, %p38
      %p40 = scmp.ne.s32.totalorder %s29, %s32
      %p41 = scmp.eq.s32.totalorder %s24, 1
      %p42 = por %p40, %p41
      %p43 = scmp.ne.s32.totalorder %s32, %s33
      %p44 = scmp.eq.s32.totalorder %s24, 0
      %p45 = por %p43, %p44
      %p46 = scmp.ne.s32.totalorder %s32, %s33
      %p47 = scmp.eq.s32.totalorder %s25, 1
      %p48 = por %p46, %p47
      %p50 = scmp.ne.s32.totalorder %s33, %s49
      %p51 = scmp.eq.s32.totalorder %s25, 0
      %p52 = por %p50, %p51
      %s54 = sadd.s32 %s53, 1
      %p57 = scmp.eq.s32.totalorder %s19, 1
      %p58 = scmp.ne.s32.totalorder %s53, %s55
      %p59 = scmp.eq.s32.totalorder %s19, 0
      %p60 = por %p58, %p59
      %p61 = scmp.ne.s32.totalorder %s53, %s55
      %p62 = scmp.eq.s32.totalorder %s24, 1
      %p63 = por %p61, %p62
      %p64 = scmp.ne.s32.totalorder %s55, %s56
      %p65 = scmp.eq.s32.totalorder %s24, 0
      %p66 = por %p64, %p65
      %p67 = scmp.ne.s32.totalorder %s55, %s56
      %p68 = scmp.eq.s32.totalorder %s25, 1
      %p69 = por %p67, %p68
      %p71 = scmp.ne.s32.totalorder %s56, %s70
      %p72 = scmp.eq.s32.totalorder %s25, 0
      %p73 = por %p71, %p72
      %s75 = sadd.s32 %s74, 1
      %p78 = scmp.eq.s32.totalorder %s19, 1
      %p79 = scmp.ne.s32.totalorder %s74, %s76
      %p80 = scmp.eq.s32.totalorder %s19, 0
      %p81 = por %p79, %p80
      %p82 = scmp.ne.s32.totalorder %s74, %s76
      %p83 = scmp.eq.s32.totalorder %s24, 1
      %p84 = por %p82, %p83
      %p85 = scmp.ne.s32.totalorder %s76, %s77
      %p86 = scmp.eq.s32.totalorder %s24, 0
      %p87 = por %p85, %p86
      %p88 = scmp.ne.s32.totalorder %s76, %s77
      %p89 = scmp.eq.s32.totalorder %s25, 1
      %p90 = por %p88, %p89
      %p92 = scmp.ne.s32.totalorder %s77, %s91
      %p93 = scmp.eq.s32.totalorder %s25, 0
      %p94 = por %p92, %p93
      %s96 = sadd.s32 %s95, 1
      %p99 = scmp.eq.s32.totalorder %s19, 1
      %p100 = scmp.ne.s32.totalorder %s95, %s97
      %p101 = scmp.eq.s32.totalorder %s19, 0
      %p102 = por %p100, %p101
      %p103 = scmp.ne.s32.totalorder %s95, %s97
      %p104 = scmp.eq.s32.totalorder %s24, 1
      %p105 = por %p103, %p104
      %p106 = scmp.ne.s32.totalorder %s97, %s98
      %p107 = scmp.eq.s32.totalorder %s24, 0
      %p108 = por %p106, %p107
      %p109 = scmp.ne.s32.totalorder %s97, %s98
      %p110 = scmp.eq.s32.totalorder %s25, 1
      %p111 = por %p109, %p110
      %p113 = scmp.ne.s32.totalorder %s98, %s112
      %p114 = scmp.eq.s32.totalorder %s25, 0
      %p115 = por %p113, %p114
      %s117 = sadd.s32 %s116, 1
      %p120 = scmp.eq.s32.totalorder %s19, 1
      %p121 = scmp.ne.s32.totalorder %s116, %s118
      %p122 = scmp.eq.s32.totalorder %s19, 0
      %p123 = por %p121, %p122
      %p124 = scmp.ne.s32.totalorder %s116, %s118
      %p125 = scmp.eq.s32.totalorder %s24, 1
      %p126 = por %p124, %p125
      %p127 = scmp.ne.s32.totalorder %s118, %s119
      %p128 = scmp.eq.s32.totalorder %s24, 0
      %p129 = por %p127, %p128
      %p130 = scmp.ne.s32.totalorder %s118, %s119
      %p131 = scmp.eq.s32.totalorder %s25, 1
      %p132 = por %p130, %p131
      %p134 = scmp.ne.s32.totalorder %s119, %s133
      %p135 = scmp.eq.s32.totalorder %s25, 0
      %p136 = por %p134, %p135
      %s137 = ssub.s32 %s19, %s26
      %p138 = scmp.eq.s32.totalorder %s137, 0
      %s140 = sadd.s32 %s139, 1
      %s141 = scalar_select %p138, %s139, %s140
      %p144 = pneg %p138
      %p145 = scmp.eq.s32.totalorder %s19, 1
      %p146 = por %p144, %p145
      %p147 = scmp.ne.s32.totalorder %s139, %s142
      %p148 = scmp.eq.s32.totalorder %s19, 0
      %p149 = por %p147, %p148
      %p150 = scmp.ne.s32.totalorder %s139, %s142
      %p151 = scmp.eq.s32.totalorder %s24, 1
      %p152 = por %p150, %p151
      %p153 = scmp.ne.s32.totalorder %s142, %s143
      %p154 = scmp.eq.s32.totalorder %s24, 0
      %p155 = por %p153, %p154
      %p156 = scmp.ne.s32.totalorder %s142, %s143
      %p157 = scmp.eq.s32.totalorder %s25, 1
      %p158 = por %p156, %p157
      %p160 = scmp.ne.s32.totalorder %s143, %s159
      %p161 = scmp.eq.s32.totalorder %s25, 0
      %p162 = por %p160, %p161
      %s163 = ssub.s32 %s19, %s26
      %p164 = scmp.eq.s32.totalorder %s163, 0
      %s166 = sadd.s32 %s165, 1
      %s167 = scalar_select %p164, %s165, %s166
      %p170 = pneg %p164
      %p171 = scmp.eq.s32.totalorder %s19, 1
      %p172 = por %p170, %p171
      %p173 = scmp.ne.s32.totalorder %s165, %s168
      %p174 = scmp.eq.s32.totalorder %s19, 0
      %p175 = por %p173, %p174
      %p176 = scmp.ne.s32.totalorder %s165, %s168
      %p177 = scmp.eq.s32.totalorder %s24, 1
      %p178 = por %p176, %p177
      %p179 = scmp.ne.s32.totalorder %s168, %s169
      %p180 = scmp.eq.s32.totalorder %s24, 0
      %p181 = por %p179, %p180
      %p182 = scmp.ne.s32.totalorder %s168, %s169
      %p183 = scmp.eq.s32.totalorder %s25, 1
      %p184 = por %p182, %p183
      %p186 = scmp.ne.s32.totalorder %s169, %s185
      %p187 = scmp.eq.s32.totalorder %s25, 0
      %p188 = por %p186, %p187
      %p189 = scmp.le.s32.totalorder 1, %s19
      %p190 = scmp.lt.s32.totalorder %s19, 3
      %p191 = pnand %p189, %p190
      %p192 = pneg %p191
      // Predicated region
      $region9: #{tpu_custom_call.1} parent=5 // pred_check
        _
      $region10: #{tpu_custom_call.1} parent=5 // pred_check_branch
        %194 = sbr.rel (%p191) target = $region12
      $region11: #{tpu_custom_call.1} parent=5 // pred_region
        %s195 = ssub.s32 %s19, 1
        // Predicated region
        $region13: #{tpu_custom_call.1} parent=11 // pred_check
          %p196 = pneg %p66
        $region14: #{tpu_custom_call.1} parent=11 // pred_check_branch
          %198 = sbr.rel (%p196) target = $region16
        $region15: #{tpu_custom_call.1} parent=11 // pred_region
          _
        $region16: #{tpu_custom_call.1} parent=11 // pred_fallthru
          _
        // Predicated region
        $region17: #{tpu_custom_call.1} parent=11 // pred_check
          %p199 = pneg %p87
        $region18: #{tpu_custom_call.1} parent=11 // pred_check_branch
          %201 = sbr.rel (%p199) target = $region20
        $region19: #{tpu_custom_call.1} parent=11 // pred_region
          _
        $region20: #{tpu_custom_call.1} parent=11 // pred_fallthru
          _
        // Predicated region
        $region21: #{tpu_custom_call.1} parent=11 // pred_check
          %p202 = pneg %p108
        $region22: #{tpu_custom_call.1} parent=11 // pred_check_branch
          %204 = sbr.rel (%p202) target = $region24
        $region23: #{tpu_custom_call.1} parent=11 // pred_region
          _
        $region24: #{tpu_custom_call.1} parent=11 // pred_fallthru
          _
        // Predicated region
        $region25: #{tpu_custom_call.1} parent=11 // pred_check
          %p205 = pneg %p129
        $region26: #{tpu_custom_call.1} parent=11 // pred_check_branch
          %207 = sbr.rel (%p205) target = $region28
        $region27: #{tpu_custom_call.1} parent=11 // pred_region
          _
        $region28: #{tpu_custom_call.1} parent=11 // pred_fallthru
          _
      $region12: #{tpu_custom_call.1} parent=5 // pred_fallthru
        _
      %p208 = scmp.lt.s32.totalorder %s19, 2
      // Predicated region
      $region29: #{tpu_custom_call.1} parent=5 // pred_check
        %p209 = pneg %p208
      $region30: #{tpu_custom_call.1} parent=5 // pred_check_branch
        %211 = sbr.rel (%p209) target = $region32
      $region31: #{tpu_custom_call.1} parent=5 // pred_region
        // Predicated region
        $region33: #{tpu_custom_call.1} parent=31 // pred_check
          %p212 = pneg %p39
        $region34: #{tpu_custom_call.1} parent=31 // pred_check_branch
          %214 = sbr.rel (%p212) target = $region36
        $region35: #{tpu_custom_call.1} parent=31 // pred_region
          %s215 = smul.u32 2, %s19
          %p216 = scmp.lt.s32.totalorder %s215, 3
          %s217 = scalar_select %p216, %s215, 3
          %s218 = smul.addr %s217, 4
          %s219 = smul.addr %s218, 8
          %s220 = scalar_lea.vmem %s0, %s219
          %s221 = smul.u32 2, %s19
        $region36: #{tpu_custom_call.1} parent=31 // pred_fallthru
          _
      $region32: #{tpu_custom_call.1} parent=5 // pred_fallthru
        _
      %p222 = scmp.le.s32.totalorder 1, %s19
      %p223 = scmp.lt.s32.totalorder %s19, 3
      %p224 = pnand %p222, %p223
      %p225 = pneg %p224
      // Predicated region
      $region37: #{tpu_custom_call.1} parent=5 // pred_check
        _
      $region38: #{tpu_custom_call.1} parent=5 // pred_check_branch
        %227 = sbr.rel (%p224) target = $region40
      $region39: #{tpu_custom_call.1} parent=5 // pred_region
        %s228 = ssub.s32 %s19, 1
        %s229 = smul.u32 2, %s24
        %p230 = scmp.lt.s32.totalorder %s229, 3
        %s231 = scalar_select %p230, %s229, 3
        %s232 = smul.addr %s231, 4
        %s233 = smul.addr %s232, 8
        %s234 = scalar_lea.vmem %s0, %s233
        %p235 = pneg %p45
        %p236 = pneg %p42
        %p237 = pneg %p66
        %p238 = pneg %p63
        %p239 = pneg %p87
        %p240 = pneg %p84
        %p241 = pneg %p108
        %p242 = pneg %p105
        %p243 = pneg %p129
        %p244 = pneg %p126
        %p245 = pneg %p155
        %p246 = pneg %p152
        %s247 = sand.u32 %s142, 1
        %s248 = scalar_lea.sflag [#allocation3], %s247
        %s249 = sand.u32 %s142, 1
        %s250 = smul.addr %s249, 8
        %s251 = scalar_lea.vmem [#allocation2], %s250
        %p252 = pneg %p181
        %p253 = pneg %p178
        %s254 = sand.u32 %s168, 1
        %s255 = scalar_lea.sflag [#allocation5], %s254
        %s256 = sand.u32 %s168, 1
        %s257 = smul.addr %s256, 16
        %s258 = scalar_lea.vmem [#allocation4], %s257
        %s259 = smul.u32 2, %s24
        %p260 = scmp.lt.s32.totalorder %s259, 3
        %s261 = scalar_select %p260, %s259, 3
        %s262 = smul.addr %s261, 4
        %s263 = smul.addr %s262, 8
        %s264 = scalar_lea.vmem %s0, %s263
        %s265 = smul.u32 2, %s24
        %v266 = vld [vmem:[%s264] sm:$0xff]
        %v267 = vld [vmem:[%s264 + $0x8] sm:$0xff]
        %v268 = vld [vmem:[%s264 + $0x10] sm:$0xff]
        %v269 = vld [vmem:[%s264 + $0x18] sm:$0xff]
        %v270 = vld [vmem:[%s264 + $0x20] sm:$0xff]
        %v271 = vld [vmem:[%s264 + $0x28] sm:$0xff]
        %v272 = vld [vmem:[%s264 + $0x30] sm:$0xff]
        %v273 = vld [vmem:[%s264 + $0x38] sm:$0xff]
        %v274 = vld [vmem:[%s1] sm:$0xff]
        %v275 = vld [vmem:[%s1 + $0x8] sm:$0xff]
        %v276 = vld [vmem:[%s1 + $0x10] sm:$0xff]
        %v277 = vld [vmem:[%s1 + $0x18] sm:$0xff]
        %v278 = vld [vmem:[%s2] sm:$0x3]
        %v280 = vlaneseq
        %v281 = vshrl.u32 %v280, 7
        %v282 = vsub.s32 0, %v281
        %v283 = vrot.slane %v278, %v282
        %v284 = vlaneseq
        %v285 = vshrl.u32 %v284, 7
        %v286 = vsub.s32 1, %v285
        %v287 = vrot.slane %v278, %v286
        %vm290 = vcmask 130048
        %v292 = vsel %vm290, %v266, 0
        %v295 = vsel %vm290, %v267, 0
        %v298 = vsel %vm290, %v268, 0
        %v301 = vsel %vm290, %v269, 0
        %v304 = vsel %vm290, %v270, 0
        %v307 = vsel %vm290, %v271, 0
        %v310 = vsel %vm290, %v272, 0
        %v313 = vsel %vm290, %v273, 0
        %315 = vmatprep.subr.mxu0 %v275
        %316 = vmatpush1.msra.mxu0 %v274
        %317 = vmatprep.subr.mxu0 %v277
        %318 = vmatpush1.msra.mxu0 %v276
        %319 = vmatprep.subr.mxu0 0.0
        %320 = vmatpush1.msra.mxu0 0.0
        %321 = vmatprep.subr.mxu0 0.0
        %322 = vmatpush1.msra.mxu0 0.0
        %323 = vmatprep.subr.mxu0 0.0
        %324 = vmatpush1.msra.mxu0 0.0
        %325 = vmatprep.subr.mxu0 0.0
        %326 = vmatpush1.msra.mxu0 0.0
        %327 = vmatprep.subr.mxu0 0.0
        %328 = vmatpush1.msra.mxu0 0.0
        %329 = vmatprep.subr.mxu0 0.0
        %330 = vmatpush1.msra.mxu0 0.0
        %331 = vmatprep.subr.mxu0 0.0
        %332 = vmatpush1.msra.mxu0 0.0
        %333 = vmatprep.subr.mxu0 0.0
        %334 = vmatpush1.msra.mxu0 0.0
        %335 = vmatprep.subr.mxu0 0.0
        %336 = vmatpush1.msra.mxu0 0.0
        %337 = vmatprep.subr.mxu0 0.0
        %338 = vmatpush1.msra.mxu0 0.0
        %339 = vmatprep.subr.mxu0 0.0
        %340 = vmatpush1.msra.mxu0 0.0
        %341 = vmatprep.subr.mxu0 0.0
        %342 = vmatpush1.msra.mxu0 0.0
        %343 = vmatprep.subr.mxu0 0.0
        %344 = vmatpush1.msra.mxu0 0.0
        %345 = vmatprep.subr.mxu0 0.0
        %346 = vmatpush1.msra.mxu0 0.0
        %347 = vmatprep.subr.mxu0 0.0
        %348 = vmatpush1.msra.mxu0 0.0
        %349 = vmatprep.subr.mxu0 0.0
        %350 = vmatpush1.msra.mxu0 0.0
        %351 = vmatprep.subr.mxu0 0.0
        %352 = vmatpush1.msra.mxu0 0.0
        %353 = vmatprep.subr.mxu0 0.0
        %354 = vmatpush1.msra.mxu0 0.0
        %355 = vmatprep.subr.mxu0 0.0
        %356 = vmatpush1.msra.mxu0 0.0
        %357 = vmatprep.subr.mxu0 0.0
        %358 = vmatpush1.msra.mxu0 0.0
        %359 = vmatprep.subr.mxu0 0.0
        %360 = vmatpush1.msra.mxu0 0.0
        %361 = vmatprep.subr.mxu0 0.0
        %362 = vmatpush1.msra.mxu0 0.0
        %363 = vmatprep.subr.mxu0 0.0
        %364 = vmatpush1.msra.mxu0 0.0
        %365 = vmatprep.subr.mxu0 0.0
        %366 = vmatpush1.msra.mxu0 0.0
        %367 = vmatprep.subr.mxu0 0.0
        %368 = vmatpush1.msra.mxu0 0.0
        %369 = vmatprep.subr.mxu0 0.0
        %370 = vmatpush1.msra.mxu0 0.0
        %371 = vmatprep.subr.mxu0 0.0
        %372 = vmatpush1.msra.mxu0 0.0
        %373 = vmatprep.subr.mxu0 0.0
        %374 = vmatpush1.msra.mxu0 0.0
        %375 = vmatprep.subr.mxu0 0.0
        %376 = vmatpush1.msra.mxu0 0.0
        %377 = vmatprep.subr.mxu0 0.0
        %378 = vmatpush1.msra.mxu0 0.0
        %379 = vmatprep.mubr.f32.mxu0 0.0
        %380 = vmatmul.mubr.f32.gmra.mrb[0].mxu0 %v292
        %v381 = vpop.f32.mrb[0].mxu0
        %v382 = vadd.f32 %v283, %v381
        %v383 = vpop.f32.mrb[0].mxu0
        %v384 = vadd.f32 %v287, %v383
        %385 = vmatprep.mubr.f32.mxu0 0.0
        %386 = vmatmul.mubr.f32.gmra.mrb[0].mxu0 %v295
        %v387 = vpop.f32.mrb[0].mxu0
        %v388 = vadd.f32 %v283, %v387
        %v389 = vpop.f32.mrb[0].mxu0
        %v390 = vadd.f32 %v287, %v389
        %391 = vmatprep.mubr.f32.mxu0 0.0
        %392 = vmatmul.mubr.f32.gmra.mrb[0].mxu0 %v298
        %v393 = vpop.f32.mrb[0].mxu0
        %v394 = vadd.f32 %v283, %v393
        %v395 = vpop.f32.mrb[0].mxu0
        %v396 = vadd.f32 %v287, %v395
        %397 = vmatprep.mubr.f32.mxu0 0.0
        %398 = vmatmul.mubr.f32.gmra.mrb[0].mxu0 %v301
        %v399 = vpop.f32.mrb[0].mxu0
        %v400 = vadd.f32 %v283, %v399
        %v401 = vpop.f32.mrb[0].mxu0
        %v402 = vadd.f32 %v287, %v401
        %403 = vmatprep.mubr.f32.mxu0 0.0
        %404 = vmatmul.mubr.f32.gmra.mrb[0].mxu0 %v304
        %v405 = vpop.f32.mrb[0].mxu0
        %v406 = vadd.f32 %v283, %v405
        %v407 = vpop.f32.mrb[0].mxu0
        %v408 = vadd.f32 %v287, %v407
        %409 = vmatprep.mubr.f32.mxu0 0.0
        %410 = vmatmul.mubr.f32.gmra.mrb[0].mxu0 %v307
        %v411 = vpop.f32.mrb[0].mxu0
        %v412 = vadd.f32 %v283, %v411
        %v413 = vpop.f32.mrb[0].mxu0
        %v414 = vadd.f32 %v287, %v413
        %415 = vmatprep.mubr.f32.mxu0 0.0
        %416 = vmatmul.mubr.f32.gmra.mrb[0].mxu0 %v310
        %v417 = vpop.f32.mrb[0].mxu0
        %v418 = vadd.f32 %v283, %v417
        %v419 = vpop.f32.mrb[0].mxu0
        %v420 = vadd.f32 %v287, %v419
        %421 = vmatprep.mubr.f32.mxu0 0.0
        %422 = vmatmul.mubr.f32.gmra.mrb[0].mxu0 %v313
        %v423 = vpop.f32.mrb[0].mxu0
        %v424 = vadd.f32 %v283, %v423
        %v425 = vpop.f32.mrb[0].mxu0
        %v426 = vadd.f32 %v287, %v425
        %427 = vdwg.mxu0
        %v428 = vmax.f32 %v382, 0.0
        %v429 = vmax.f32 %v384, 0.0
        %v430 = vmax.f32 %v388, 0.0
        %v431 = vmax.f32 %v390, 0.0
        %v432 = vmax.f32 %v394, 0.0
        %v433 = vmax.f32 %v396, 0.0
        %v434 = vmax.f32 %v400, 0.0
        %v435 = vmax.f32 %v402, 0.0
        %v436 = vmax.f32 %v406, 0.0
        %v437 = vmax.f32 %v408, 0.0
        %v438 = vmax.f32 %v412, 0.0
        %v439 = vmax.f32 %v414, 0.0
        %v440 = vmax.f32 %v418, 0.0
        %v441 = vmax.f32 %v420, 0.0
        %v442 = vmax.f32 %v424, 0.0
        %v443 = vmax.f32 %v426, 0.0
        %v444 = vld [vmem:[%s3] sm:$0xff]
        %v445 = vld [vmem:[%s3 + $0x8] sm:$0xff]
        %v446 = vld [vmem:[%s3 + $0x10] sm:$0xff]
        %v447 = vld [vmem:[%s3 + $0x18] sm:$0xff]
        %v448 = vld [vmem:[%s3 + $0x20] sm:$0xff]
        %v449 = vld [vmem:[%s3 + $0x28] sm:$0xff]
        %v450 = vld [vmem:[%s3 + $0x30] sm:$0xff]
        %v451 = vld [vmem:[%s3 + $0x38] sm:$0xff]
        %v452 = vld [vmem:[%s3 + $0x40] sm:$0xff]
        %v453 = vld [vmem:[%s3 + $0x48] sm:$0xff]
        %v454 = vld [vmem:[%s3 + $0x50] sm:$0xff]
        %v455 = vld [vmem:[%s3 + $0x58] sm:$0xff]
        %v456 = vld [vmem:[%s3 + $0x60] sm:$0xff]
        %v457 = vld [vmem:[%s3 + $0x68] sm:$0xff]
        %v458 = vld [vmem:[%s3 + $0x70] sm:$0xff]
        %v459 = vld [vmem:[%s3 + $0x78] sm:$0xff]
        %v460 = vld [vmem:[%s3 + $0x80] sm:$0xff]
        %v461 = vld [vmem:[%s3 + $0x88] sm:$0xff]
        %v462 = vld [vmem:[%s3 + $0x90] sm:$0xff]
        %v463 = vld [vmem:[%s3 + $0x98] sm:$0xff]
        %v464 = vld [vmem:[%s3 + $0xa0] sm:$0xff]
        %v465 = vld [vmem:[%s3 + $0xa8] sm:$0xff]
        %v466 = vld [vmem:[%s3 + $0xb0] sm:$0xff]
        %v467 = vld [vmem:[%s3 + $0xb8] sm:$0xff]
        %v468 = vld [vmem:[%s4] sm:$0x1]
        %v470 = vlaneseq
        %v471 = vshrl.u32 %v470, 7
        %v472 = vsub.s32 0, %v471
        %v473 = vrot.slane %v468, %v472
        %vm475 = vcmask 523264
        %v477 = vsel %vm475, %v429, 0
        %v480 = vsel %vm475, %v431, 0
        %v483 = vsel %vm475, %v433, 0
        %v486 = vsel %vm475, %v435, 0
        %v489 = vsel %vm475, %v437, 0
        %v492 = vsel %vm475, %v439, 0
        %v495 = vsel %vm475, %v441, 0
        %v498 = vsel %vm475, %v443, 0
        %500 = vmatprep.subr.mxu0 0.0
        %501 = vmatpush1.msra.mxu0 %v444
        %502 = vmatprep.subr.mxu0 0.0
        %503 = vmatpush1.msra.mxu0 %v445
        %504 = vmatprep.subr.mxu0 0.0
        %505 = vmatpush1.msra.mxu0 %v446
        %506 = vmatprep.subr.mxu0 0.0
        %507 = vmatpush1.msra.mxu0 %v447
        %508 = vmatprep.subr.mxu0 0.0
        %509 = vmatpush1.msra.mxu0 %v448
        %510 = vmatprep.subr.mxu0 0.0
        %511 = vmatpush1.msra.mxu0 %v449
        %512 = vmatprep.subr.mxu0 0.0
        %513 = vmatpush1.msra.mxu0 %v450
        %514 = vmatprep.subr.mxu0 0.0
        %515 = vmatpush1.msra.mxu0 %v451
        %516 = vmatprep.subr.mxu0 0.0
        %517 = vmatpush1.msra.mxu0 %v452
        %518 = vmatprep.subr.mxu0 0.0
        %519 = vmatpush1.msra.mxu0 %v453
        %520 = vmatprep.subr.mxu0 0.0
        %521 = vmatpush1.msra.mxu0 %v454
        %522 = vmatprep.subr.mxu0 0.0
        %523 = vmatpush1.msra.mxu0 %v455
        %524 = vmatprep.subr.mxu0 0.0
        %525 = vmatpush1.msra.mxu0 %v456
        %526 = vmatprep.subr.mxu0 0.0
        %527 = vmatpush1.msra.mxu0 %v457
        %528 = vmatprep.subr.mxu0 0.0
        %529 = vmatpush1.msra.mxu0 %v458
        %530 = vmatprep.subr.mxu0 0.0
        %531 = vmatpush1.msra.mxu0 %v459
        %532 = vmatprep.subr.mxu0 0.0
        %533 = vmatpush1.msra.mxu0 %v460
        %534 = vmatprep.subr.mxu0 0.0
        %535 = vmatpush1.msra.mxu0 %v461
        %536 = vmatprep.subr.mxu0 0.0
        %537 = vmatpush1.msra.mxu0 %v462
        %538 = vmatprep.subr.mxu0 0.0
        %539 = vmatpush1.msra.mxu0 %v463
        %540 = vmatprep.subr.mxu0 0.0
        %541 = vmatpush1.msra.mxu0 %v464
        %542 = vmatprep.subr.mxu0 0.0
        %543 = vmatpush1.msra.mxu0 %v465
        %544 = vmatprep.subr.mxu0 0.0
        %545 = vmatpush1.msra.mxu0 %v466
        %546 = vmatprep.subr.mxu0 0.0
        %547 = vmatpush1.msra.mxu0 %v467
        %548 = vmatprep.subr.mxu0 0.0
        %549 = vmatpush1.msra.mxu0 0.0
        %550 = vmatprep.subr.mxu0 0.0
        %551 = vmatpush1.msra.mxu0 0.0
        %552 = vmatprep.subr.mxu0 0.0
        %553 = vmatpush1.msra.mxu0 0.0
        %554 = vmatprep.subr.mxu0 0.0
        %555 = vmatpush1.msra.mxu0 0.0
        %556 = vmatprep.subr.mxu0 0.0
        %557 = vmatpush1.msra.mxu0 0.0
        %558 = vmatprep.subr.mxu0 0.0
        %559 = vmatpush1.msra.mxu0 0.0
        %560 = vmatprep.subr.mxu0 0.0
        %561 = vmatpush1.msra.mxu0 0.0
        %562 = vmatprep.subr.mxu0 0.0
        %563 = vmatpush1.msra.mxu0 0.0
        %564 = vmatprep.mubr.f32.mxu0 %v477
        %565 = vmatmul.mubr.f32.gmra.mrb[0].mxu0 %v428
        %v566 = vpop.f32.mrb[0].mxu0
        %v567 = vadd.f32 %v473, %v566
        %v568 = vpop.f32.mrb[0].mxu0
        %569 = vmatprep.mubr.f32.mxu0 %v480
        %570 = vmatmul.mubr.f32.gmra.mrb[0].mxu0 %v430
        %v571 = vpop.f32.mrb[0].mxu0
        %v572 = vadd.f32 %v473, %v571
        %v573 = vpop.f32.mrb[0].mxu0
        %574 = vmatprep.mubr.f32.mxu0 %v483
        %575 = vmatmul.mubr.f32.gmra.mrb[0].mxu0 %v432
        %v576 = vpop.f32.mrb[0].mxu0
        %v577 = vadd.f32 %v473, %v576
        %v578 = vpop.f32.mrb[0].mxu0
        %579 = vmatprep.mubr.f32.mxu0 %v486
        %580 = vmatmul.mubr.f32.gmra.mrb[0].mxu0 %v434
        %v581 = vpop.f32.mrb[0].mxu0
        %v582 = vadd.f32 %v473, %v581
        %v583 = vpop.f32.mrb[0].mxu0
        %584 = vmatprep.mubr.f32.mxu0 %v489
        %585 = vmatmul.mubr.f32.gmra.mrb[0].mxu0 %v436
        %v586 = vpop.f32.mrb[0].mxu0
        %v587 = vadd.f32 %v473, %v586
        %v588 = vpop.f32.mrb[0].mxu0
        %589 = vmatprep.mubr.f32.mxu0 %v492
        %590 = vmatmul.mubr.f32.gmra.mrb[0].mxu0 %v438
        %v591 = vpop.f32.mrb[0].mxu0
        %v592 = vadd.f32 %v473, %v591
        %v593 = vpop.f32.mrb[0].mxu0
        %594 = vmatprep.mubr.f32.mxu0 %v495
        %595 = vmatmul.mubr.f32.gmra.mrb[0].mxu0 %v440
        %v596 = vpop.f32.mrb[0].mxu0
        %v597 = vadd.f32 %v473, %v596
        %v598 = vpop.f32.mrb[0].mxu0
        %599 = vmatprep.mubr.f32.mxu0 %v498
        %600 = vmatmul.mubr.f32.gmra.mrb[0].mxu0 %v442
        %v601 = vpop.f32.mrb[0].mxu0
        %v602 = vadd.f32 %v473, %v601
        %v603 = vpop.f32.mrb[0].mxu0
        %604 = vdwg.mxu0
        %v605 = vadd.f32 %v266, %v567
        %v606 = vadd.f32 %v267, %v572
        %v607 = vadd.f32 %v268, %v577
        %v608 = vadd.f32 %v269, %v582
        %v609 = vadd.f32 %v270, %v587
        %v610 = vadd.f32 %v271, %v592
        %v611 = vadd.f32 %v272, %v597
        %v612 = vadd.f32 %v273, %v602
        %621 = vrot.lane.b32.xlu0 %v567, 112
        %v622 = vpop.permute.xlu0 %621
        %623 = vrot.lane.b32.xlu0 %v572, 112
        %v624 = vpop.permute.xlu0 %623
        %625 = vrot.lane.b32.xlu0 %v577, 112
        %v626 = vpop.permute.xlu0 %625
        %627 = vrot.lane.b32.xlu0 %v582, 112
        %v628 = vpop.permute.xlu0 %627
        %629 = vrot.lane.b32.xlu0 %v587, 112
        %v630 = vpop.permute.xlu0 %629
        %631 = vrot.lane.b32.xlu0 %v592, 112
        %v632 = vpop.permute.xlu0 %631
        %633 = vrot.lane.b32.xlu0 %v597, 112
        %v634 = vpop.permute.xlu0 %633
        %635 = vrot.lane.b32.xlu0 %v602, 112
        %v636 = vpop.permute.xlu0 %635
        %v645 = vadd.f32 %v266, %v622
        %v646 = vadd.f32 %v267, %v624
        %v647 = vadd.f32 %v268, %v626
        %v648 = vadd.f32 %v269, %v628
        %v649 = vadd.f32 %v270, %v630
        %v650 = vadd.f32 %v271, %v632
        %v651 = vadd.f32 %v272, %v634
        %v652 = vadd.f32 %v273, %v636
        %653 = vrot.lane.b32.xlu0 %v567, 96
        %v654 = vpop.permute.xlu0 %653
        %655 = vrot.lane.b32.xlu0 %v572, 96
        %v656 = vpop.permute.xlu0 %655
        %657 = vrot.lane.b32.xlu0 %v577, 96
        %v658 = vpop.permute.xlu0 %657
        %659 = vrot.lane.b32.xlu0 %v582, 96
        %v660 = vpop.permute.xlu0 %659
        %661 = vrot.lane.b32.xlu0 %v587, 96
        %v662 = vpop.permute.xlu0 %661
        %663 = vrot.lane.b32.xlu0 %v592, 96
        %v664 = vpop.permute.xlu0 %663
        %665 = vrot.lane.b32.xlu0 %v597, 96
        %v666 = vpop.permute.xlu0 %665
        %667 = vrot.lane.b32.xlu0 %v602, 96
        %v668 = vpop.permute.xlu0 %667
        %v677 = vadd.f32 %v266, %v654
        %v678 = vadd.f32 %v267, %v656
        %v679 = vadd.f32 %v268, %v658
        %v680 = vadd.f32 %v269, %v660
        %v681 = vadd.f32 %v270, %v662
        %v682 = vadd.f32 %v271, %v664
        %v683 = vadd.f32 %v272, %v666
        %v684 = vadd.f32 %v273, %v668
        %v685 = vmul.f32 %v605, 0.17677669
        %v686 = vmul.f32 %v606, 0.17677669
        %v687 = vmul.f32 %v607, 0.17677669
        %v688 = vmul.f32 %v608, 0.17677669
        %v689 = vmul.f32 %v609, 0.17677669
        %v690 = vmul.f32 %v610, 0.17677669
        %v691 = vmul.f32 %v611, 0.17677669
        %v692 = vmul.f32 %v612, 0.17677669
        %v694 = vsel %vm290, %v685, 0
        %v697 = vsel %vm290, %v686, 0
        %v700 = vsel %vm290, %v687, 0
        %v703 = vsel %vm290, %v688, 0
        %v706 = vsel %vm290, %v645, 0
        %v709 = vsel %vm290, %v646, 0
        %v712 = vsel %vm290, %v647, 0
        %v715 = vsel %vm290, %v648, 0
        %717 = vmatprep.subr.mxu0 0.0
        %718 = vmatpush1.xpose.msra.mxu0 %v706
        %719 = vmatprep.subr.mxu0 0.0
        %720 = vmatpush1.xpose.msra.mxu0 %v709
        %721 = vmatprep.subr.mxu0 0.0
        %722 = vmatpush1.xpose.msra.mxu0 %v712
        %723 = vmatprep.subr.mxu0 0.0
        %724 = vmatpush1.xpose.msra.mxu0 %v715
        %725 = vmatprep.subr.mxu0 0.0
        %726 = vmatpush1.xpose.msra.mxu0 0.0
        %727 = vmatprep.subr.mxu0 0.0
        %728 = vmatpush1.xpose.msra.mxu0 0.0
        %729 = vmatprep.subr.mxu0 0.0
        %730 = vmatpush1.xpose.msra.mxu0 0.0
        %731 = vmatprep.subr.mxu0 0.0
        %732 = vmatpush1.xpose.msra.mxu0 0.0
        %733 = vmatprep.subr.mxu0 0.0
        %734 = vmatpush1.xpose.msra.mxu0 0.0
        %735 = vmatprep.subr.mxu0 0.0
        %736 = vmatpush1.xpose.msra.mxu0 0.0
        %737 = vmatprep.subr.mxu0 0.0
        %738 = vmatpush1.xpose.msra.mxu0 0.0
        %739 = vmatprep.subr.mxu0 0.0
        %740 = vmatpush1.xpose.msra.mxu0 0.0
        %741 = vmatprep.subr.mxu0 0.0
        %742 = vmatpush1.xpose.msra.mxu0 0.0
        %743 = vmatprep.subr.mxu0 0.0
        %744 = vmatpush1.xpose.msra.mxu0 0.0
        %745 = vmatprep.subr.mxu0 0.0
        %746 = vmatpush1.xpose.msra.mxu0 0.0
        %747 = vmatprep.subr.mxu0 0.0
        %748 = vmatpush1.xpose.msra.mxu0 0.0
        %749 = vmatprep.subr.mxu0 0.0
        %750 = vmatpush1.xpose.msra.mxu0 0.0
        %751 = vmatprep.subr.mxu0 0.0
        %752 = vmatpush1.xpose.msra.mxu0 0.0
        %753 = vmatprep.subr.mxu0 0.0
        %754 = vmatpush1.xpose.msra.mxu0 0.0
        %755 = vmatprep.subr.mxu0 0.0
        %756 = vmatpush1.xpose.msra.mxu0 0.0
        %757 = vmatprep.subr.mxu0 0.0
        %758 = vmatpush1.xpose.msra.mxu0 0.0
        %759 = vmatprep.subr.mxu0 0.0
        %760 = vmatpush1.xpose.msra.mxu0 0.0
        %761 = vmatprep.subr.mxu0 0.0
        %762 = vmatpush1.xpose.msra.mxu0 0.0
        %763 = vmatprep.subr.mxu0 0.0
        %764 = vmatpush1.xpose.msra.mxu0 0.0
        %765 = vmatprep.subr.mxu0 0.0
        %766 = vmatpush1.xpose.msra.mxu0 0.0
        %767 = vmatprep.subr.mxu0 0.0
        %768 = vmatpush1.xpose.msra.mxu0 0.0
        %769 = vmatprep.subr.mxu0 0.0
        %770 = vmatpush1.xpose.msra.mxu0 0.0
        %771 = vmatprep.subr.mxu0 0.0
        %772 = vmatpush1.xpose.msra.mxu0 0.0
        %773 = vmatprep.subr.mxu0 0.0
        %774 = vmatpush1.xpose.msra.mxu0 0.0
        %775 = vmatprep.subr.mxu0 0.0
        %776 = vmatpush1.xpose.msra.mxu0 0.0
        %777 = vmatprep.subr.mxu0 0.0
        %778 = vmatpush1.xpose.msra.mxu0 0.0
        %779 = vmatprep.subr.mxu0 0.0
        %780 = vmatpush1.xpose.msra.mxu0 0.0
        %781 = vmatprep.mubr.f32.mxu0 0.0
        %782 = vmatmul.mubr.f32.gmra.mrb[0].mxu0 %v694
        %v783 = vpop.f32.mrb[0].mxu0
        %v784 = vadd.f32 0.0, %v783
        %v785 = vpop.f32.mrb[0].mxu0
        %786 = vmatprep.mubr.f32.mxu0 0.0
        %787 = vmatmul.mubr.f32.gmra.mrb[0].mxu0 %v697
        %v788 = vpop.f32.mrb[0].mxu0
        %v789 = vadd.f32 0.0, %v788
        %v790 = vpop.f32.mrb[0].mxu0
        %791 = vmatprep.mubr.f32.mxu0 0.0
        %792 = vmatmul.mubr.f32.gmra.mrb[0].mxu0 %v700
        %v793 = vpop.f32.mrb[0].mxu0
        %v794 = vadd.f32 0.0, %v793
        %v795 = vpop.f32.mrb[0].mxu0
        %796 = vmatprep.mubr.f32.mxu0 0.0
        %797 = vmatmul.mubr.f32.gmra.mrb[0].mxu0 %v703
        %v798 = vpop.f32.mrb[0].mxu0
        %v799 = vadd.f32 0.0, %v798
        %v800 = vpop.f32.mrb[0].mxu0
        %801 = vdwg.mxu0
        %v803 = vsel %vm290, %v689, 0
        %v806 = vsel %vm290, %v690, 0
        %v809 = vsel %vm290, %v691, 0
        %v812 = vsel %vm290, %v692, 0
        %v815 = vsel %vm290, %v649, 0
        %v818 = vsel %vm290, %v650, 0
        %v821 = vsel %vm290, %v651, 0
        %v824 = vsel %vm290, %v652, 0
        %826 = vmatprep.subr.mxu0 0.0
        %827 = vmatpush1.xpose.msra.mxu0 %v815
        %828 = vmatprep.subr.mxu0 0.0
        %829 = vmatpush1.xpose.msra.mxu0 %v818
        %830 = vmatprep.subr.mxu0 0.0
        %831 = vmatpush1.xpose.msra.mxu0 %v821
        %832 = vmatprep.subr.mxu0 0.0
        %833 = vmatpush1.xpose.msra.mxu0 %v824
        %834 = vmatprep.subr.mxu0 0.0
        %835 = vmatpush1.xpose.msra.mxu0 0.0
        %836 = vmatprep.subr.mxu0 0.0
        %837 = vmatpush1.xpose.msra.mxu0 0.0
        %838 = vmatprep.subr.mxu0 0.0
        %839 = vmatpush1.xpose.msra.mxu0 0.0
        %840 = vmatprep.subr.mxu0 0.0
        %841 = vmatpush1.xpose.msra.mxu0 0.0
        %842 = vmatprep.subr.mxu0 0.0
        %843 = vmatpush1.xpose.msra.mxu0 0.0
        %844 = vmatprep.subr.mxu0 0.0
        %845 = vmatpush1.xpose.msra.mxu0 0.0
        %846 = vmatprep.subr.mxu0 0.0
        %847 = vmatpush1.xpose.msra.mxu0 0.0
        %848 = vmatprep.subr.mxu0 0.0
        %849 = vmatpush1.xpose.msra.mxu0 0.0
        %850 = vmatprep.subr.mxu0 0.0
        %851 = vmatpush1.xpose.msra.mxu0 0.0
        %852 = vmatprep.subr.mxu0 0.0
        %853 = vmatpush1.xpose.msra.mxu0 0.0
        %854 = vmatprep.subr.mxu0 0.0
        %855 = vmatpush1.xpose.msra.mxu0 0.0
        %856 = vmatprep.subr.mxu0 0.0
        %857 = vmatpush1.xpose.msra.mxu0 0.0
        %858 = vmatprep.subr.mxu0 0.0
        %859 = vmatpush1.xpose.msra.mxu0 0.0
        %860 = vmatprep.subr.mxu0 0.0
        %861 = vmatpush1.xpose.msra.mxu0 0.0
        %862 = vmatprep.subr.mxu0 0.0
        %863 = vmatpush1.xpose.msra.mxu0 0.0
        %864 = vmatprep.subr.mxu0 0.0
        %865 = vmatpush1.xpose.msra.mxu0 0.0
        %866 = vmatprep.subr.mxu0 0.0
        %867 = vmatpush1.xpose.msra.mxu0 0.0
        %868 = vmatprep.subr.mxu0 0.0
        %869 = vmatpush1.xpose.msra.mxu0 0.0
        %870 = vmatprep.subr.mxu0 0.0
        %871 = vmatpush1.xpose.msra.mxu0 0.0
        %872 = vmatprep.subr.mxu0 0.0
        %873 = vmatpush1.xpose.msra.mxu0 0.0
        %874 = vmatprep.subr.mxu0 0.0
        %875 = vmatpush1.xpose.msra.mxu0 0.0
        %876 = vmatprep.subr.mxu0 0.0
        %877 = vmatpush1.xpose.msra.mxu0 0.0
        %878 = vmatprep.subr.mxu0 0.0
        %879 = vmatpush1.xpose.msra.mxu0 0.0
        %880 = vmatprep.subr.mxu0 0.0
        %881 = vmatpush1.xpose.msra.mxu0 0.0
        %882 = vmatprep.subr.mxu0 0.0
        %883 = vmatpush1.xpose.msra.mxu0 0.0
        %884 = vmatprep.subr.mxu0 0.0
        %885 = vmatpush1.xpose.msra.mxu0 0.0
        %886 = vmatprep.subr.mxu0 0.0
        %887 = vmatpush1.xpose.msra.mxu0 0.0
        %888 = vmatprep.subr.mxu0 0.0
        %889 = vmatpush1.xpose.msra.mxu0 0.0
        %890 = vmatprep.mubr.f32.mxu0 0.0
        %891 = vmatmul.mubr.f32.gmra.mrb[0].mxu0 %v803
        %v892 = vpop.f32.mrb[0].mxu0
        %v893 = vadd.f32 0.0, %v892
        %v894 = vpop.f32.mrb[0].mxu0
        %895 = vmatprep.mubr.f32.mxu0 0.0
        %896 = vmatmul.mubr.f32.gmra.mrb[0].mxu0 %v806
        %v897 = vpop.f32.mrb[0].mxu0
        %v898 = vadd.f32 0.0, %v897
        %v899 = vpop.f32.mrb[0].mxu0
        %900 = vmatprep.mubr.f32.mxu0 0.0
        %901 = vmatmul.mubr.f32.gmra.mrb[0].mxu0 %v809
        %v902 = vpop.f32.mrb[0].mxu0
        %v903 = vadd.f32 0.0, %v902
        %v904 = vpop.f32.mrb[0].mxu0
        %905 = vmatprep.mubr.f32.mxu0 0.0
        %906 = vmatmul.mubr.f32.gmra.mrb[0].mxu0 %v812
        %v907 = vpop.f32.mrb[0].mxu0
        %v908 = vadd.f32 0.0, %v907
        %v909 = vpop.f32.mrb[0].mxu0
        %910 = vdwg.mxu0
        %vm911 = vcmask 261120
        %v912 = vsel %vm911, %v784, -inf
        %913 = vmax.xlane.f32.xlu0 %v912
        %v914 = vpop.xlane.xlu0 %913
        %v915 = vsel %vm911, %v789, -inf
        %916 = vmax.xlane.f32.xlu0 %v915
        %v917 = vpop.xlane.xlu0 %916
        %v918 = vsel %vm911, %v794, -inf
        %919 = vmax.xlane.f32.xlu0 %v918
        %v920 = vpop.xlane.xlu0 %919
        %v921 = vsel %vm911, %v799, -inf
        %922 = vmax.xlane.f32.xlu0 %v921
        %v923 = vpop.xlane.xlu0 %922
        %v924 = vsel %vm911, %v893, -inf
        %925 = vmax.xlane.f32.xlu0 %v924
        %v926 = vpop.xlane.xlu0 %925
        %v927 = vsel %vm911, %v898, -inf
        %928 = vmax.xlane.f32.xlu0 %v927
        %v929 = vpop.xlane.xlu0 %928
        %v930 = vsel %vm911, %v903, -inf
        %931 = vmax.xlane.f32.xlu0 %v930
        %v932 = vpop.xlane.xlu0 %931
        %v933 = vsel %vm911, %v908, -inf
        %934 = vmax.xlane.f32.xlu0 %v933
        %v935 = vpop.xlane.xlu0 %934
        %v936 = vsub.f32 %v784, %v914
        %v937 = vsub.f32 %v789, %v917
        %v938 = vsub.f32 %v794, %v920
        %v939 = vsub.f32 %v799, %v923
        %v940 = vsub.f32 %v893, %v926
        %v941 = vsub.f32 %v898, %v929
        %v942 = vsub.f32 %v903, %v932
        %v943 = vsub.f32 %v908, %v935
        %v944 = vmul.f32 %v936, 1.442695
        %v945 = vpow.pop %v944
        %v946 = vmul.f32 %v937, 1.442695
        %v947 = vpow.pop %v946
        %v948 = vmul.f32 %v938, 1.442695
        %v949 = vpow.pop %v948
        %v950 = vmul.f32 %v939, 1.442695
        %v951 = vpow.pop %v950
        %v952 = vmul.f32 %v940, 1.442695
        %v953 = vpow.pop %v952
        %v954 = vmul.f32 %v941, 1.442695
        %v955 = vpow.pop %v954
        %v956 = vmul.f32 %v942, 1.442695
        %v957 = vpow.pop %v956
        %v958 = vmul.f32 %v943, 1.442695
        %v959 = vpow.pop %v958
        %v960 = vsel %vm911, %v945, 0.0
        %961 = vadd.xlane.f32.xlu0 %v960
        %v962 = vpop.xlane.xlu0 %961
        %v963 = vsel %vm911, %v947, 0.0
        %964 = vadd.xlane.f32.xlu0 %v963
        %v965 = vpop.xlane.xlu0 %964
        %v966 = vsel %vm911, %v949, 0.0
        %967 = vadd.xlane.f32.xlu0 %v966
        %v968 = vpop.xlane.xlu0 %967
        %v969 = vsel %vm911, %v951, 0.0
        %970 = vadd.xlane.f32.xlu0 %v969
        %v971 = vpop.xlane.xlu0 %970
        %v972 = vsel %vm911, %v953, 0.0
        %973 = vadd.xlane.f32.xlu0 %v972
        %v974 = vpop.xlane.xlu0 %973
        %v975 = vsel %vm911, %v955, 0.0
        %976 = vadd.xlane.f32.xlu0 %v975
        %v977 = vpop.xlane.xlu0 %976
        %v978 = vsel %vm911, %v957, 0.0
        %979 = vadd.xlane.f32.xlu0 %v978
        %v980 = vpop.xlane.xlu0 %979
        %v981 = vsel %vm911, %v959, 0.0
        %982 = vadd.xlane.f32.xlu0 %v981
        %v983 = vpop.xlane.xlu0 %982
        %v984 = vrcp.pop %v962
        %v985 = vrcp.pop %v965
        %v986 = vrcp.pop %v968
        %v987 = vrcp.pop %v971
        %v988 = vrcp.pop %v974
        %v989 = vrcp.pop %v977
        %v990 = vrcp.pop %v980
        %v991 = vrcp.pop %v983
        %v992 = vmul.f32 %v945, %v984
        %v993 = vmul.f32 %v947, %v985
        %v994 = vmul.f32 %v949, %v986
        %v995 = vmul.f32 %v951, %v987
        %v996 = vmul.f32 %v953, %v988
        %v997 = vmul.f32 %v955, %v989
        %v998 = vmul.f32 %v957, %v990
        %v999 = vmul.f32 %v959, %v991
        %v1001 = vsel %vm911, %v992, 0
        %v1004 = vsel %vm911, %v993, 0
        %v1007 = vsel %vm911, %v994, 0
        %v1010 = vsel %vm911, %v995, 0
        %1012 = vmatprep.subr.mxu0 0.0
        %1013 = vmatpush1.msra.mxu0 %v677
        %1014 = vmatprep.subr.mxu0 0.0
        %1015 = vmatpush1.msra.mxu0 %v678
        %1016 = vmatprep.subr.mxu0 0.0
        %1017 = vmatpush1.msra.mxu0 %v679
        %1018 = vmatprep.subr.mxu0 0.0
        %1019 = vmatpush1.msra.mxu0 %v680
        %1020 = vmatprep.subr.mxu0 0.0
        %1021 = vmatpush1.msra.mxu0 0.0
        %1022 = vmatprep.subr.mxu0 0.0
        %1023 = vmatpush1.msra.mxu0 0.0
        %1024 = vmatprep.subr.mxu0 0.0
        %1025 = vmatpush1.msra.mxu0 0.0
        %1026 = vmatprep.subr.mxu0 0.0
        %1027 = vmatpush1.msra.mxu0 0.0
        %1028 = vmatprep.subr.mxu0 0.0
        %1029 = vmatpush1.msra.mxu0 0.0
        %1030 = vmatprep.subr.mxu0 0.0
        %1031 = vmatpush1.msra.mxu0 0.0
        %1032 = vmatprep.subr.mxu0 0.0
        %1033 = vmatpush1.msra.mxu0 0.0
        %1034 = vmatprep.subr.mxu0 0.0
        %1035 = vmatpush1.msra.mxu0 0.0
        %1036 = vmatprep.subr.mxu0 0.0
        %1037 = vmatpush1.msra.mxu0 0.0
        %1038 = vmatprep.subr.mxu0 0.0
        %1039 = vmatpush1.msra.mxu0 0.0
        %1040 = vmatprep.subr.mxu0 0.0
        %1041 = vmatpush1.msra.mxu0 0.0
        %1042 = vmatprep.subr.mxu0 0.0
        %1043 = vmatpush1.msra.mxu0 0.0
        %1044 = vmatprep.subr.mxu0 0.0
        %1045 = vmatpush1.msra.mxu0 0.0
        %1046 = vmatprep.subr.mxu0 0.0
        %1047 = vmatpush1.msra.mxu0 0.0
        %1048 = vmatprep.subr.mxu0 0.0
        %1049 = vmatpush1.msra.mxu0 0.0
        %1050 = vmatprep.subr.mxu0 0.0
        %1051 = vmatpush1.msra.mxu0 0.0
        %1052 = vmatprep.subr.mxu0 0.0
        %1053 = vmatpush1.msra.mxu0 0.0
        %1054 = vmatprep.subr.mxu0 0.0
        %1055 = vmatpush1.msra.mxu0 0.0
        %1056 = vmatprep.subr.mxu0 0.0
        %1057 = vmatpush1.msra.mxu0 0.0
        %1058 = vmatprep.subr.mxu0 0.0
        %1059 = vmatpush1.msra.mxu0 0.0
        %1060 = vmatprep.subr.mxu0 0.0
        %1061 = vmatpush1.msra.mxu0 0.0
        %1062 = vmatprep.subr.mxu0 0.0
        %1063 = vmatpush1.msra.mxu0 0.0
        %1064 = vmatprep.subr.mxu0 0.0
        %1065 = vmatpush1.msra.mxu0 0.0
        %1066 = vmatprep.subr.mxu0 0.0
        %1067 = vmatpush1.msra.mxu0 0.0
        %1068 = vmatprep.subr.mxu0 0.0
        %1069 = vmatpush1.msra.mxu0 0.0
        %1070 = vmatprep.subr.mxu0 0.0
        %1071 = vmatpush1.msra.mxu0 0.0
        %1072 = vmatprep.subr.mxu0 0.0
        %1073 = vmatpush1.msra.mxu0 0.0
        %1074 = vmatprep.subr.mxu0 0.0
        %1075 = vmatpush1.msra.mxu0 0.0
        %1076 = vmatprep.mubr.f32.mxu0 0.0
        %1077 = vmatmul.mubr.f32.gmra.mrb[0].mxu0 %v1001
        %v1078 = vpop.f32.mrb[0].mxu0
        %v1079 = vadd.f32 0.0, %v1078
        %v1080 = vpop.f32.mrb[0].mxu0
        %1081 = vmatprep.mubr.f32.mxu0 0.0
        %1082 = vmatmul.mubr.f32.gmra.mrb[0].mxu0 %v1004
        %v1083 = vpop.f32.mrb[0].mxu0
        %v1084 = vadd.f32 0.0, %v1083
        %v1085 = vpop.f32.mrb[0].mxu0
        %1086 = vmatprep.mubr.f32.mxu0 0.0
        %1087 = vmatmul.mubr.f32.gmra.mrb[0].mxu0 %v1007
        %v1088 = vpop.f32.mrb[0].mxu0
        %v1089 = vadd.f32 0.0, %v1088
        %v1090 = vpop.f32.mrb[0].mxu0
        %1091 = vmatprep.mubr.f32.mxu0 0.0
        %1092 = vmatmul.mubr.f32.gmra.mrb[0].mxu0 %v1010
        %v1093 = vpop.f32.mrb[0].mxu0
        %v1094 = vadd.f32 0.0, %v1093
        %v1095 = vpop.f32.mrb[0].mxu0
        %1096 = vdwg.mxu0
        %v1098 = vsel %vm911, %v996, 0
        %v1101 = vsel %vm911, %v997, 0
        %v1104 = vsel %vm911, %v998, 0
        %v1107 = vsel %vm911, %v999, 0
        %1109 = vmatprep.subr.mxu0 0.0
        %1110 = vmatpush1.msra.mxu0 %v681
        %1111 = vmatprep.subr.mxu0 0.0
        %1112 = vmatpush1.msra.mxu0 %v682
        %1113 = vmatprep.subr.mxu0 0.0
        %1114 = vmatpush1.msra.mxu0 %v683
        %1115 = vmatprep.subr.mxu0 0.0
        %1116 = vmatpush1.msra.mxu0 %v684
        %1117 = vmatprep.subr.mxu0 0.0
        %1118 = vmatpush1.msra.mxu0 0.0
        %1119 = vmatprep.subr.mxu0 0.0
        %1120 = vmatpush1.msra.mxu0 0.0
        %1121 = vmatprep.subr.mxu0 0.0
        %1122 = vmatpush1.msra.mxu0 0.0
        %1123 = vmatprep.subr.mxu0 0.0
        %1124 = vmatpush1.msra.mxu0 0.0
        %1125 = vmatprep.subr.mxu0 0.0
        %1126 = vmatpush1.msra.mxu0 0.0
        %1127 = vmatprep.subr.mxu0 0.0
        %1128 = vmatpush1.msra.mxu0 0.0
        %1129 = vmatprep.subr.mxu0 0.0
        %1130 = vmatpush1.msra.mxu0 0.0
        %1131 = vmatprep.subr.mxu0 0.0
        %1132 = vmatpush1.msra.mxu0 0.0
        %1133 = vmatprep.subr.mxu0 0.0
        %1134 = vmatpush1.msra.mxu0 0.0
        %1135 = vmatprep.subr.mxu0 0.0
        %1136 = vmatpush1.msra.mxu0 0.0
        %1137 = vmatprep.subr.mxu0 0.0
        %1138 = vmatpush1.msra.mxu0 0.0
        %1139 = vmatprep.subr.mxu0 0.0
        %1140 = vmatpush1.msra.mxu0 0.0
        %1141 = vmatprep.subr.mxu0 0.0
        %1142 = vmatpush1.msra.mxu0 0.0
        %1143 = vmatprep.subr.mxu0 0.0
        %1144 = vmatpush1.msra.mxu0 0.0
        %1145 = vmatprep.subr.mxu0 0.0
        %1146 = vmatpush1.msra.mxu0 0.0
        %1147 = vmatprep.subr.mxu0 0.0
        %1148 = vmatpush1.msra.mxu0 0.0
        %1149 = vmatprep.subr.mxu0 0.0
        %1150 = vmatpush1.msra.mxu0 0.0
        %1151 = vmatprep.subr.mxu0 0.0
        %1152 = vmatpush1.msra.mxu0 0.0
        %1153 = vmatprep.subr.mxu0 0.0
        %1154 = vmatpush1.msra.mxu0 0.0
        %1155 = vmatprep.subr.mxu0 0.0
        %1156 = vmatpush1.msra.mxu0 0.0
        %1157 = vmatprep.subr.mxu0 0.0
        %1158 = vmatpush1.msra.mxu0 0.0
        %1159 = vmatprep.subr.mxu0 0.0
        %1160 = vmatpush1.msra.mxu0 0.0
        %1161 = vmatprep.subr.mxu0 0.0
        %1162 = vmatpush1.msra.mxu0 0.0
        %1163 = vmatprep.subr.mxu0 0.0
        %1164 = vmatpush1.msra.mxu0 0.0
        %1165 = vmatprep.subr.mxu0 0.0
        %1166 = vmatpush1.msra.mxu0 0.0
        %1167 = vmatprep.subr.mxu0 0.0
        %1168 = vmatpush1.msra.mxu0 0.0
        %1169 = vmatprep.subr.mxu0 0.0
        %1170 = vmatpush1.msra.mxu0 0.0
        %1171 = vmatprep.subr.mxu0 0.0
        %1172 = vmatpush1.msra.mxu0 0.0
        %1173 = vmatprep.mubr.f32.mxu0 0.0
        %1174 = vmatmul.mubr.f32.gmra.mrb[0].mxu0 %v1098
        %v1175 = vpop.f32.mrb[0].mxu0
        %v1176 = vadd.f32 0.0, %v1175
        %v1177 = vpop.f32.mrb[0].mxu0
        %1178 = vmatprep.mubr.f32.mxu0 0.0
        %1179 = vmatmul.mubr.f32.gmra.mrb[0].mxu0 %v1101
        %v1180 = vpop.f32.mrb[0].mxu0
        %v1181 = vadd.f32 0.0, %v1180
        %v1182 = vpop.f32.mrb[0].mxu0
        %1183 = vmatprep.mubr.f32.mxu0 0.0
        %1184 = vmatmul.mubr.f32.gmra.mrb[0].mxu0 %v1104
        %v1185 = vpop.f32.mrb[0].mxu0
        %v1186 = vadd.f32 0.0, %v1185
        %v1187 = vpop.f32.mrb[0].mxu0
        %1188 = vmatprep.mubr.f32.mxu0 0.0
        %1189 = vmatmul.mubr.f32.gmra.mrb[0].mxu0 %v1107
        %v1190 = vpop.f32.mrb[0].mxu0
        %v1191 = vadd.f32 0.0, %v1190
        %v1192 = vpop.f32.mrb[0].mxu0
        %1193 = vdwg.mxu0
        %v1194 = vcombine.high %v1079, 0.0
        %v1196 = vunpack.c.l.s4 1983009808
        %v1197 = vunpack.c.0.s8 %v1196
        %v1198 = vlaneseq
        %v1199 = vshrl.u32 %v1198, 7
        %v1200 = vsub.s32 %v1197, %v1199
        %v1201 = vrot.slane %v1079, %v1200
        %v1203 = vunpack.c.l.s4 1983009808
        %v1204 = vunpack.c.0.s8 %v1203
        %v1205 = vlaneseq
        %v1206 = vshrl.u32 %v1205, 7
        %v1207 = vsub.s32 %v1204, %v1206
        %v1208 = vrot.slane %v1194, %v1207
        %v1209 = vcombine.high %v1176, 0.0
        %v1211 = vunpack.c.l.s4 1983009808
        %v1212 = vunpack.c.0.s8 %v1211
        %v1213 = vlaneseq
        %v1214 = vshrl.u32 %v1213, 7
        %v1215 = vsub.s32 %v1212, %v1214
        %v1216 = vrot.slane %v1176, %v1215
        %v1218 = vunpack.c.l.s4 1983009808
        %v1219 = vunpack.c.0.s8 %v1218
        %v1220 = vlaneseq
        %v1221 = vshrl.u32 %v1220, 7
        %v1222 = vsub.s32 %v1219, %v1221
        %v1223 = vrot.slane %v1209, %v1222
        %v1224 = vcombine.low %v1201, %v1216
        %v1225 = vcombine.high %v1201, %v1216
        %v1227 = vunpack.c.l.s4 1934713408
        %v1228 = vunpack.c.0.s8 %v1227
        %v1229 = vlaneseq
        %v1230 = vshrl.u32 %v1229, 7
        %v1231 = vsub.s32 %v1228, %v1230
        %v1232 = vrot.slane %v1224, %v1231
        %v1234 = vunpack.c.l.s4 1934713408
        %v1235 = vunpack.c.0.s8 %v1234
        %v1236 = vlaneseq
        %v1237 = vshrl.u32 %v1236, 7
        %v1238 = vsub.s32 %v1235, %v1237
        %v1239 = vrot.slane %v1225, %v1238
        %v1240 = vcombine.low %v1208, %v1223
        %v1241 = vcombine.high %v1208, %v1223
        %v1243 = vunpack.c.l.s4 1934713408
        %v1244 = vunpack.c.0.s8 %v1243
        %v1245 = vlaneseq
        %v1246 = vshrl.u32 %v1245, 7
        %v1247 = vsub.s32 %v1244, %v1246
        %v1248 = vrot.slane %v1240, %v1247
        %v1250 = vunpack.c.l.s4 1934713408
        %v1251 = vunpack.c.0.s8 %v1250
        %v1252 = vlaneseq
        %v1253 = vshrl.u32 %v1252, 7
        %v1254 = vsub.s32 %v1251, %v1253
        %v1255 = vrot.slane %v1241, %v1254
        %v1256 = vcombine.high %v1232, 0.0
        %v1257 = vcombine.high %v1239, 0.0
        %v1258 = vcombine.high %v1248, 0.0
        %v1259 = vcombine.high %v1255, 0.0
        %v1260 = vcombine.high %v1084, 0.0
        %v1262 = vunpack.c.l.s4 1983009808
        %v1263 = vunpack.c.0.s8 %v1262
        %v1264 = vlaneseq
        %v1265 = vshrl.u32 %v1264, 7
        %v1266 = vsub.s32 %v1263, %v1265
        %v1267 = vrot.slane %v1084, %v1266
        %v1269 = vunpack.c.l.s4 1983009808
        %v1270 = vunpack.c.0.s8 %v1269
        %v1271 = vlaneseq
        %v1272 = vshrl.u32 %v1271, 7
        %v1273 = vsub.s32 %v1270, %v1272
        %v1274 = vrot.slane %v1260, %v1273
        %v1275 = vcombine.high %v1181, 0.0
        %v1277 = vunpack.c.l.s4 1983009808
        %v1278 = vunpack.c.0.s8 %v1277
        %v1279 = vlaneseq
        %v1280 = vshrl.u32 %v1279, 7
        %v1281 = vsub.s32 %v1278, %v1280
        %v1282 = vrot.slane %v1181, %v1281
        %v1284 = vunpack.c.l.s4 1983009808
        %v1285 = vunpack.c.0.s8 %v1284
        %v1286 = vlaneseq
        %v1287 = vshrl.u32 %v1286, 7
        %v1288 = vsub.s32 %v1285, %v1287
        %v1289 = vrot.slane %v1275, %v1288
        %v1290 = vcombine.low %v1267, %v1282
        %v1291 = vcombine.high %v1267, %v1282
        %v1293 = vunpack.c.l.s4 1934713408
        %v1294 = vunpack.c.0.s8 %v1293
        %v1295 = vlaneseq
        %v1296 = vshrl.u32 %v1295, 7
        %v1297 = vsub.s32 %v1294, %v1296
        %v1298 = vrot.slane %v1290, %v1297
        %v1300 = vunpack.c.l.s4 1934713408
        %v1301 = vunpack.c.0.s8 %v1300
        %v1302 = vlaneseq
        %v1303 = vshrl.u32 %v1302, 7
        %v1304 = vsub.s32 %v1301, %v1303
        %v1305 = vrot.slane %v1291, %v1304
        %v1306 = vcombine.low %v1274, %v1289
        %v1307 = vcombine.high %v1274, %v1289
        %v1309 = vunpack.c.l.s4 1934713408
        %v1310 = vunpack.c.0.s8 %v1309
        %v1311 = vlaneseq
        %v1312 = vshrl.u32 %v1311, 7
        %v1313 = vsub.s32 %v1310, %v1312
        %v1314 = vrot.slane %v1306, %v1313
        %v1316 = vunpack.c.l.s4 1934713408
        %v1317 = vunpack.c.0.s8 %v1316
        %v1318 = vlaneseq
        %v1319 = vshrl.u32 %v1318, 7
        %v1320 = vsub.s32 %v1317, %v1319
        %v1321 = vrot.slane %v1307, %v1320
        %v1322 = vcombine.high %v1298, 0.0
        %v1323 = vcombine.high %v1305, 0.0
        %v1324 = vcombine.high %v1314, 0.0
        %v1325 = vcombine.high %v1321, 0.0
        %v1326 = vcombine.high %v1089, 0.0
        %v1328 = vunpack.c.l.s4 1983009808
        %v1329 = vunpack.c.0.s8 %v1328
        %v1330 = vlaneseq
        %v1331 = vshrl.u32 %v1330, 7
        %v1332 = vsub.s32 %v1329, %v1331
        %v1333 = vrot.slane %v1089, %v1332
        %v1335 = vunpack.c.l.s4 1983009808
        %v1336 = vunpack.c.0.s8 %v1335
        %v1337 = vlaneseq
        %v1338 = vshrl.u32 %v1337, 7
        %v1339 = vsub.s32 %v1336, %v1338
        %v1340 = vrot.slane %v1326, %v1339
        %v1341 = vcombine.high %v1186, 0.0
        %v1343 = vunpack.c.l.s4 1983009808
        %v1344 = vunpack.c.0.s8 %v1343
        %v1345 = vlaneseq
        %v1346 = vshrl.u32 %v1345, 7
        %v1347 = vsub.s32 %v1344, %v1346
        %v1348 = vrot.slane %v1186, %v1347
        %v1350 = vunpack.c.l.s4 1983009808
        %v1351 = vunpack.c.0.s8 %v1350
        %v1352 = vlaneseq
        %v1353 = vshrl.u32 %v1352, 7
        %v1354 = vsub.s32 %v1351, %v1353
        %v1355 = vrot.slane %v1341, %v1354
        %v1356 = vcombine.low %v1333, %v1348
        %v1357 = vcombine.high %v1333, %v1348
        %v1359 = vunpack.c.l.s4 1934713408
        %v1360 = vunpack.c.0.s8 %v1359
        %v1361 = vlaneseq
        %v1362 = vshrl.u32 %v1361, 7
        %v1363 = vsub.s32 %v1360, %v1362
        %v1364 = vrot.slane %v1356, %v1363
        %v1366 = vunpack.c.l.s4 1934713408
        %v1367 = vunpack.c.0.s8 %v1366
        %v1368 = vlaneseq
        %v1369 = vshrl.u32 %v1368, 7
        %v1370 = vsub.s32 %v1367, %v1369
        %v1371 = vrot.slane %v1357, %v1370
        %v1372 = vcombine.low %v1340, %v1355
        %v1373 = vcombine.high %v1340, %v1355
        %v1375 = vunpack.c.l.s4 1934713408
        %v1376 = vunpack.c.0.s8 %v1375
        %v1377 = vlaneseq
        %v1378 = vshrl.u32 %v1377, 7
        %v1379 = vsub.s32 %v1376, %v1378
        %v1380 = vrot.slane %v1372, %v1379
        %v1382 = vunpack.c.l.s4 1934713408
        %v1383 = vunpack.c.0.s8 %v1382
        %v1384 = vlaneseq
        %v1385 = vshrl.u32 %v1384, 7
        %v1386 = vsub.s32 %v1383, %v1385
        %v1387 = vrot.slane %v1373, %v1386
        %v1388 = vcombine.high %v1364, 0.0
        %v1389 = vcombine.high %v1371, 0.0
        %v1390 = vcombine.high %v1380, 0.0
        %v1391 = vcombine.high %v1387, 0.0
        %v1392 = vcombine.high %v1094, 0.0
        %v1394 = vunpack.c.l.s4 1983009808
        %v1395 = vunpack.c.0.s8 %v1394
        %v1396 = vlaneseq
        %v1397 = vshrl.u32 %v1396, 7
        %v1398 = vsub.s32 %v1395, %v1397
        %v1399 = vrot.slane %v1094, %v1398
        %v1401 = vunpack.c.l.s4 1983009808
        %v1402 = vunpack.c.0.s8 %v1401
        %v1403 = vlaneseq
        %v1404 = vshrl.u32 %v1403, 7
        %v1405 = vsub.s32 %v1402, %v1404
        %v1406 = vrot.slane %v1392, %v1405
        %v1407 = vcombine.high %v1191, 0.0
        %v1409 = vunpack.c.l.s4 1983009808
        %v1410 = vunpack.c.0.s8 %v1409
        %v1411 = vlaneseq
        %v1412 = vshrl.u32 %v1411, 7
        %v1413 = vsub.s32 %v1410, %v1412
        %v1414 = vrot.slane %v1191, %v1413
        %v1416 = vunpack.c.l.s4 1983009808
        %v1417 = vunpack.c.0.s8 %v1416
        %v1418 = vlaneseq
        %v1419 = vshrl.u32 %v1418, 7
        %v1420 = vsub.s32 %v1417, %v1419
        %v1421 = vrot.slane %v1407, %v1420
        %v1422 = vcombine.low %v1399, %v1414
        %v1423 = vcombine.high %v1399, %v1414
        %v1425 = vunpack.c.l.s4 1934713408
        %v1426 = vunpack.c.0.s8 %v1425
        %v1427 = vlaneseq
        %v1428 = vshrl.u32 %v1427, 7
        %v1429 = vsub.s32 %v1426, %v1428
        %v1430 = vrot.slane %v1422, %v1429
        %v1432 = vunpack.c.l.s4 1934713408
        %v1433 = vunpack.c.0.s8 %v1432
        %v1434 = vlaneseq
        %v1435 = vshrl.u32 %v1434, 7
        %v1436 = vsub.s32 %v1433, %v1435
        %v1437 = vrot.slane %v1423, %v1436
        %v1438 = vcombine.low %v1406, %v1421
        %v1439 = vcombine.high %v1406, %v1421
        %v1441 = vunpack.c.l.s4 1934713408
        %v1442 = vunpack.c.0.s8 %v1441
        %v1443 = vlaneseq
        %v1444 = vshrl.u32 %v1443, 7
        %v1445 = vsub.s32 %v1442, %v1444
        %v1446 = vrot.slane %v1438, %v1445
        %v1448 = vunpack.c.l.s4 1934713408
        %v1449 = vunpack.c.0.s8 %v1448
        %v1450 = vlaneseq
        %v1451 = vshrl.u32 %v1450, 7
        %v1452 = vsub.s32 %v1449, %v1451
        %v1453 = vrot.slane %v1439, %v1452
        %v1454 = vcombine.high %v1430, 0.0
        %v1455 = vcombine.high %v1437, 0.0
        %v1456 = vcombine.high %v1446, 0.0
        %v1457 = vcombine.high %v1453, 0.0
        %1459 = vrot.lane.b32.xlu0 %v1256, 16
        %v1460 = vpop.permute.xlu0 %1459
        %1463 = vrot.lane.b32.xlu0 %v1239, 32
        %v1464 = vpop.permute.xlu0 %1463
        %1467 = vrot.lane.b32.xlu0 %v1257, 48
        %v1468 = vpop.permute.xlu0 %1467
        %1471 = vrot.lane.b32.xlu0 %v1248, 64
        %v1472 = vpop.permute.xlu0 %1471
        %1475 = vrot.lane.b32.xlu0 %v1258, 80
        %v1476 = vpop.permute.xlu0 %1475
        %1479 = vrot.lane.b32.xlu0 %v1255, 96
        %v1480 = vpop.permute.xlu0 %1479
        %1483 = vrot.lane.b32.xlu0 %v1259, 112
        %v1484 = vpop.permute.xlu0 %1483
        %1487 = vrot.lane.b32.xlu0 %v1322, 16
        %v1488 = vpop.permute.xlu0 %1487
        %1491 = vrot.lane.b32.xlu0 %v1305, 32
        %v1492 = vpop.permute.xlu0 %1491
        %1495 = vrot.lane.b32.xlu0 %v1323, 48
        %v1496 = vpop.permute.xlu0 %1495
        %1499 = vrot.lane.b32.xlu0 %v1314, 64
        %v1500 = vpop.permute.xlu0 %1499
        %1503 = vrot.lane.b32.xlu0 %v1324, 80
        %v1504 = vpop.permute.xlu0 %1503
        %1507 = vrot.lane.b32.xlu0 %v1321, 96
        %v1508 = vpop.permute.xlu0 %1507
        %1511 = vrot.lane.b32.xlu0 %v1325, 112
        %v1512 = vpop.permute.xlu0 %1511
        %1515 = vrot.lane.b32.xlu0 %v1388, 16
        %v1516 = vpop.permute.xlu0 %1515
        %1519 = vrot.lane.b32.xlu0 %v1371, 32
        %v1520 = vpop.permute.xlu0 %1519
        %1523 = vrot.lane.b32.xlu0 %v1389, 48
        %v1524 = vpop.permute.xlu0 %1523
        %1527 = vrot.lane.b32.xlu0 %v1380, 64
        %v1528 = vpop.permute.xlu0 %1527
        %1531 = vrot.lane.b32.xlu0 %v1390, 80
        %v1532 = vpop.permute.xlu0 %1531
        %1535 = vrot.lane.b32.xlu0 %v1387, 96
        %v1536 = vpop.permute.xlu0 %1535
        %1539 = vrot.lane.b32.xlu0 %v1391, 112
        %v1540 = vpop.permute.xlu0 %1539
        %1543 = vrot.lane.b32.xlu0 %v1454, 16
        %v1544 = vpop.permute.xlu0 %1543
        %1547 = vrot.lane.b32.xlu0 %v1437, 32
        %v1548 = vpop.permute.xlu0 %1547
        %1551 = vrot.lane.b32.xlu0 %v1455, 48
        %v1552 = vpop.permute.xlu0 %1551
        %1555 = vrot.lane.b32.xlu0 %v1446, 64
        %v1556 = vpop.permute.xlu0 %1555
        %1559 = vrot.lane.b32.xlu0 %v1456, 80
        %v1560 = vpop.permute.xlu0 %1559
        %1563 = vrot.lane.b32.xlu0 %v1453, 96
        %v1564 = vpop.permute.xlu0 %1563
        %1567 = vrot.lane.b32.xlu0 %v1457, 112
        %v1568 = vpop.permute.xlu0 %1567
        %v1570 = vsel %vm290, %v1232, %v1460
        %v1571 = vsel %vm911, %v1570, %v1464
        %vm1572 = vcmask 392192
        %v1573 = vsel %vm1572, %v1571, %v1468
        %v1574 = vsel %vm475, %v1573, %v1472
        %vm1575 = vcmask 654336
        %v1576 = vsel %vm1575, %v1574, %v1476
        %vm1577 = vcmask 785408
        %v1578 = vsel %vm1577, %v1576, %v1480
        %vm1579 = vcmask 916480
        %v1580 = vsel %vm1579, %v1578, %v1484
        %v1581 = vsel %vm290, %v1298, %v1488
        %v1582 = vsel %vm911, %v1581, %v1492
        %v1583 = vsel %vm1572, %v1582, %v1496
        %v1584 = vsel %vm475, %v1583, %v1500
        %v1585 = vsel %vm1575, %v1584, %v1504
        %v1586 = vsel %vm1577, %v1585, %v1508
        %v1587 = vsel %vm1579, %v1586, %v1512
        %v1588 = vsel %vm290, %v1364, %v1516
        %v1589 = vsel %vm911, %v1588, %v1520
        %v1590 = vsel %vm1572, %v1589, %v1524
        %v1591 = vsel %vm475, %v1590, %v1528
        %v1592 = vsel %vm1575, %v1591, %v1532
        %v1593 = vsel %vm1577, %v1592, %v1536
        %v1594 = vsel %vm1579, %v1593, %v1540
        %v1595 = vsel %vm290, %v1430, %v1544
        %v1596 = vsel %vm911, %v1595, %v1548
        %v1597 = vsel %vm1572, %v1596, %v1552
        %v1598 = vsel %vm475, %v1597, %v1556
        %v1599 = vsel %vm1575, %v1598, %v1560
        %v1600 = vsel %vm1577, %v1599, %v1564
        %v1601 = vsel %vm1579, %v1600, %v1568
        %v1606 = vcombine.low %v1580, %v1587
        %v1607 = vcombine.low %v1594, %v1601
        %v1609 = vunpack.c.l.s4 1983009808
        %v1610 = vunpack.c.0.s8 %v1609
        %v1611 = vlaneseq
        %v1612 = vshrl.u32 %v1611, 7
        %v1613 = vsub.s32 %v1610, %v1612
        %v1614 = vrot.slane %v1606, %v1613
        %v1616 = vunpack.c.l.s4 1983009808
        %v1617 = vunpack.c.0.s8 %v1616
        %v1618 = vlaneseq
        %v1619 = vshrl.u32 %v1618, 7
        %v1620 = vsub.s32 %v1617, %v1619
        %v1621 = vrot.slane %v1607, %v1620
        %v1622 = vcombine.low %v1614, %v1621
        %1624 = vst [vmem:[%s251] sm:$0xff] %v1622
        %v1625 = vcombine.high %v992, 0.0
        %v1627 = vunpack.c.l.s4 1983009808
        %v1628 = vunpack.c.0.s8 %v1627
        %v1629 = vlaneseq
        %v1630 = vshrl.u32 %v1629, 7
        %v1631 = vsub.s32 %v1628, %v1630
        %v1632 = vrot.slane %v992, %v1631
        %v1634 = vunpack.c.l.s4 1983009808
        %v1635 = vunpack.c.0.s8 %v1634
        %v1636 = vlaneseq
        %v1637 = vshrl.u32 %v1636, 7
        %v1638 = vsub.s32 %v1635, %v1637
        %v1639 = vrot.slane %v1625, %v1638
        %v1640 = vcombine.high %v996, 0.0
        %v1642 = vunpack.c.l.s4 1983009808
        %v1643 = vunpack.c.0.s8 %v1642
        %v1644 = vlaneseq
        %v1645 = vshrl.u32 %v1644, 7
        %v1646 = vsub.s32 %v1643, %v1645
        %v1647 = vrot.slane %v996, %v1646
        %v1649 = vunpack.c.l.s4 1983009808
        %v1650 = vunpack.c.0.s8 %v1649
        %v1651 = vlaneseq
        %v1652 = vshrl.u32 %v1651, 7
        %v1653 = vsub.s32 %v1650, %v1652
        %v1654 = vrot.slane %v1640, %v1653
        %v1655 = vcombine.low %v1632, %v1647
        %v1656 = vcombine.high %v1632, %v1647
        %v1658 = vunpack.c.l.s4 1934713408
        %v1659 = vunpack.c.0.s8 %v1658
        %v1660 = vlaneseq
        %v1661 = vshrl.u32 %v1660, 7
        %v1662 = vsub.s32 %v1659, %v1661
        %v1663 = vrot.slane %v1655, %v1662
        %v1665 = vunpack.c.l.s4 1934713408
        %v1666 = vunpack.c.0.s8 %v1665
        %v1667 = vlaneseq
        %v1668 = vshrl.u32 %v1667, 7
        %v1669 = vsub.s32 %v1666, %v1668
        %v1670 = vrot.slane %v1656, %v1669
        %v1671 = vcombine.low %v1639, %v1654
        %v1672 = vcombine.high %v1639, %v1654
        %v1674 = vunpack.c.l.s4 1934713408
        %v1675 = vunpack.c.0.s8 %v1674
        %v1676 = vlaneseq
        %v1677 = vshrl.u32 %v1676, 7
        %v1678 = vsub.s32 %v1675, %v1677
        %v1679 = vrot.slane %v1671, %v1678
        %v1681 = vunpack.c.l.s4 1934713408
        %v1682 = vunpack.c.0.s8 %v1681
        %v1683 = vlaneseq
        %v1684 = vshrl.u32 %v1683, 7
        %v1685 = vsub.s32 %v1682, %v1684
        %v1686 = vrot.slane %v1672, %v1685
        %v1687 = vcombine.high %v1663, 0.0
        %v1688 = vcombine.high %v1670, 0.0
        %v1689 = vcombine.high %v1679, 0.0
        %v1690 = vcombine.high %v1686, 0.0
        %v1691 = vcombine.high %v993, 0.0
        %v1693 = vunpack.c.l.s4 1983009808
        %v1694 = vunpack.c.0.s8 %v1693
        %v1695 = vlaneseq
        %v1696 = vshrl.u32 %v1695, 7
        %v1697 = vsub.s32 %v1694, %v1696
        %v1698 = vrot.slane %v993, %v1697
        %v1700 = vunpack.c.l.s4 1983009808
        %v1701 = vunpack.c.0.s8 %v1700
        %v1702 = vlaneseq
        %v1703 = vshrl.u32 %v1702, 7
        %v1704 = vsub.s32 %v1701, %v1703
        %v1705 = vrot.slane %v1691, %v1704
        %v1706 = vcombine.high %v997, 0.0
        %v1708 = vunpack.c.l.s4 1983009808
        %v1709 = vunpack.c.0.s8 %v1708
        %v1710 = vlaneseq
        %v1711 = vshrl.u32 %v1710, 7
        %v1712 = vsub.s32 %v1709, %v1711
        %v1713 = vrot.slane %v997, %v1712
        %v1715 = vunpack.c.l.s4 1983009808
        %v1716 = vunpack.c.0.s8 %v1715
        %v1717 = vlaneseq
        %v1718 = vshrl.u32 %v1717, 7
        %v1719 = vsub.s32 %v1716, %v1718
        %v1720 = vrot.slane %v1706, %v1719
        %v1721 = vcombine.low %v1698, %v1713
        %v1722 = vcombine.high %v1698, %v1713
        %v1724 = vunpack.c.l.s4 1934713408
        %v1725 = vunpack.c.0.s8 %v1724
        %v1726 = vlaneseq
        %v1727 = vshrl.u32 %v1726, 7
        %v1728 = vsub.s32 %v1725, %v1727
        %v1729 = vrot.slane %v1721, %v1728
        %v1731 = vunpack.c.l.s4 1934713408
        %v1732 = vunpack.c.0.s8 %v1731
        %v1733 = vlaneseq
        %v1734 = vshrl.u32 %v1733, 7
        %v1735 = vsub.s32 %v1732, %v1734
        %v1736 = vrot.slane %v1722, %v1735
        %v1737 = vcombine.low %v1705, %v1720
        %v1738 = vcombine.high %v1705, %v1720
        %v1740 = vunpack.c.l.s4 1934713408
        %v1741 = vunpack.c.0.s8 %v1740
        %v1742 = vlaneseq
        %v1743 = vshrl.u32 %v1742, 7
        %v1744 = vsub.s32 %v1741, %v1743
        %v1745 = vrot.slane %v1737, %v1744
        %v1747 = vunpack.c.l.s4 1934713408
        %v1748 = vunpack.c.0.s8 %v1747
        %v1749 = vlaneseq
        %v1750 = vshrl.u32 %v1749, 7
        %v1751 = vsub.s32 %v1748, %v1750
        %v1752 = vrot.slane %v1738, %v1751
        %v1753 = vcombine.high %v1729, 0.0
        %v1754 = vcombine.high %v1736, 0.0
        %v1755 = vcombine.high %v1745, 0.0
        %v1756 = vcombine.high %v1752, 0.0
        %v1757 = vcombine.high %v994, 0.0
        %v1759 = vunpack.c.l.s4 1983009808
        %v1760 = vunpack.c.0.s8 %v1759
        %v1761 = vlaneseq
        %v1762 = vshrl.u32 %v1761, 7
        %v1763 = vsub.s32 %v1760, %v1762
        %v1764 = vrot.slane %v994, %v1763
        %v1766 = vunpack.c.l.s4 1983009808
        %v1767 = vunpack.c.0.s8 %v1766
        %v1768 = vlaneseq
        %v1769 = vshrl.u32 %v1768, 7
        %v1770 = vsub.s32 %v1767, %v1769
        %v1771 = vrot.slane %v1757, %v1770
        %v1772 = vcombine.high %v998, 0.0
        %v1774 = vunpack.c.l.s4 1983009808
        %v1775 = vunpack.c.0.s8 %v1774
        %v1776 = vlaneseq
        %v1777 = vshrl.u32 %v1776, 7
        %v1778 = vsub.s32 %v1775, %v1777
        %v1779 = vrot.slane %v998, %v1778
        %v1781 = vunpack.c.l.s4 1983009808
        %v1782 = vunpack.c.0.s8 %v1781
        %v1783 = vlaneseq
        %v1784 = vshrl.u32 %v1783, 7
        %v1785 = vsub.s32 %v1782, %v1784
        %v1786 = vrot.slane %v1772, %v1785
        %v1787 = vcombine.low %v1764, %v1779
        %v1788 = vcombine.high %v1764, %v1779
        %v1790 = vunpack.c.l.s4 1934713408
        %v1791 = vunpack.c.0.s8 %v1790
        %v1792 = vlaneseq
        %v1793 = vshrl.u32 %v1792, 7
        %v1794 = vsub.s32 %v1791, %v1793
        %v1795 = vrot.slane %v1787, %v1794
        %v1797 = vunpack.c.l.s4 1934713408
        %v1798 = vunpack.c.0.s8 %v1797
        %v1799 = vlaneseq
        %v1800 = vshrl.u32 %v1799, 7
        %v1801 = vsub.s32 %v1798, %v1800
        %v1802 = vrot.slane %v1788, %v1801
        %v1803 = vcombine.low %v1771, %v1786
        %v1804 = vcombine.high %v1771, %v1786
        %v1806 = vunpack.c.l.s4 1934713408
        %v1807 = vunpack.c.0.s8 %v1806
        %v1808 = vlaneseq
        %v1809 = vshrl.u32 %v1808, 7
        %v1810 = vsub.s32 %v1807, %v1809
        %v1811 = vrot.slane %v1803, %v1810
        %v1813 = vunpack.c.l.s4 1934713408
        %v1814 = vunpack.c.0.s8 %v1813
        %v1815 = vlaneseq
        %v1816 = vshrl.u32 %v1815, 7
        %v1817 = vsub.s32 %v1814, %v1816
        %v1818 = vrot.slane %v1804, %v1817
        %v1819 = vcombine.high %v1795, 0.0
        %v1820 = vcombine.high %v1802, 0.0
        %v1821 = vcombine.high %v1811, 0.0
        %v1822 = vcombine.high %v1818, 0.0
        %v1823 = vcombine.high %v995, 0.0
        %v1825 = vunpack.c.l.s4 1983009808
        %v1826 = vunpack.c.0.s8 %v1825
        %v1827 = vlaneseq
        %v1828 = vshrl.u32 %v1827, 7
        %v1829 = vsub.s32 %v1826, %v1828
        %v1830 = vrot.slane %v995, %v1829
        %v1832 = vunpack.c.l.s4 1983009808
        %v1833 = vunpack.c.0.s8 %v1832
        %v1834 = vlaneseq
        %v1835 = vshrl.u32 %v1834, 7
        %v1836 = vsub.s32 %v1833, %v1835
        %v1837 = vrot.slane %v1823, %v1836
        %v1838 = vcombine.high %v999, 0.0
        %v1840 = vunpack.c.l.s4 1983009808
        %v1841 = vunpack.c.0.s8 %v1840
        %v1842 = vlaneseq
        %v1843 = vshrl.u32 %v1842, 7
        %v1844 = vsub.s32 %v1841, %v1843
        %v1845 = vrot.slane %v999, %v1844
        %v1847 = vunpack.c.l.s4 1983009808
        %v1848 = vunpack.c.0.s8 %v1847
        %v1849 = vlaneseq
        %v1850 = vshrl.u32 %v1849, 7
        %v1851 = vsub.s32 %v1848, %v1850
        %v1852 = vrot.slane %v1838, %v1851
        %v1853 = vcombine.low %v1830, %v1845
        %v1854 = vcombine.high %v1830, %v1845
        %v1856 = vunpack.c.l.s4 1934713408
        %v1857 = vunpack.c.0.s8 %v1856
        %v1858 = vlaneseq
        %v1859 = vshrl.u32 %v1858, 7
        %v1860 = vsub.s32 %v1857, %v1859
        %v1861 = vrot.slane %v1853, %v1860
        %v1863 = vunpack.c.l.s4 1934713408
        %v1864 = vunpack.c.0.s8 %v1863
        %v1865 = vlaneseq
        %v1866 = vshrl.u32 %v1865, 7
        %v1867 = vsub.s32 %v1864, %v1866
        %v1868 = vrot.slane %v1854, %v1867
        %v1869 = vcombine.low %v1837, %v1852
        %v1870 = vcombine.high %v1837, %v1852
        %v1872 = vunpack.c.l.s4 1934713408
        %v1873 = vunpack.c.0.s8 %v1872
        %v1874 = vlaneseq
        %v1875 = vshrl.u32 %v1874, 7
        %v1876 = vsub.s32 %v1873, %v1875
        %v1877 = vrot.slane %v1869, %v1876
        %v1879 = vunpack.c.l.s4 1934713408
        %v1880 = vunpack.c.0.s8 %v1879
        %v1881 = vlaneseq
        %v1882 = vshrl.u32 %v1881, 7
        %v1883 = vsub.s32 %v1880, %v1882
        %v1884 = vrot.slane %v1870, %v1883
        %v1885 = vcombine.high %v1861, 0.0
        %v1886 = vcombine.high %v1868, 0.0
        %v1887 = vcombine.high %v1877, 0.0
        %v1888 = vcombine.high %v1884, 0.0
        %1890 = vrot.lane.b32.xlu0 %v1687, 32
        %v1891 = vpop.permute.xlu0 %1890
        %1894 = vrot.lane.b32.xlu0 %v1670, 64
        %v1895 = vpop.permute.xlu0 %1894
        %1898 = vrot.lane.b32.xlu0 %v1688, 96
        %v1899 = vpop.permute.xlu0 %1898
        %1902 = vrot.lane.b32.xlu0 %v1689, 32
        %v1903 = vpop.permute.xlu0 %1902
        %1906 = vrot.lane.b32.xlu0 %v1686, 64
        %v1907 = vpop.permute.xlu0 %1906
        %1910 = vrot.lane.b32.xlu0 %v1690, 96
        %v1911 = vpop.permute.xlu0 %1910
        %1914 = vrot.lane.b32.xlu0 %v1753, 32
        %v1915 = vpop.permute.xlu0 %1914
        %1918 = vrot.lane.b32.xlu0 %v1736, 64
        %v1919 = vpop.permute.xlu0 %1918
        %1922 = vrot.lane.b32.xlu0 %v1754, 96
        %v1923 = vpop.permute.xlu0 %1922
        %1926 = vrot.lane.b32.xlu0 %v1755, 32
        %v1927 = vpop.permute.xlu0 %1926
        %1930 = vrot.lane.b32.xlu0 %v1752, 64
        %v1931 = vpop.permute.xlu0 %1930
        %1934 = vrot.lane.b32.xlu0 %v1756, 96
        %v1935 = vpop.permute.xlu0 %1934
        %1938 = vrot.lane.b32.xlu0 %v1819, 32
        %v1939 = vpop.permute.xlu0 %1938
        %1942 = vrot.lane.b32.xlu0 %v1802, 64
        %v1943 = vpop.permute.xlu0 %1942
        %1946 = vrot.lane.b32.xlu0 %v1820, 96
        %v1947 = vpop.permute.xlu0 %1946
        %1950 = vrot.lane.b32.xlu0 %v1821, 32
        %v1951 = vpop.permute.xlu0 %1950
        %1954 = vrot.lane.b32.xlu0 %v1818, 64
        %v1955 = vpop.permute.xlu0 %1954
        %1958 = vrot.lane.b32.xlu0 %v1822, 96
        %v1959 = vpop.permute.xlu0 %1958
        %1962 = vrot.lane.b32.xlu0 %v1885, 32
        %v1963 = vpop.permute.xlu0 %1962
        %1966 = vrot.lane.b32.xlu0 %v1868, 64
        %v1967 = vpop.permute.xlu0 %1966
        %1970 = vrot.lane.b32.xlu0 %v1886, 96
        %v1971 = vpop.permute.xlu0 %1970
        %1974 = vrot.lane.b32.xlu0 %v1887, 32
        %v1975 = vpop.permute.xlu0 %1974
        %1978 = vrot.lane.b32.xlu0 %v1884, 64
        %v1979 = vpop.permute.xlu0 %1978
        %1982 = vrot.lane.b32.xlu0 %v1888, 96
        %v1983 = vpop.permute.xlu0 %1982
        %v1985 = vsel %vm911, %v1663, %v1891
        %v1986 = vsel %vm475, %v1985, %v1895
        %v1987 = vsel %vm1577, %v1986, %v1899
        %v1988 = vsel %vm911, %v1679, %v1903
        %v1989 = vsel %vm475, %v1988, %v1907
        %v1990 = vsel %vm1577, %v1989, %v1911
        %v1991 = vsel %vm911, %v1729, %v1915
        %v1992 = vsel %vm475, %v1991, %v1919
        %v1993 = vsel %vm1577, %v1992, %v1923
        %v1994 = vsel %vm911, %v1745, %v1927
        %v1995 = vsel %vm475, %v1994, %v1931
        %v1996 = vsel %vm1577, %v1995, %v1935
        %v1997 = vsel %vm911, %v1795, %v1939
        %v1998 = vsel %vm475, %v1997, %v1943
        %v1999 = vsel %vm1577, %v1998, %v1947
        %v2000 = vsel %vm911, %v1811, %v1951
        %v2001 = vsel %vm475, %v2000, %v1955
        %v2002 = vsel %vm1577, %v2001, %v1959
        %v2003 = vsel %vm911, %v1861, %v1963
        %v2004 = vsel %vm475, %v2003, %v1967
        %v2005 = vsel %vm1577, %v2004, %v1971
        %v2006 = vsel %vm911, %v1877, %v1975
        %v2007 = vsel %vm475, %v2006, %v1979
        %v2008 = vsel %vm1577, %v2007, %v1983
        %v2017 = vcombine.low %v1987, %v1990
        %v2018 = vcombine.low %v1993, %v1996
        %v2020 = vunpack.c.l.s4 1983009808
        %v2021 = vunpack.c.0.s8 %v2020
        %v2022 = vlaneseq
        %v2023 = vshrl.u32 %v2022, 7
        %v2024 = vsub.s32 %v2021, %v2023
        %v2025 = vrot.slane %v2017, %v2024
        %v2027 = vunpack.c.l.s4 1983009808
        %v2028 = vunpack.c.0.s8 %v2027
        %v2029 = vlaneseq
        %v2030 = vshrl.u32 %v2029, 7
        %v2031 = vsub.s32 %v2028, %v2030
        %v2032 = vrot.slane %v2018, %v2031
        %v2033 = vcombine.low %v2025, %v2032
        %v2034 = vcombine.low %v1999, %v2002
        %v2035 = vcombine.low %v2005, %v2008
        %v2037 = vunpack.c.l.s4 1983009808
        %v2038 = vunpack.c.0.s8 %v2037
        %v2039 = vlaneseq
        %v2040 = vshrl.u32 %v2039, 7
        %v2041 = vsub.s32 %v2038, %v2040
        %v2042 = vrot.slane %v2034, %v2041
        %v2044 = vunpack.c.l.s4 1983009808
        %v2045 = vunpack.c.0.s8 %v2044
        %v2046 = vlaneseq
        %v2047 = vshrl.u32 %v2046, 7
        %v2048 = vsub.s32 %v2045, %v2047
        %v2049 = vrot.slane %v2035, %v2048
        %v2050 = vcombine.low %v2042, %v2049
        %2053 = vst [vmem:[%s258] sm:$0xff] %v2033
        %2054 = vst [vmem:[%s258 + $0x8] sm:$0xff] %v2050
        %s2055 = sand.u32 %s142, 1
        %s2056 = scalar_lea.sflag [#allocation3], %s2055
        %s2057 = sand.u32 %s142, 1
        %s2058 = smul.addr %s2057, 8
        %s2059 = scalar_lea.vmem [#allocation2], %s2058
        %s2060 = sand.u32 %s168, 1
        %s2061 = scalar_lea.sflag [#allocation5], %s2060
        %s2062 = sand.u32 %s168, 1
        %s2063 = smul.addr %s2062, 16
        %s2064 = scalar_lea.vmem [#allocation4], %s2063
        // Predicated region
        $region41: #{tpu_custom_call.1} parent=39 // pred_check
          %p2065 = pneg %p152
        $region42: #{tpu_custom_call.1} parent=39 // pred_check_branch
          %2067 = sbr.rel (%p2065) target = $region44
        $region43: #{tpu_custom_call.1} parent=39 // pred_region
          %s2069 = ssub.s32 128, 128
          %2070 = vsyncadd %s2056, %s2069
          %s2071 = smul.addr %s24, 4
          %s2072 = smul.addr %s2071, 32
          %s2073 = scalar_lea.hbm %s5, %s2072
          %s2075 = sshll.u32 %s2059, 4
          %s2076 = int_to_ptr.vmem [resolvable:$true] %s2075
          %2078 = dma.vmem_to_hbm [thread:$0]  %s2076, 128, %s2073, %s2056
        $region44: #{tpu_custom_call.1} parent=39 // pred_fallthru
          _
        // Predicated region
        $region45: #{tpu_custom_call.1} parent=39 // pred_check
          %p2079 = pneg %p178
        $region46: #{tpu_custom_call.1} parent=39 // pred_check_branch
          %2081 = sbr.rel (%p2079) target = $region48
        $region47: #{tpu_custom_call.1} parent=39 // pred_region
          %s2083 = ssub.s32 256, 256
          %2084 = vsyncadd %s2061, %s2083
          %s2085 = smul.addr %s24, 8
          %s2086 = smul.addr %s2085, 32
          %s2087 = scalar_lea.hbm %s6, %s2086
          %s2089 = sshll.u32 %s2064, 4
          %s2090 = int_to_ptr.vmem [resolvable:$true] %s2089
          %2092 = dma.vmem_to_hbm [thread:$0]  %s2090, 256, %s2087, %s2061
        $region48: #{tpu_custom_call.1} parent=39 // pred_fallthru
          _
      $region40: #{tpu_custom_call.1} parent=5 // pred_fallthru
        _
      %p2093 = scmp.le.s32.totalorder 2, %s19
      // Predicated region
      $region49: #{tpu_custom_call.1} parent=5 // pred_check
        %p2094 = pneg %p2093
      $region50: #{tpu_custom_call.1} parent=5 // pred_check_branch
        %2096 = sbr.rel (%p2094) target = $region52
      $region51: #{tpu_custom_call.1} parent=5 // pred_region
        %s2097 = ssub.s32 %s19, 2
        // Predicated region
        $region53: #{tpu_custom_call.1} parent=51 // pred_check
          %p2098 = pneg %p158
        $region54: #{tpu_custom_call.1} parent=51 // pred_check_branch
          %2100 = sbr.rel (%p2098) target = $region56
        $region55: #{tpu_custom_call.1} parent=51 // pred_region
          %s2101 = sand.u32 %s143, 1
          %s2102 = scalar_lea.sflag [#allocation3], %s2101
          %s2103 = sand.u32 %s143, 1
          %s2104 = smul.addr %s2103, 8
          %s2105 = scalar_lea.vmem [#allocation2], %s2104
          %2106 = dma.done %s2102, 128
        $region56: #{tpu_custom_call.1} parent=51 // pred_fallthru
          _
        // Predicated region
        $region57: #{tpu_custom_call.1} parent=51 // pred_check
          %p2107 = pneg %p184
        $region58: #{tpu_custom_call.1} parent=51 // pred_check_branch
          %2109 = sbr.rel (%p2107) target = $region60
        $region59: #{tpu_custom_call.1} parent=51 // pred_region
          %s2110 = sand.u32 %s169, 1
          %s2111 = scalar_lea.sflag [#allocation5], %s2110
          %s2112 = sand.u32 %s169, 1
          %s2113 = smul.addr %s2112, 16
          %s2114 = scalar_lea.vmem [#allocation4], %s2113
          %2115 = dma.done %s2111, 256
        $region60: #{tpu_custom_call.1} parent=51 // pred_fallthru
          _
      $region52: #{tpu_custom_call.1} parent=5 // pred_fallthru
        _
    $region6: #{tpu_custom_call.1} parent=1 // loop_footer
      %s23 = sadd.s32 1, %s19
    $region7: #{tpu_custom_call.1} parent=1 // loop_footer_branch
      %18 = sbr.rel target = $region3
    $region8: #{tpu_custom_call.1} parent=1 // loop_exit
      _
    %2116 = vsyncpa [#allocation3], 1
    %s2117 = scalar_lea.sflag [#allocation3], 1
    %2118 = vsyncpa %s2117, 1
    %2119 = vsyncpa [#allocation5], 1
    %s2120 = scalar_lea.sflag [#allocation5], 1
    %2121 = vsyncpa %s2120, 1

// kernel: tpu_custom_call.1
$region0: #{tpu_custom_call.1}
  #allocation0 [shape = 'u32[]', space=smem, size = 0x4, offset = 0x4, fixed_abs, tag = 'smem constant byte address 0x4 - core index']
  #allocation1 [shape = 'u32[144,128]{1,0:T(1,128)}', space=vmem, size = 0x12000, scoped, tag = 'internal scratch']
  %s0 = inlined_call_operand.vmem [shape: f32[4,32,16], index: 0, kind: input, shape index: {}]
  %s1 = inlined_call_operand.vmem [shape: f32[16,192], index: 1, kind: input, shape index: {}]
  %s2 = inlined_call_operand.vmem [shape: f32[1,192], index: 2, kind: input, shape index: {}]
  %s3 = inlined_call_operand.vmem [shape: f32[192,48], index: 3, kind: input, shape index: {}]
  %s4 = inlined_call_operand.vmem [shape: f32[1,48], index: 4, kind: input, shape index: {}]
  %s5 = inlined_call_operand.vmem [shape: f32[4,32,16], index: 5, kind: output, shape index: {0}]
  %s6 = inlined_call_operand.hbm [shape: f32[4,32,32], index: 6, kind: output, shape index: {1}]
  %7 = xla_tuple %s5, %s6
  %s8 = sld [smem:[#allocation0]]
  $region61: #{tpu_custom_call.1} parent=0
    _
  %s10 = ssub.s32 1, %s8
  %s11 = scalar_select 0, %s10, %s8
  $region1: #{tpu_custom_call.1} parent=0
    #allocation2 [shape = 'u8[65536]{0}', space=vmem, size = 0x10000, scoped, tag = 'output window, operand 1']
    #allocation3 [shape = 's32[2]{0}', space=sflag, size = 0x8, scoped, tag = 'scoped memory for tpu_custom_call.1']
    %12 = vsyncpa [#allocation3], 0
    %s13 = scalar_lea.sflag [#allocation3], 1
    %14 = vsyncpa %s13, 0
    loop: start=0, step=1, limit=4
    $region2: #{tpu_custom_call.1} parent=1 // loop_pre_header
      _
    $region3: #{tpu_custom_call.1} parent=1 // loop_header
      %s16 = sphi 0, %s20
      %p17 = scmp.ge.s32.totalorder %s16, 4
      %s26 = sphi 0, %s28
      %s29 = sphi 0, %s26
      %s30 = sphi 0, %s29
      %s46 = sphi 0, %s30
      %s50 = sphi 0, %s50
      %s52 = sphi 0, %s50
      %s53 = sphi 0, %s52
      %s67 = sphi 0, %s53
      %s71 = sphi 0, %s71
      %s73 = sphi 0, %s71
      %s74 = sphi 0, %s73
      %s88 = sphi 0, %s74
      %s92 = sphi 0, %s92
      %s94 = sphi 0, %s92
      %s95 = sphi 0, %s94
      %s109 = sphi 0, %s95
      %s113 = sphi 0, %s113
      %s115 = sphi 0, %s113
      %s116 = sphi 0, %s115
      %s130 = sphi 0, %s116
      %s136 = sphi 0, %s138
      %s139 = sphi 0, %s136
      %s140 = sphi 0, %s139
      %s156 = sphi 0, %s140
      %s162 = sphi 0, %s164
      %s165 = sphi 0, %s162
      %s166 = sphi 0, %s165
      %s182 = sphi 0, %s166
    $region4: #{tpu_custom_call.1} parent=1 // loop_header_branch
      %19 = sbr.rel (%p17) target = $region8
    $region5: #{tpu_custom_call.1} parent=1 // loop_body
      %s21 = ssub.s32 %s16, 1
      %s22 = ssub.s32 %s16, 2
      %s23 = sadd.s32 %s16, 1
      %s24 = ssub.s32 %s16, %s23
      %p25 = scmp.eq.s32.totalorder %s24, 0
      %s27 = sadd.s32 %s26, 1
      %s28 = scalar_select %p25, %s26, %s27
      %p31 = pneg %p25
      %p32 = scmp.eq.s32.totalorder %s16, 1
      %p33 = por %p31, %p32
      %p34 = scmp.ne.s32.totalorder %s26, %s29
      %p35 = scmp.eq.s32.totalorder %s16, 0
      %p36 = por %p34, %p35
      %p37 = scmp.ne.s32.totalorder %s26, %s29
      %p38 = scmp.eq.s32.totalorder %s21, 1
      %p39 = por %p37, %p38
      %p40 = scmp.ne.s32.totalorder %s29, %s30
      %p41 = scmp.eq.s32.totalorder %s21, 0
      %p42 = por %p40, %p41
      %p43 = scmp.ne.s32.totalorder %s29, %s30
      %p44 = scmp.eq.s32.totalorder %s22, 1
      %p45 = por %p43, %p44
      %p47 = scmp.ne.s32.totalorder %s30, %s46
      %p48 = scmp.eq.s32.totalorder %s22, 0
      %p49 = por %p47, %p48
      %s51 = sadd.s32 %s50, 1
      %p54 = scmp.eq.s32.totalorder %s16, 1
      %p55 = scmp.ne.s32.totalorder %s50, %s52
      %p56 = scmp.eq.s32.totalorder %s16, 0
      %p57 = por %p55, %p56
      %p58 = scmp.ne.s32.totalorder %s50, %s52
      %p59 = scmp.eq.s32.totalorder %s21, 1
      %p60 = por %p58, %p59
      %p61 = scmp.ne.s32.totalorder %s52, %s53
      %p62 = scmp.eq.s32.totalorder %s21, 0
      %p63 = por %p61, %p62
      %p64 = scmp.ne.s32.totalorder %s52, %s53
      %p65 = scmp.eq.s32.totalorder %s22, 1
      %p66 = por %p64, %p65
      %p68 = scmp.ne.s32.totalorder %s53, %s67
      %p69 = scmp.eq.s32.totalorder %s22, 0
      %p70 = por %p68, %p69
      %s72 = sadd.s32 %s71, 1
      %p75 = scmp.eq.s32.totalorder %s16, 1
      %p76 = scmp.ne.s32.totalorder %s71, %s73
      %p77 = scmp.eq.s32.totalorder %s16, 0
      %p78 = por %p76, %p77
      %p79 = scmp.ne.s32.totalorder %s71, %s73
      %p80 = scmp.eq.s32.totalorder %s21, 1
      %p81 = por %p79, %p80
      %p82 = scmp.ne.s32.totalorder %s73, %s74
      %p83 = scmp.eq.s32.totalorder %s21, 0
      %p84 = por %p82, %p83
      %p85 = scmp.ne.s32.totalorder %s73, %s74
      %p86 = scmp.eq.s32.totalorder %s22, 1
      %p87 = por %p85, %p86
      %p89 = scmp.ne.s32.totalorder %s74, %s88
      %p90 = scmp.eq.s32.totalorder %s22, 0
      %p91 = por %p89, %p90
      %s93 = sadd.s32 %s92, 1
      %p96 = scmp.eq.s32.totalorder %s16, 1
      %p97 = scmp.ne.s32.totalorder %s92, %s94
      %p98 = scmp.eq.s32.totalorder %s16, 0
      %p99 = por %p97, %p98
      %p100 = scmp.ne.s32.totalorder %s92, %s94
      %p101 = scmp.eq.s32.totalorder %s21, 1
      %p102 = por %p100, %p101
      %p103 = scmp.ne.s32.totalorder %s94, %s95
      %p104 = scmp.eq.s32.totalorder %s21, 0
      %p105 = por %p103, %p104
      %p106 = scmp.ne.s32.totalorder %s94, %s95
      %p107 = scmp.eq.s32.totalorder %s22, 1
      %p108 = por %p106, %p107
      %p110 = scmp.ne.s32.totalorder %s95, %s109
      %p111 = scmp.eq.s32.totalorder %s22, 0
      %p112 = por %p110, %p111
      %s114 = sadd.s32 %s113, 1
      %p117 = scmp.eq.s32.totalorder %s16, 1
      %p118 = scmp.ne.s32.totalorder %s113, %s115
      %p119 = scmp.eq.s32.totalorder %s16, 0
      %p120 = por %p118, %p119
      %p121 = scmp.ne.s32.totalorder %s113, %s115
      %p122 = scmp.eq.s32.totalorder %s21, 1
      %p123 = por %p121, %p122
      %p124 = scmp.ne.s32.totalorder %s115, %s116
      %p125 = scmp.eq.s32.totalorder %s21, 0
      %p126 = por %p124, %p125
      %p127 = scmp.ne.s32.totalorder %s115, %s116
      %p128 = scmp.eq.s32.totalorder %s22, 1
      %p129 = por %p127, %p128
      %p131 = scmp.ne.s32.totalorder %s116, %s130
      %p132 = scmp.eq.s32.totalorder %s22, 0
      %p133 = por %p131, %p132
      %s134 = ssub.s32 %s16, %s23
      %p135 = scmp.eq.s32.totalorder %s134, 0
      %s137 = sadd.s32 %s136, 1
      %s138 = scalar_select %p135, %s136, %s137
      %p141 = pneg %p135
      %p142 = scmp.eq.s32.totalorder %s16, 1
      %p143 = por %p141, %p142
      %p144 = scmp.ne.s32.totalorder %s136, %s139
      %p145 = scmp.eq.s32.totalorder %s16, 0
      %p146 = por %p144, %p145
      %p147 = scmp.ne.s32.totalorder %s136, %s139
      %p148 = scmp.eq.s32.totalorder %s21, 1
      %p149 = por %p147, %p148
      %p150 = scmp.ne.s32.totalorder %s139, %s140
      %p151 = scmp.eq.s32.totalorder %s21, 0
      %p152 = por %p150, %p151
      %p153 = scmp.ne.s32.totalorder %s139, %s140
      %p154 = scmp.eq.s32.totalorder %s22, 1
      %p155 = por %p153, %p154
      %p157 = scmp.ne.s32.totalorder %s140, %s156
      %p158 = scmp.eq.s32.totalorder %s22, 0
      %p159 = por %p157, %p158
      %s160 = ssub.s32 %s16, %s23
      %p161 = scmp.eq.s32.totalorder %s160, 0
      %s163 = sadd.s32 %s162, 1
      %s164 = scalar_select %p161, %s162, %s163
      %p167 = pneg %p161
      %p168 = scmp.eq.s32.totalorder %s16, 1
      %p169 = por %p167, %p168
      %p170 = scmp.ne.s32.totalorder %s162, %s165
      %p171 = scmp.eq.s32.totalorder %s16, 0
      %p172 = por %p170, %p171
      %p173 = scmp.ne.s32.totalorder %s162, %s165
      %p174 = scmp.eq.s32.totalorder %s21, 1
      %p175 = por %p173, %p174
      %p176 = scmp.ne.s32.totalorder %s165, %s166
      %p177 = scmp.eq.s32.totalorder %s21, 0
      %p178 = por %p176, %p177
      %p179 = scmp.ne.s32.totalorder %s165, %s166
      %p180 = scmp.eq.s32.totalorder %s22, 1
      %p181 = por %p179, %p180
      %p183 = scmp.ne.s32.totalorder %s166, %s182
      %p184 = scmp.eq.s32.totalorder %s22, 0
      %p185 = por %p183, %p184
      %p186 = scmp.le.s32.totalorder 1, %s16
      %p187 = scmp.lt.s32.totalorder %s16, 3
      %p188 = pnand %p186, %p187
      %p189 = pneg %p188
      // Predicated region
      $region9: #{tpu_custom_call.1} parent=5 // pred_check
        _
      $region10: #{tpu_custom_call.1} parent=5 // pred_check_branch
        %191 = sbr.rel (%p188) target = $region12
      $region11: #{tpu_custom_call.1} parent=5 // pred_region
        %s192 = ssub.s32 %s16, 1
        // Predicated region
        $region13: #{tpu_custom_call.1} parent=11 // pred_check
          %p193 = pneg %p63
        $region14: #{tpu_custom_call.1} parent=11 // pred_check_branch
          %195 = sbr.rel (%p193) target = $region16
        $region15: #{tpu_custom_call.1} parent=11 // pred_region
          _
        $region16: #{tpu_custom_call.1} parent=11 // pred_fallthru
          _
        // Predicated region
        $region17: #{tpu_custom_call.1} parent=11 // pred_check
          %p196 = pneg %p84
        $region18: #{tpu_custom_call.1} parent=11 // pred_check_branch
          %198 = sbr.rel (%p196) target = $region20
        $region19: #{tpu_custom_call.1} parent=11 // pred_region
          _
        $region20: #{tpu_custom_call.1} parent=11 // pred_fallthru
          _
        // Predicated region
        $region21: #{tpu_custom_call.1} parent=11 // pred_check
          %p199 = pneg %p105
        $region22: #{tpu_custom_call.1} parent=11 // pred_check_branch
          %201 = sbr.rel (%p199) target = $region24
        $region23: #{tpu_custom_call.1} parent=11 // pred_region
          _
        $region24: #{tpu_custom_call.1} parent=11 // pred_fallthru
          _
        // Predicated region
        $region25: #{tpu_custom_call.1} parent=11 // pred_check
          %p202 = pneg %p126
        $region26: #{tpu_custom_call.1} parent=11 // pred_check_branch
          %204 = sbr.rel (%p202) target = $region28
        $region27: #{tpu_custom_call.1} parent=11 // pred_region
          _
        $region28: #{tpu_custom_call.1} parent=11 // pred_fallthru
          _
      $region12: #{tpu_custom_call.1} parent=5 // pred_fallthru
        _
      %p205 = scmp.lt.s32.totalorder %s16, 2
      // Predicated region
      $region29: #{tpu_custom_call.1} parent=5 // pred_check
        %p206 = pneg %p205
      $region30: #{tpu_custom_call.1} parent=5 // pred_check_branch
        %208 = sbr.rel (%p206) target = $region32
      $region31: #{tpu_custom_call.1} parent=5 // pred_region
        // Predicated region
        $region33: #{tpu_custom_call.1} parent=31 // pred_check
          %p209 = pneg %p36
        $region34: #{tpu_custom_call.1} parent=31 // pred_check_branch
          %211 = sbr.rel (%p209) target = $region36
        $region35: #{tpu_custom_call.1} parent=31 // pred_region
          %s212 = smul.u32 2, %s16
          %p213 = scmp.lt.s32.totalorder %s212, 3
          %s214 = scalar_select %p213, %s212, 3
          %s215 = smul.addr %s214, 4
          %s216 = smul.addr %s215, 8
          %s217 = scalar_lea.vmem %s0, %s216
          %s218 = smul.u32 2, %s16
        $region36: #{tpu_custom_call.1} parent=31 // pred_fallthru
          _
      $region32: #{tpu_custom_call.1} parent=5 // pred_fallthru
        _
      %p219 = scmp.le.s32.totalorder 1, %s16
      %p220 = scmp.lt.s32.totalorder %s16, 3
      %p221 = pnand %p219, %p220
      %p222 = pneg %p221
      // Predicated region
      $region37: #{tpu_custom_call.1} parent=5 // pred_check
        _
      $region38: #{tpu_custom_call.1} parent=5 // pred_check_branch
        %224 = sbr.rel (%p221) target = $region40
      $region39: #{tpu_custom_call.1} parent=5 // pred_region
        %s225 = ssub.s32 %s16, 1
        %s226 = smul.u32 2, %s21
        %p227 = scmp.lt.s32.totalorder %s226, 3
        %s228 = scalar_select %p227, %s226, 3
        %s229 = smul.addr %s228, 4
        %s230 = smul.addr %s229, 8
        %s231 = scalar_lea.vmem %s0, %s230
        %p232 = pneg %p42
        %p233 = pneg %p39
        %p234 = pneg %p63
        %p235 = pneg %p60
        %p236 = pneg %p84
        %p237 = pneg %p81
        %p238 = pneg %p105
        %p239 = pneg %p102
        %p240 = pneg %p126
        %p241 = pneg %p123
        %p242 = pneg %p152
        %p243 = pneg %p149
        %s244 = smul.u32 2, %s21
        %p245 = scmp.lt.s32.totalorder %s244, 3
        %s246 = scalar_select %p245, %s244, 3
        %s247 = smul.addr %s246, 4
        %s248 = smul.addr %s247, 8
        %s249 = scalar_lea.vmem %s5, %s248
        %p250 = pneg %p178
        %p251 = pneg %p175
        %s252 = sand.u32 %s165, 1
        %s253 = scalar_lea.sflag [#allocation3], %s252
        %s254 = sand.u32 %s165, 1
        %s255 = smul.addr %s254, 64
        %s256 = scalar_lea.vmem [#allocation2], %s255
        %s257 = smul.u32 2, %s21
        %p258 = scmp.lt.s32.totalorder %s257, 3
        %s259 = scalar_select %p258, %s257, 3
        %s260 = smul.addr %s259, 4
        %s261 = smul.addr %s260, 8
        %s262 = scalar_lea.vmem %s0, %s261
        %s263 = smul.u32 2, %s21
        %s264 = smul.u32 2, %s21
        %p265 = scmp.lt.s32.totalorder %s264, 3
        %s266 = scalar_select %p265, %s264, 3
        %s267 = smul.addr %s266, 4
        %s268 = smul.addr %s267, 8
        %s269 = scalar_lea.vmem %s5, %s268
        %s270 = smul.u32 2, %s21
        %s271 = smul.u32 2, %s21
        %v272 = vld [vmem:[%s262] sm:$0xff]
        %v273 = vld [vmem:[%s262 + $0x8] sm:$0xff]
        %v274 = vld [vmem:[%s262 + $0x10] sm:$0xff]
        %v275 = vld [vmem:[%s262 + $0x18] sm:$0xff]
        %v276 = vld [vmem:[%s262 + $0x20] sm:$0xff]
        %v277 = vld [vmem:[%s262 + $0x28] sm:$0xff]
        %v278 = vld [vmem:[%s262 + $0x30] sm:$0xff]
        %v279 = vld [vmem:[%s262 + $0x38] sm:$0xff]
        %v280 = vld [vmem:[%s1] sm:$0xff]
        %v281 = vld [vmem:[%s1 + $0x8] sm:$0xff]
        %v282 = vld [vmem:[%s1 + $0x10] sm:$0xff]
        %v283 = vld [vmem:[%s1 + $0x18] sm:$0xff]
        %v284 = vld [vmem:[%s2] sm:$0x3]
        %v286 = vlaneseq
        %v287 = vshrl.u32 %v286, 7
        %v288 = vsub.s32 0, %v287
        %v289 = vrot.slane %v284, %v288
        %v290 = vlaneseq
        %v291 = vshrl.u32 %v290, 7
        %v292 = vsub.s32 1, %v291
        %v293 = vrot.slane %v284, %v292
        %vm296 = vcmask 130048
        %v298 = vsel %vm296, %v272, 0
        %v301 = vsel %vm296, %v273, 0
        %v304 = vsel %vm296, %v274, 0
        %v307 = vsel %vm296, %v275, 0
        %v310 = vsel %vm296, %v276, 0
        %v313 = vsel %vm296, %v277, 0
        %v316 = vsel %vm296, %v278, 0
        %v319 = vsel %vm296, %v279, 0
        %321 = vmatprep.subr.mxu0 %v281
        %322 = vmatpush1.msra.mxu0 %v280
        %323 = vmatprep.subr.mxu0 %v283
        %324 = vmatpush1.msra.mxu0 %v282
        %325 = vmatprep.subr.mxu0 0.0
        %326 = vmatpush1.msra.mxu0 0.0
        %327 = vmatprep.subr.mxu0 0.0
        %328 = vmatpush1.msra.mxu0 0.0
        %329 = vmatprep.subr.mxu0 0.0
        %330 = vmatpush1.msra.mxu0 0.0
        %331 = vmatprep.subr.mxu0 0.0
        %332 = vmatpush1.msra.mxu0 0.0
        %333 = vmatprep.subr.mxu0 0.0
        %334 = vmatpush1.msra.mxu0 0.0
        %335 = vmatprep.subr.mxu0 0.0
        %336 = vmatpush1.msra.mxu0 0.0
        %337 = vmatprep.subr.mxu0 0.0
        %338 = vmatpush1.msra.mxu0 0.0
        %339 = vmatprep.subr.mxu0 0.0
        %340 = vmatpush1.msra.mxu0 0.0
        %341 = vmatprep.subr.mxu0 0.0
        %342 = vmatpush1.msra.mxu0 0.0
        %343 = vmatprep.subr.mxu0 0.0
        %344 = vmatpush1.msra.mxu0 0.0
        %345 = vmatprep.subr.mxu0 0.0
        %346 = vmatpush1.msra.mxu0 0.0
        %347 = vmatprep.subr.mxu0 0.0
        %348 = vmatpush1.msra.mxu0 0.0
        %349 = vmatprep.subr.mxu0 0.0
        %350 = vmatpush1.msra.mxu0 0.0
        %351 = vmatprep.subr.mxu0 0.0
        %352 = vmatpush1.msra.mxu0 0.0
        %353 = vmatprep.subr.mxu0 0.0
        %354 = vmatpush1.msra.mxu0 0.0
        %355 = vmatprep.subr.mxu0 0.0
        %356 = vmatpush1.msra.mxu0 0.0
        %357 = vmatprep.subr.mxu0 0.0
        %358 = vmatpush1.msra.mxu0 0.0
        %359 = vmatprep.subr.mxu0 0.0
        %360 = vmatpush1.msra.mxu0 0.0
        %361 = vmatprep.subr.mxu0 0.0
        %362 = vmatpush1.msra.mxu0 0.0
        %363 = vmatprep.subr.mxu0 0.0
        %364 = vmatpush1.msra.mxu0 0.0
        %365 = vmatprep.subr.mxu0 0.0
        %366 = vmatpush1.msra.mxu0 0.0
        %367 = vmatprep.subr.mxu0 0.0
        %368 = vmatpush1.msra.mxu0 0.0
        %369 = vmatprep.subr.mxu0 0.0
        %370 = vmatpush1.msra.mxu0 0.0
        %371 = vmatprep.subr.mxu0 0.0
        %372 = vmatpush1.msra.mxu0 0.0
        %373 = vmatprep.subr.mxu0 0.0
        %374 = vmatpush1.msra.mxu0 0.0
        %375 = vmatprep.subr.mxu0 0.0
        %376 = vmatpush1.msra.mxu0 0.0
        %377 = vmatprep.subr.mxu0 0.0
        %378 = vmatpush1.msra.mxu0 0.0
        %379 = vmatprep.subr.mxu0 0.0
        %380 = vmatpush1.msra.mxu0 0.0
        %381 = vmatprep.subr.mxu0 0.0
        %382 = vmatpush1.msra.mxu0 0.0
        %383 = vmatprep.subr.mxu0 0.0
        %384 = vmatpush1.msra.mxu0 0.0
        %385 = vmatprep.mubr.f32.mxu0 0.0
        %386 = vmatmul.mubr.f32.gmra.mrb[0].mxu0 %v298
        %v387 = vpop.f32.mrb[0].mxu0
        %v388 = vadd.f32 %v289, %v387
        %v389 = vpop.f32.mrb[0].mxu0
        %v390 = vadd.f32 %v293, %v389
        %391 = vmatprep.mubr.f32.mxu0 0.0
        %392 = vmatmul.mubr.f32.gmra.mrb[0].mxu0 %v301
        %v393 = vpop.f32.mrb[0].mxu0
        %v394 = vadd.f32 %v289, %v393
        %v395 = vpop.f32.mrb[0].mxu0
        %v396 = vadd.f32 %v293, %v395
        %397 = vmatprep.mubr.f32.mxu0 0.0
        %398 = vmatmul.mubr.f32.gmra.mrb[0].mxu0 %v304
        %v399 = vpop.f32.mrb[0].mxu0
        %v400 = vadd.f32 %v289, %v399
        %v401 = vpop.f32.mrb[0].mxu0
        %v402 = vadd.f32 %v293, %v401
        %403 = vmatprep.mubr.f32.mxu0 0.0
        %404 = vmatmul.mubr.f32.gmra.mrb[0].mxu0 %v307
        %v405 = vpop.f32.mrb[0].mxu0
        %v406 = vadd.f32 %v289, %v405
        %v407 = vpop.f32.mrb[0].mxu0
        %v408 = vadd.f32 %v293, %v407
        %409 = vmatprep.mubr.f32.mxu0 0.0
        %410 = vmatmul.mubr.f32.gmra.mrb[0].mxu0 %v310
        %v411 = vpop.f32.mrb[0].mxu0
        %v412 = vadd.f32 %v289, %v411
        %v413 = vpop.f32.mrb[0].mxu0
        %v414 = vadd.f32 %v293, %v413
        %415 = vmatprep.mubr.f32.mxu0 0.0
        %416 = vmatmul.mubr.f32.gmra.mrb[0].mxu0 %v313
        %v417 = vpop.f32.mrb[0].mxu0
        %v418 = vadd.f32 %v289, %v417
        %v419 = vpop.f32.mrb[0].mxu0
        %v420 = vadd.f32 %v293, %v419
        %421 = vmatprep.mubr.f32.mxu0 0.0
        %422 = vmatmul.mubr.f32.gmra.mrb[0].mxu0 %v316
        %v423 = vpop.f32.mrb[0].mxu0
        %v424 = vadd.f32 %v289, %v423
        %v425 = vpop.f32.mrb[0].mxu0
        %v426 = vadd.f32 %v293, %v425
        %427 = vmatprep.mubr.f32.mxu0 0.0
        %428 = vmatmul.mubr.f32.gmra.mrb[0].mxu0 %v319
        %v429 = vpop.f32.mrb[0].mxu0
        %v430 = vadd.f32 %v289, %v429
        %v431 = vpop.f32.mrb[0].mxu0
        %v432 = vadd.f32 %v293, %v431
        %433 = vdwg.mxu0
        %v434 = vmax.f32 %v388, 0.0
        %v435 = vmax.f32 %v390, 0.0
        %v436 = vmax.f32 %v394, 0.0
        %v437 = vmax.f32 %v396, 0.0
        %v438 = vmax.f32 %v400, 0.0
        %v439 = vmax.f32 %v402, 0.0
        %v440 = vmax.f32 %v406, 0.0
        %v441 = vmax.f32 %v408, 0.0
        %v442 = vmax.f32 %v412, 0.0
        %v443 = vmax.f32 %v414, 0.0
        %v444 = vmax.f32 %v418, 0.0
        %v445 = vmax.f32 %v420, 0.0
        %v446 = vmax.f32 %v424, 0.0
        %v447 = vmax.f32 %v426, 0.0
        %v448 = vmax.f32 %v430, 0.0
        %v449 = vmax.f32 %v432, 0.0
        %v450 = vld [vmem:[%s3] sm:$0xff]
        %v451 = vld [vmem:[%s3 + $0x8] sm:$0xff]
        %v452 = vld [vmem:[%s3 + $0x10] sm:$0xff]
        %v453 = vld [vmem:[%s3 + $0x18] sm:$0xff]
        %v454 = vld [vmem:[%s3 + $0x20] sm:$0xff]
        %v455 = vld [vmem:[%s3 + $0x28] sm:$0xff]
        %v456 = vld [vmem:[%s3 + $0x30] sm:$0xff]
        %v457 = vld [vmem:[%s3 + $0x38] sm:$0xff]
        %v458 = vld [vmem:[%s3 + $0x40] sm:$0xff]
        %v459 = vld [vmem:[%s3 + $0x48] sm:$0xff]
        %v460 = vld [vmem:[%s3 + $0x50] sm:$0xff]
        %v461 = vld [vmem:[%s3 + $0x58] sm:$0xff]
        %v462 = vld [vmem:[%s3 + $0x60] sm:$0xff]
        %v463 = vld [vmem:[%s3 + $0x68] sm:$0xff]
        %v464 = vld [vmem:[%s3 + $0x70] sm:$0xff]
        %v465 = vld [vmem:[%s3 + $0x78] sm:$0xff]
        %v466 = vld [vmem:[%s3 + $0x80] sm:$0xff]
        %v467 = vld [vmem:[%s3 + $0x88] sm:$0xff]
        %v468 = vld [vmem:[%s3 + $0x90] sm:$0xff]
        %v469 = vld [vmem:[%s3 + $0x98] sm:$0xff]
        %v470 = vld [vmem:[%s3 + $0xa0] sm:$0xff]
        %v471 = vld [vmem:[%s3 + $0xa8] sm:$0xff]
        %v472 = vld [vmem:[%s3 + $0xb0] sm:$0xff]
        %v473 = vld [vmem:[%s3 + $0xb8] sm:$0xff]
        %v474 = vld [vmem:[%s4] sm:$0x1]
        %v476 = vlaneseq
        %v477 = vshrl.u32 %v476, 7
        %v478 = vsub.s32 0, %v477
        %v479 = vrot.slane %v474, %v478
        %vm481 = vcmask 523264
        %v483 = vsel %vm481, %v435, 0
        %v486 = vsel %vm481, %v437, 0
        %v489 = vsel %vm481, %v439, 0
        %v492 = vsel %vm481, %v441, 0
        %v495 = vsel %vm481, %v443, 0
        %v498 = vsel %vm481, %v445, 0
        %v501 = vsel %vm481, %v447, 0
        %v504 = vsel %vm481, %v449, 0
        %506 = vmatprep.subr.mxu0 0.0
        %507 = vmatpush1.msra.mxu0 %v450
        %508 = vmatprep.subr.mxu0 0.0
        %509 = vmatpush1.msra.mxu0 %v451
        %510 = vmatprep.subr.mxu0 0.0
        %511 = vmatpush1.msra.mxu0 %v452
        %512 = vmatprep.subr.mxu0 0.0
        %513 = vmatpush1.msra.mxu0 %v453
        %514 = vmatprep.subr.mxu0 0.0
        %515 = vmatpush1.msra.mxu0 %v454
        %516 = vmatprep.subr.mxu0 0.0
        %517 = vmatpush1.msra.mxu0 %v455
        %518 = vmatprep.subr.mxu0 0.0
        %519 = vmatpush1.msra.mxu0 %v456
        %520 = vmatprep.subr.mxu0 0.0
        %521 = vmatpush1.msra.mxu0 %v457
        %522 = vmatprep.subr.mxu0 0.0
        %523 = vmatpush1.msra.mxu0 %v458
        %524 = vmatprep.subr.mxu0 0.0
        %525 = vmatpush1.msra.mxu0 %v459
        %526 = vmatprep.subr.mxu0 0.0
        %527 = vmatpush1.msra.mxu0 %v460
        %528 = vmatprep.subr.mxu0 0.0
        %529 = vmatpush1.msra.mxu0 %v461
        %530 = vmatprep.subr.mxu0 0.0
        %531 = vmatpush1.msra.mxu0 %v462
        %532 = vmatprep.subr.mxu0 0.0
        %533 = vmatpush1.msra.mxu0 %v463
        %534 = vmatprep.subr.mxu0 0.0
        %535 = vmatpush1.msra.mxu0 %v464
        %536 = vmatprep.subr.mxu0 0.0
        %537 = vmatpush1.msra.mxu0 %v465
        %538 = vmatprep.subr.mxu0 0.0
        %539 = vmatpush1.msra.mxu0 %v466
        %540 = vmatprep.subr.mxu0 0.0
        %541 = vmatpush1.msra.mxu0 %v467
        %542 = vmatprep.subr.mxu0 0.0
        %543 = vmatpush1.msra.mxu0 %v468
        %544 = vmatprep.subr.mxu0 0.0
        %545 = vmatpush1.msra.mxu0 %v469
        %546 = vmatprep.subr.mxu0 0.0
        %547 = vmatpush1.msra.mxu0 %v470
        %548 = vmatprep.subr.mxu0 0.0
        %549 = vmatpush1.msra.mxu0 %v471
        %550 = vmatprep.subr.mxu0 0.0
        %551 = vmatpush1.msra.mxu0 %v472
        %552 = vmatprep.subr.mxu0 0.0
        %553 = vmatpush1.msra.mxu0 %v473
        %554 = vmatprep.subr.mxu0 0.0
        %555 = vmatpush1.msra.mxu0 0.0
        %556 = vmatprep.subr.mxu0 0.0
        %557 = vmatpush1.msra.mxu0 0.0
        %558 = vmatprep.subr.mxu0 0.0
        %559 = vmatpush1.msra.mxu0 0.0
        %560 = vmatprep.subr.mxu0 0.0
        %561 = vmatpush1.msra.mxu0 0.0
        %562 = vmatprep.subr.mxu0 0.0
        %563 = vmatpush1.msra.mxu0 0.0
        %564 = vmatprep.subr.mxu0 0.0
        %565 = vmatpush1.msra.mxu0 0.0
        %566 = vmatprep.subr.mxu0 0.0
        %567 = vmatpush1.msra.mxu0 0.0
        %568 = vmatprep.subr.mxu0 0.0
        %569 = vmatpush1.msra.mxu0 0.0
        %570 = vmatprep.mubr.f32.mxu0 %v483
        %571 = vmatmul.mubr.f32.gmra.mrb[0].mxu0 %v434
        %v572 = vpop.f32.mrb[0].mxu0
        %v573 = vadd.f32 %v479, %v572
        %v574 = vpop.f32.mrb[0].mxu0
        %575 = vmatprep.mubr.f32.mxu0 %v486
        %576 = vmatmul.mubr.f32.gmra.mrb[0].mxu0 %v436
        %v577 = vpop.f32.mrb[0].mxu0
        %v578 = vadd.f32 %v479, %v577
        %v579 = vpop.f32.mrb[0].mxu0
        %580 = vmatprep.mubr.f32.mxu0 %v489
        %581 = vmatmul.mubr.f32.gmra.mrb[0].mxu0 %v438
        %v582 = vpop.f32.mrb[0].mxu0
        %v583 = vadd.f32 %v479, %v582
        %v584 = vpop.f32.mrb[0].mxu0
        %585 = vmatprep.mubr.f32.mxu0 %v492
        %586 = vmatmul.mubr.f32.gmra.mrb[0].mxu0 %v440
        %v587 = vpop.f32.mrb[0].mxu0
        %v588 = vadd.f32 %v479, %v587
        %v589 = vpop.f32.mrb[0].mxu0
        %590 = vmatprep.mubr.f32.mxu0 %v495
        %591 = vmatmul.mubr.f32.gmra.mrb[0].mxu0 %v442
        %v592 = vpop.f32.mrb[0].mxu0
        %v593 = vadd.f32 %v479, %v592
        %v594 = vpop.f32.mrb[0].mxu0
        %595 = vmatprep.mubr.f32.mxu0 %v498
        %596 = vmatmul.mubr.f32.gmra.mrb[0].mxu0 %v444
        %v597 = vpop.f32.mrb[0].mxu0
        %v598 = vadd.f32 %v479, %v597
        %v599 = vpop.f32.mrb[0].mxu0
        %600 = vmatprep.mubr.f32.mxu0 %v501
        %601 = vmatmul.mubr.f32.gmra.mrb[0].mxu0 %v446
        %v602 = vpop.f32.mrb[0].mxu0
        %v603 = vadd.f32 %v479, %v602
        %v604 = vpop.f32.mrb[0].mxu0
        %605 = vmatprep.mubr.f32.mxu0 %v504
        %606 = vmatmul.mubr.f32.gmra.mrb[0].mxu0 %v448
        %v607 = vpop.f32.mrb[0].mxu0
        %v608 = vadd.f32 %v479, %v607
        %v609 = vpop.f32.mrb[0].mxu0
        %610 = vdwg.mxu0
        %v611 = vadd.f32 %v272, %v573
        %v612 = vadd.f32 %v273, %v578
        %v613 = vadd.f32 %v274, %v583
        %v614 = vadd.f32 %v275, %v588
        %v615 = vadd.f32 %v276, %v593
        %v616 = vadd.f32 %v277, %v598
        %v617 = vadd.f32 %v278, %v603
        %v618 = vadd.f32 %v279, %v608
        %627 = vrot.lane.b32.xlu0 %v573, 112
        %v628 = vpop.permute.xlu0 %627
        %629 = vrot.lane.b32.xlu0 %v578, 112
        %v630 = vpop.permute.xlu0 %629
        %631 = vrot.lane.b32.xlu0 %v583, 112
        %v632 = vpop.permute.xlu0 %631
        %633 = vrot.lane.b32.xlu0 %v588, 112
        %v634 = vpop.permute.xlu0 %633
        %635 = vrot.lane.b32.xlu0 %v593, 112
        %v636 = vpop.permute.xlu0 %635
        %637 = vrot.lane.b32.xlu0 %v598, 112
        %v638 = vpop.permute.xlu0 %637
        %639 = vrot.lane.b32.xlu0 %v603, 112
        %v640 = vpop.permute.xlu0 %639
        %641 = vrot.lane.b32.xlu0 %v608, 112
        %v642 = vpop.permute.xlu0 %641
        %v651 = vadd.f32 %v272, %v628
        %v652 = vadd.f32 %v273, %v630
        %v653 = vadd.f32 %v274, %v632
        %v654 = vadd.f32 %v275, %v634
        %v655 = vadd.f32 %v276, %v636
        %v656 = vadd.f32 %v277, %v638
        %v657 = vadd.f32 %v278, %v640
        %v658 = vadd.f32 %v279, %v642
        %659 = vrot.lane.b32.xlu0 %v573, 96
        %v660 = vpop.permute.xlu0 %659
        %661 = vrot.lane.b32.xlu0 %v578, 96
        %v662 = vpop.permute.xlu0 %661
        %663 = vrot.lane.b32.xlu0 %v583, 96
        %v664 = vpop.permute.xlu0 %663
        %665 = vrot.lane.b32.xlu0 %v588, 96
        %v666 = vpop.permute.xlu0 %665
        %667 = vrot.lane.b32.xlu0 %v593, 96
        %v668 = vpop.permute.xlu0 %667
        %669 = vrot.lane.b32.xlu0 %v598, 96
        %v670 = vpop.permute.xlu0 %669
        %671 = vrot.lane.b32.xlu0 %v603, 96
        %v672 = vpop.permute.xlu0 %671
        %673 = vrot.lane.b32.xlu0 %v608, 96
        %v674 = vpop.permute.xlu0 %673
        %v683 = vadd.f32 %v272, %v660
        %v684 = vadd.f32 %v273, %v662
        %v685 = vadd.f32 %v274, %v664
        %v686 = vadd.f32 %v275, %v666
        %v687 = vadd.f32 %v276, %v668
        %v688 = vadd.f32 %v277, %v670
        %v689 = vadd.f32 %v278, %v672
        %v690 = vadd.f32 %v279, %v674
        %v691 = vmul.f32 %v611, 0.17677669
        %v692 = vmul.f32 %v612, 0.17677669
        %v693 = vmul.f32 %v613, 0.17677669
        %v694 = vmul.f32 %v614, 0.17677669
        %v695 = vmul.f32 %v615, 0.17677669
        %v696 = vmul.f32 %v616, 0.17677669
        %v697 = vmul.f32 %v617, 0.17677669
        %v698 = vmul.f32 %v618, 0.17677669
        %v700 = vsel %vm296, %v691, 0
        %v703 = vsel %vm296, %v692, 0
        %v706 = vsel %vm296, %v693, 0
        %v709 = vsel %vm296, %v694, 0
        %v712 = vsel %vm296, %v651, 0
        %v715 = vsel %vm296, %v652, 0
        %v718 = vsel %vm296, %v653, 0
        %v721 = vsel %vm296, %v654, 0
        %723 = vmatprep.subr.mxu0 0.0
        %724 = vmatpush1.xpose.msra.mxu0 %v712
        %725 = vmatprep.subr.mxu0 0.0
        %726 = vmatpush1.xpose.msra.mxu0 %v715
        %727 = vmatprep.subr.mxu0 0.0
        %728 = vmatpush1.xpose.msra.mxu0 %v718
        %729 = vmatprep.subr.mxu0 0.0
        %730 = vmatpush1.xpose.msra.mxu0 %v721
        %731 = vmatprep.subr.mxu0 0.0
        %732 = vmatpush1.xpose.msra.mxu0 0.0
        %733 = vmatprep.subr.mxu0 0.0
        %734 = vmatpush1.xpose.msra.mxu0 0.0
        %735 = vmatprep.subr.mxu0 0.0
        %736 = vmatpush1.xpose.msra.mxu0 0.0
        %737 = vmatprep.subr.mxu0 0.0
        %738 = vmatpush1.xpose.msra.mxu0 0.0
        %739 = vmatprep.subr.mxu0 0.0
        %740 = vmatpush1.xpose.msra.mxu0 0.0
        %741 = vmatprep.subr.mxu0 0.0
        %742 = vmatpush1.xpose.msra.mxu0 0.0
        %743 = vmatprep.subr.mxu0 0.0
        %744 = vmatpush1.xpose.msra.mxu0 0.0
        %745 = vmatprep.subr.mxu0 0.0
        %746 = vmatpush1.xpose.msra.mxu0 0.0
        %747 = vmatprep.subr.mxu0 0.0
        %748 = vmatpush1.xpose.msra.mxu0 0.0
        %749 = vmatprep.subr.mxu0 0.0
        %750 = vmatpush1.xpose.msra.mxu0 0.0
        %751 = vmatprep.subr.mxu0 0.0
        %752 = vmatpush1.xpose.msra.mxu0 0.0
        %753 = vmatprep.subr.mxu0 0.0
        %754 = vmatpush1.xpose.msra.mxu0 0.0
        %755 = vmatprep.subr.mxu0 0.0
        %756 = vmatpush1.xpose.msra.mxu0 0.0
        %757 = vmatprep.subr.mxu0 0.0
        %758 = vmatpush1.xpose.msra.mxu0 0.0
        %759 = vmatprep.subr.mxu0 0.0
        %760 = vmatpush1.xpose.msra.mxu0 0.0
        %761 = vmatprep.subr.mxu0 0.0
        %762 = vmatpush1.xpose.msra.mxu0 0.0
        %763 = vmatprep.subr.mxu0 0.0
        %764 = vmatpush1.xpose.msra.mxu0 0.0
        %765 = vmatprep.subr.mxu0 0.0
        %766 = vmatpush1.xpose.msra.mxu0 0.0
        %767 = vmatprep.subr.mxu0 0.0
        %768 = vmatpush1.xpose.msra.mxu0 0.0
        %769 = vmatprep.subr.mxu0 0.0
        %770 = vmatpush1.xpose.msra.mxu0 0.0
        %771 = vmatprep.subr.mxu0 0.0
        %772 = vmatpush1.xpose.msra.mxu0 0.0
        %773 = vmatprep.subr.mxu0 0.0
        %774 = vmatpush1.xpose.msra.mxu0 0.0
        %775 = vmatprep.subr.mxu0 0.0
        %776 = vmatpush1.xpose.msra.mxu0 0.0
        %777 = vmatprep.subr.mxu0 0.0
        %778 = vmatpush1.xpose.msra.mxu0 0.0
        %779 = vmatprep.subr.mxu0 0.0
        %780 = vmatpush1.xpose.msra.mxu0 0.0
        %781 = vmatprep.subr.mxu0 0.0
        %782 = vmatpush1.xpose.msra.mxu0 0.0
        %783 = vmatprep.subr.mxu0 0.0
        %784 = vmatpush1.xpose.msra.mxu0 0.0
        %785 = vmatprep.subr.mxu0 0.0
        %786 = vmatpush1.xpose.msra.mxu0 0.0
        %787 = vmatprep.mubr.f32.mxu0 0.0
        %788 = vmatmul.mubr.f32.gmra.mrb[0].mxu0 %v700
        %v789 = vpop.f32.mrb[0].mxu0
        %v790 = vadd.f32 0.0, %v789
        %v791 = vpop.f32.mrb[0].mxu0
        %792 = vmatprep.mubr.f32.mxu0 0.0
        %793 = vmatmul.mubr.f32.gmra.mrb[0].mxu0 %v703
        %v794 = vpop.f32.mrb[0].mxu0
        %v795 = vadd.f32 0.0, %v794
        %v796 = vpop.f32.mrb[0].mxu0
        %797 = vmatprep.mubr.f32.mxu0 0.0
        %798 = vmatmul.mubr.f32.gmra.mrb[0].mxu0 %v706
        %v799 = vpop.f32.mrb[0].mxu0
        %v800 = vadd.f32 0.0, %v799
        %v801 = vpop.f32.mrb[0].mxu0
        %802 = vmatprep.mubr.f32.mxu0 0.0
        %803 = vmatmul.mubr.f32.gmra.mrb[0].mxu0 %v709
        %v804 = vpop.f32.mrb[0].mxu0
        %v805 = vadd.f32 0.0, %v804
        %v806 = vpop.f32.mrb[0].mxu0
        %807 = vdwg.mxu0
        %v809 = vsel %vm296, %v695, 0
        %v812 = vsel %vm296, %v696, 0
        %v815 = vsel %vm296, %v697, 0
        %v818 = vsel %vm296, %v698, 0
        %v821 = vsel %vm296, %v655, 0
        %v824 = vsel %vm296, %v656, 0
        %v827 = vsel %vm296, %v657, 0
        %v830 = vsel %vm296, %v658, 0
        %832 = vmatprep.subr.mxu0 0.0
        %833 = vmatpush1.xpose.msra.mxu0 %v821
        %834 = vmatprep.subr.mxu0 0.0
        %835 = vmatpush1.xpose.msra.mxu0 %v824
        %836 = vmatprep.subr.mxu0 0.0
        %837 = vmatpush1.xpose.msra.mxu0 %v827
        %838 = vmatprep.subr.mxu0 0.0
        %839 = vmatpush1.xpose.msra.mxu0 %v830
        %840 = vmatprep.subr.mxu0 0.0
        %841 = vmatpush1.xpose.msra.mxu0 0.0
        %842 = vmatprep.subr.mxu0 0.0
        %843 = vmatpush1.xpose.msra.mxu0 0.0
        %844 = vmatprep.subr.mxu0 0.0
        %845 = vmatpush1.xpose.msra.mxu0 0.0
        %846 = vmatprep.subr.mxu0 0.0
        %847 = vmatpush1.xpose.msra.mxu0 0.0
        %848 = vmatprep.subr.mxu0 0.0
        %849 = vmatpush1.xpose.msra.mxu0 0.0
        %850 = vmatprep.subr.mxu0 0.0
        %851 = vmatpush1.xpose.msra.mxu0 0.0
        %852 = vmatprep.subr.mxu0 0.0
        %853 = vmatpush1.xpose.msra.mxu0 0.0
        %854 = vmatprep.subr.mxu0 0.0
        %855 = vmatpush1.xpose.msra.mxu0 0.0
        %856 = vmatprep.subr.mxu0 0.0
        %857 = vmatpush1.xpose.msra.mxu0 0.0
        %858 = vmatprep.subr.mxu0 0.0
        %859 = vmatpush1.xpose.msra.mxu0 0.0
        %860 = vmatprep.subr.mxu0 0.0
        %861 = vmatpush1.xpose.msra.mxu0 0.0
        %862 = vmatprep.subr.mxu0 0.0
        %863 = vmatpush1.xpose.msra.mxu0 0.0
        %864 = vmatprep.subr.mxu0 0.0
        %865 = vmatpush1.xpose.msra.mxu0 0.0
        %866 = vmatprep.subr.mxu0 0.0
        %867 = vmatpush1.xpose.msra.mxu0 0.0
        %868 = vmatprep.subr.mxu0 0.0
        %869 = vmatpush1.xpose.msra.mxu0 0.0
        %870 = vmatprep.subr.mxu0 0.0
        %871 = vmatpush1.xpose.msra.mxu0 0.0
        %872 = vmatprep.subr.mxu0 0.0
        %873 = vmatpush1.xpose.msra.mxu0 0.0
        %874 = vmatprep.subr.mxu0 0.0
        %875 = vmatpush1.xpose.msra.mxu0 0.0
        %876 = vmatprep.subr.mxu0 0.0
        %877 = vmatpush1.xpose.msra.mxu0 0.0
        %878 = vmatprep.subr.mxu0 0.0
        %879 = vmatpush1.xpose.msra.mxu0 0.0
        %880 = vmatprep.subr.mxu0 0.0
        %881 = vmatpush1.xpose.msra.mxu0 0.0
        %882 = vmatprep.subr.mxu0 0.0
        %883 = vmatpush1.xpose.msra.mxu0 0.0
        %884 = vmatprep.subr.mxu0 0.0
        %885 = vmatpush1.xpose.msra.mxu0 0.0
        %886 = vmatprep.subr.mxu0 0.0
        %887 = vmatpush1.xpose.msra.mxu0 0.0
        %888 = vmatprep.subr.mxu0 0.0
        %889 = vmatpush1.xpose.msra.mxu0 0.0
        %890 = vmatprep.subr.mxu0 0.0
        %891 = vmatpush1.xpose.msra.mxu0 0.0
        %892 = vmatprep.subr.mxu0 0.0
        %893 = vmatpush1.xpose.msra.mxu0 0.0
        %894 = vmatprep.subr.mxu0 0.0
        %895 = vmatpush1.xpose.msra.mxu0 0.0
        %896 = vmatprep.mubr.f32.mxu0 0.0
        %897 = vmatmul.mubr.f32.gmra.mrb[0].mxu0 %v809
        %v898 = vpop.f32.mrb[0].mxu0
        %v899 = vadd.f32 0.0, %v898
        %v900 = vpop.f32.mrb[0].mxu0
        %901 = vmatprep.mubr.f32.mxu0 0.0
        %902 = vmatmul.mubr.f32.gmra.mrb[0].mxu0 %v812
        %v903 = vpop.f32.mrb[0].mxu0
        %v904 = vadd.f32 0.0, %v903
        %v905 = vpop.f32.mrb[0].mxu0
        %906 = vmatprep.mubr.f32.mxu0 0.0
        %907 = vmatmul.mubr.f32.gmra.mrb[0].mxu0 %v815
        %v908 = vpop.f32.mrb[0].mxu0
        %v909 = vadd.f32 0.0, %v908
        %v910 = vpop.f32.mrb[0].mxu0
        %911 = vmatprep.mubr.f32.mxu0 0.0
        %912 = vmatmul.mubr.f32.gmra.mrb[0].mxu0 %v818
        %v913 = vpop.f32.mrb[0].mxu0
        %v914 = vadd.f32 0.0, %v913
        %v915 = vpop.f32.mrb[0].mxu0
        %916 = vdwg.mxu0
        %vm917 = vcmask 261120
        %v918 = vsel %vm917, %v790, -inf
        %919 = vmax.xlane.f32.xlu0 %v918
        %v920 = vpop.xlane.xlu0 %919
        %v921 = vsel %vm917, %v795, -inf
        %922 = vmax.xlane.f32.xlu0 %v921
        %v923 = vpop.xlane.xlu0 %922
        %v924 = vsel %vm917, %v800, -inf
        %925 = vmax.xlane.f32.xlu0 %v924
        %v926 = vpop.xlane.xlu0 %925
        %v927 = vsel %vm917, %v805, -inf
        %928 = vmax.xlane.f32.xlu0 %v927
        %v929 = vpop.xlane.xlu0 %928
        %v930 = vsel %vm917, %v899, -inf
        %931 = vmax.xlane.f32.xlu0 %v930
        %v932 = vpop.xlane.xlu0 %931
        %v933 = vsel %vm917, %v904, -inf
        %934 = vmax.xlane.f32.xlu0 %v933
        %v935 = vpop.xlane.xlu0 %934
        %v936 = vsel %vm917, %v909, -inf
        %937 = vmax.xlane.f32.xlu0 %v936
        %v938 = vpop.xlane.xlu0 %937
        %v939 = vsel %vm917, %v914, -inf
        %940 = vmax.xlane.f32.xlu0 %v939
        %v941 = vpop.xlane.xlu0 %940
        %v942 = vsub.f32 %v790, %v920
        %v943 = vsub.f32 %v795, %v923
        %v944 = vsub.f32 %v800, %v926
        %v945 = vsub.f32 %v805, %v929
        %v946 = vsub.f32 %v899, %v932
        %v947 = vsub.f32 %v904, %v935
        %v948 = vsub.f32 %v909, %v938
        %v949 = vsub.f32 %v914, %v941
        %v950 = vmul.f32 %v942, 1.442695
        %v951 = vpow.pop %v950
        %v952 = vmul.f32 %v943, 1.442695
        %v953 = vpow.pop %v952
        %v954 = vmul.f32 %v944, 1.442695
        %v955 = vpow.pop %v954
        %v956 = vmul.f32 %v945, 1.442695
        %v957 = vpow.pop %v956
        %v958 = vmul.f32 %v946, 1.442695
        %v959 = vpow.pop %v958
        %v960 = vmul.f32 %v947, 1.442695
        %v961 = vpow.pop %v960
        %v962 = vmul.f32 %v948, 1.442695
        %v963 = vpow.pop %v962
        %v964 = vmul.f32 %v949, 1.442695
        %v965 = vpow.pop %v964
        %v966 = vsel %vm917, %v951, 0.0
        %967 = vadd.xlane.f32.xlu0 %v966
        %v968 = vpop.xlane.xlu0 %967
        %v969 = vsel %vm917, %v953, 0.0
        %970 = vadd.xlane.f32.xlu0 %v969
        %v971 = vpop.xlane.xlu0 %970
        %v972 = vsel %vm917, %v955, 0.0
        %973 = vadd.xlane.f32.xlu0 %v972
        %v974 = vpop.xlane.xlu0 %973
        %v975 = vsel %vm917, %v957, 0.0
        %976 = vadd.xlane.f32.xlu0 %v975
        %v977 = vpop.xlane.xlu0 %976
        %v978 = vsel %vm917, %v959, 0.0
        %979 = vadd.xlane.f32.xlu0 %v978
        %v980 = vpop.xlane.xlu0 %979
        %v981 = vsel %vm917, %v961, 0.0
        %982 = vadd.xlane.f32.xlu0 %v981
        %v983 = vpop.xlane.xlu0 %982
        %v984 = vsel %vm917, %v963, 0.0
        %985 = vadd.xlane.f32.xlu0 %v984
        %v986 = vpop.xlane.xlu0 %985
        %v987 = vsel %vm917, %v965, 0.0
        %988 = vadd.xlane.f32.xlu0 %v987
        %v989 = vpop.xlane.xlu0 %988
        %v990 = vrcp.pop %v968
        %v991 = vrcp.pop %v971
        %v992 = vrcp.pop %v974
        %v993 = vrcp.pop %v977
        %v994 = vrcp.pop %v980
        %v995 = vrcp.pop %v983
        %v996 = vrcp.pop %v986
        %v997 = vrcp.pop %v989
        %v998 = vmul.f32 %v951, %v990
        %v999 = vmul.f32 %v953, %v991
        %v1000 = vmul.f32 %v955, %v992
        %v1001 = vmul.f32 %v957, %v993
        %v1002 = vmul.f32 %v959, %v994
        %v1003 = vmul.f32 %v961, %v995
        %v1004 = vmul.f32 %v963, %v996
        %v1005 = vmul.f32 %v965, %v997
        %v1007 = vsel %vm917, %v998, 0
        %v1010 = vsel %vm917, %v999, 0
        %v1013 = vsel %vm917, %v1000, 0
        %v1016 = vsel %vm917, %v1001, 0
        %1018 = vmatprep.subr.mxu0 0.0
        %1019 = vmatpush1.msra.mxu0 %v683
        %1020 = vmatprep.subr.mxu0 0.0
        %1021 = vmatpush1.msra.mxu0 %v684
        %1022 = vmatprep.subr.mxu0 0.0
        %1023 = vmatpush1.msra.mxu0 %v685
        %1024 = vmatprep.subr.mxu0 0.0
        %1025 = vmatpush1.msra.mxu0 %v686
        %1026 = vmatprep.subr.mxu0 0.0
        %1027 = vmatpush1.msra.mxu0 0.0
        %1028 = vmatprep.subr.mxu0 0.0
        %1029 = vmatpush1.msra.mxu0 0.0
        %1030 = vmatprep.subr.mxu0 0.0
        %1031 = vmatpush1.msra.mxu0 0.0
        %1032 = vmatprep.subr.mxu0 0.0
        %1033 = vmatpush1.msra.mxu0 0.0
        %1034 = vmatprep.subr.mxu0 0.0
        %1035 = vmatpush1.msra.mxu0 0.0
        %1036 = vmatprep.subr.mxu0 0.0
        %1037 = vmatpush1.msra.mxu0 0.0
        %1038 = vmatprep.subr.mxu0 0.0
        %1039 = vmatpush1.msra.mxu0 0.0
        %1040 = vmatprep.subr.mxu0 0.0
        %1041 = vmatpush1.msra.mxu0 0.0
        %1042 = vmatprep.subr.mxu0 0.0
        %1043 = vmatpush1.msra.mxu0 0.0
        %1044 = vmatprep.subr.mxu0 0.0
        %1045 = vmatpush1.msra.mxu0 0.0
        %1046 = vmatprep.subr.mxu0 0.0
        %1047 = vmatpush1.msra.mxu0 0.0
        %1048 = vmatprep.subr.mxu0 0.0
        %1049 = vmatpush1.msra.mxu0 0.0
        %1050 = vmatprep.subr.mxu0 0.0
        %1051 = vmatpush1.msra.mxu0 0.0
        %1052 = vmatprep.subr.mxu0 0.0
        %1053 = vmatpush1.msra.mxu0 0.0
        %1054 = vmatprep.subr.mxu0 0.0
        %1055 = vmatpush1.msra.mxu0 0.0
        %1056 = vmatprep.subr.mxu0 0.0
        %1057 = vmatpush1.msra.mxu0 0.0
        %1058 = vmatprep.subr.mxu0 0.0
        %1059 = vmatpush1.msra.mxu0 0.0
        %1060 = vmatprep.subr.mxu0 0.0
        %1061 = vmatpush1.msra.mxu0 0.0
        %1062 = vmatprep.subr.mxu0 0.0
        %1063 = vmatpush1.msra.mxu0 0.0
        %1064 = vmatprep.subr.mxu0 0.0
        %1065 = vmatpush1.msra.mxu0 0.0
        %1066 = vmatprep.subr.mxu0 0.0
        %1067 = vmatpush1.msra.mxu0 0.0
        %1068 = vmatprep.subr.mxu0 0.0
        %1069 = vmatpush1.msra.mxu0 0.0
        %1070 = vmatprep.subr.mxu0 0.0
        %1071 = vmatpush1.msra.mxu0 0.0
        %1072 = vmatprep.subr.mxu0 0.0
        %1073 = vmatpush1.msra.mxu0 0.0
        %1074 = vmatprep.subr.mxu0 0.0
        %1075 = vmatpush1.msra.mxu0 0.0
        %1076 = vmatprep.subr.mxu0 0.0
        %1077 = vmatpush1.msra.mxu0 0.0
        %1078 = vmatprep.subr.mxu0 0.0
        %1079 = vmatpush1.msra.mxu0 0.0
        %1080 = vmatprep.subr.mxu0 0.0
        %1081 = vmatpush1.msra.mxu0 0.0
        %1082 = vmatprep.mubr.f32.mxu0 0.0
        %1083 = vmatmul.mubr.f32.gmra.mrb[0].mxu0 %v1007
        %v1084 = vpop.f32.mrb[0].mxu0
        %v1085 = vadd.f32 0.0, %v1084
        %v1086 = vpop.f32.mrb[0].mxu0
        %1087 = vmatprep.mubr.f32.mxu0 0.0
        %1088 = vmatmul.mubr.f32.gmra.mrb[0].mxu0 %v1010
        %v1089 = vpop.f32.mrb[0].mxu0
        %v1090 = vadd.f32 0.0, %v1089
        %v1091 = vpop.f32.mrb[0].mxu0
        %1092 = vmatprep.mubr.f32.mxu0 0.0
        %1093 = vmatmul.mubr.f32.gmra.mrb[0].mxu0 %v1013
        %v1094 = vpop.f32.mrb[0].mxu0
        %v1095 = vadd.f32 0.0, %v1094
        %v1096 = vpop.f32.mrb[0].mxu0
        %1097 = vmatprep.mubr.f32.mxu0 0.0
        %1098 = vmatmul.mubr.f32.gmra.mrb[0].mxu0 %v1016
        %v1099 = vpop.f32.mrb[0].mxu0
        %v1100 = vadd.f32 0.0, %v1099
        %v1101 = vpop.f32.mrb[0].mxu0
        %1102 = vdwg.mxu0
        %v1104 = vsel %vm917, %v1002, 0
        %v1107 = vsel %vm917, %v1003, 0
        %v1110 = vsel %vm917, %v1004, 0
        %v1113 = vsel %vm917, %v1005, 0
        %1115 = vmatprep.subr.mxu0 0.0
        %1116 = vmatpush1.msra.mxu0 %v687
        %1117 = vmatprep.subr.mxu0 0.0
        %1118 = vmatpush1.msra.mxu0 %v688
        %1119 = vmatprep.subr.mxu0 0.0
        %1120 = vmatpush1.msra.mxu0 %v689
        %1121 = vmatprep.subr.mxu0 0.0
        %1122 = vmatpush1.msra.mxu0 %v690
        %1123 = vmatprep.subr.mxu0 0.0
        %1124 = vmatpush1.msra.mxu0 0.0
        %1125 = vmatprep.subr.mxu0 0.0
        %1126 = vmatpush1.msra.mxu0 0.0
        %1127 = vmatprep.subr.mxu0 0.0
        %1128 = vmatpush1.msra.mxu0 0.0
        %1129 = vmatprep.subr.mxu0 0.0
        %1130 = vmatpush1.msra.mxu0 0.0
        %1131 = vmatprep.subr.mxu0 0.0
        %1132 = vmatpush1.msra.mxu0 0.0
        %1133 = vmatprep.subr.mxu0 0.0
        %1134 = vmatpush1.msra.mxu0 0.0
        %1135 = vmatprep.subr.mxu0 0.0
        %1136 = vmatpush1.msra.mxu0 0.0
        %1137 = vmatprep.subr.mxu0 0.0
        %1138 = vmatpush1.msra.mxu0 0.0
        %1139 = vmatprep.subr.mxu0 0.0
        %1140 = vmatpush1.msra.mxu0 0.0
        %1141 = vmatprep.subr.mxu0 0.0
        %1142 = vmatpush1.msra.mxu0 0.0
        %1143 = vmatprep.subr.mxu0 0.0
        %1144 = vmatpush1.msra.mxu0 0.0
        %1145 = vmatprep.subr.mxu0 0.0
        %1146 = vmatpush1.msra.mxu0 0.0
        %1147 = vmatprep.subr.mxu0 0.0
        %1148 = vmatpush1.msra.mxu0 0.0
        %1149 = vmatprep.subr.mxu0 0.0
        %1150 = vmatpush1.msra.mxu0 0.0
        %1151 = vmatprep.subr.mxu0 0.0
        %1152 = vmatpush1.msra.mxu0 0.0
        %1153 = vmatprep.subr.mxu0 0.0
        %1154 = vmatpush1.msra.mxu0 0.0
        %1155 = vmatprep.subr.mxu0 0.0
        %1156 = vmatpush1.msra.mxu0 0.0
        %1157 = vmatprep.subr.mxu0 0.0
        %1158 = vmatpush1.msra.mxu0 0.0
        %1159 = vmatprep.subr.mxu0 0.0
        %1160 = vmatpush1.msra.mxu0 0.0
        %1161 = vmatprep.subr.mxu0 0.0
        %1162 = vmatpush1.msra.mxu0 0.0
        %1163 = vmatprep.subr.mxu0 0.0
        %1164 = vmatpush1.msra.mxu0 0.0
        %1165 = vmatprep.subr.mxu0 0.0
        %1166 = vmatpush1.msra.mxu0 0.0
        %1167 = vmatprep.subr.mxu0 0.0
        %1168 = vmatpush1.msra.mxu0 0.0
        %1169 = vmatprep.subr.mxu0 0.0
        %1170 = vmatpush1.msra.mxu0 0.0
        %1171 = vmatprep.subr.mxu0 0.0
        %1172 = vmatpush1.msra.mxu0 0.0
        %1173 = vmatprep.subr.mxu0 0.0
        %1174 = vmatpush1.msra.mxu0 0.0
        %1175 = vmatprep.subr.mxu0 0.0
        %1176 = vmatpush1.msra.mxu0 0.0
        %1177 = vmatprep.subr.mxu0 0.0
        %1178 = vmatpush1.msra.mxu0 0.0
        %1179 = vmatprep.mubr.f32.mxu0 0.0
        %1180 = vmatmul.mubr.f32.gmra.mrb[0].mxu0 %v1104
        %v1181 = vpop.f32.mrb[0].mxu0
        %v1182 = vadd.f32 0.0, %v1181
        %v1183 = vpop.f32.mrb[0].mxu0
        %1184 = vmatprep.mubr.f32.mxu0 0.0
        %1185 = vmatmul.mubr.f32.gmra.mrb[0].mxu0 %v1107
        %v1186 = vpop.f32.mrb[0].mxu0
        %v1187 = vadd.f32 0.0, %v1186
        %v1188 = vpop.f32.mrb[0].mxu0
        %1189 = vmatprep.mubr.f32.mxu0 0.0
        %1190 = vmatmul.mubr.f32.gmra.mrb[0].mxu0 %v1110
        %v1191 = vpop.f32.mrb[0].mxu0
        %v1192 = vadd.f32 0.0, %v1191
        %v1193 = vpop.f32.mrb[0].mxu0
        %1194 = vmatprep.mubr.f32.mxu0 0.0
        %1195 = vmatmul.mubr.f32.gmra.mrb[0].mxu0 %v1113
        %v1196 = vpop.f32.mrb[0].mxu0
        %v1197 = vadd.f32 0.0, %v1196
        %v1198 = vpop.f32.mrb[0].mxu0
        %1199 = vdwg.mxu0
        %1200 = vst.msk [vmem:[%s269] sm:$0xff] %vm296, %v1085
        %1201 = vst.msk [vmem:[%s269 + $0x8] sm:$0xff] %vm296, %v1090
        %1202 = vst.msk [vmem:[%s269 + $0x10] sm:$0xff] %vm296, %v1095
        %1203 = vst.msk [vmem:[%s269 + $0x18] sm:$0xff] %vm296, %v1100
        %1204 = vst.msk [vmem:[%s269 + $0x20] sm:$0xff] %vm296, %v1182
        %1205 = vst.msk [vmem:[%s269 + $0x28] sm:$0xff] %vm296, %v1187
        %1206 = vst.msk [vmem:[%s269 + $0x30] sm:$0xff] %vm296, %v1192
        %1207 = vst.msk [vmem:[%s269 + $0x38] sm:$0xff] %vm296, %v1197
        %1208 = vst.msk [vmem:[%s256] sm:$0xff] %vm917, %v998
        %1209 = vst.msk [vmem:[%s256 + $0x8] sm:$0xff] %vm917, %v999
        %1210 = vst.msk [vmem:[%s256 + $0x10] sm:$0xff] %vm917, %v1000
        %1211 = vst.msk [vmem:[%s256 + $0x18] sm:$0xff] %vm917, %v1001
        %1212 = vst.msk [vmem:[%s256 + $0x20] sm:$0xff] %vm917, %v1002
        %1213 = vst.msk [vmem:[%s256 + $0x28] sm:$0xff] %vm917, %v1003
        %1214 = vst.msk [vmem:[%s256 + $0x30] sm:$0xff] %vm917, %v1004
        %1215 = vst.msk [vmem:[%s256 + $0x38] sm:$0xff] %vm917, %v1005
        %s1216 = smul.u32 2, %s21
        %p1217 = scmp.lt.s32.totalorder %s1216, 3
        %s1218 = scalar_select %p1217, %s1216, 3
        %s1219 = smul.addr %s1218, 4
        %s1220 = smul.addr %s1219, 8
        %s1221 = scalar_lea.vmem %s5, %s1220
        %s1222 = sand.u32 %s165, 1
        %s1223 = scalar_lea.sflag [#allocation3], %s1222
        %s1224 = sand.u32 %s165, 1
        %s1225 = smul.addr %s1224, 64
        %s1226 = scalar_lea.vmem [#allocation2], %s1225
        // Predicated region
        $region41: #{tpu_custom_call.1} parent=39 // pred_check
          %p1227 = pneg %p149
        $region42: #{tpu_custom_call.1} parent=39 // pred_check_branch
          %1229 = sbr.rel (%p1227) target = $region44
        $region43: #{tpu_custom_call.1} parent=39 // pred_region
          %s1230 = smul.u32 2, %s21
        $region44: #{tpu_custom_call.1} parent=39 // pred_fallthru
          _
        // Predicated region
        $region45: #{tpu_custom_call.1} parent=39 // pred_check
          %p1231 = pneg %p175
        $region46: #{tpu_custom_call.1} parent=39 // pred_check_branch
          %1233 = sbr.rel (%p1231) target = $region48
        $region47: #{tpu_custom_call.1} parent=39 // pred_region
          %s1234 = smul.u32 2, %s21
          %s1236 = ssub.s32 1024, 1024
          %1237 = vsyncadd %s1223, %s1236
          %s1238 = smul.addr %s1234, 4
          %s1239 = smul.addr %s1238, 128
          %s1240 = scalar_lea.hbm %s6, %s1239
          %s1241 = sshll.u32 %s1226, 4
          %s1242 = int_to_ptr.vmem [resolvable:$true] %s1241
          %1247 = dma.vmem_to_hbm [thread:$0]  %s1242, 1024, %s1240, %s1223, 128, 128, 8
        $region48: #{tpu_custom_call.1} parent=39 // pred_fallthru
          _
      $region40: #{tpu_custom_call.1} parent=5 // pred_fallthru
        _
      %p1248 = scmp.le.s32.totalorder 2, %s16
      // Predicated region
      $region49: #{tpu_custom_call.1} parent=5 // pred_check
        %p1249 = pneg %p1248
      $region50: #{tpu_custom_call.1} parent=5 // pred_check_branch
        %1251 = sbr.rel (%p1249) target = $region52
      $region51: #{tpu_custom_call.1} parent=5 // pred_region
        %s1252 = ssub.s32 %s16, 2
        // Predicated region
        $region53: #{tpu_custom_call.1} parent=51 // pred_check
          %p1253 = pneg %p155
        $region54: #{tpu_custom_call.1} parent=51 // pred_check_branch
          %1255 = sbr.rel (%p1253) target = $region56
        $region55: #{tpu_custom_call.1} parent=51 // pred_region
          %s1256 = smul.u32 2, %s22
          %p1257 = scmp.lt.s32.totalorder %s1256, 3
          %s1258 = scalar_select %p1257, %s1256, 3
          %s1259 = smul.addr %s1258, 4
          %s1260 = smul.addr %s1259, 8
          %s1261 = scalar_lea.vmem %s5, %s1260
        $region56: #{tpu_custom_call.1} parent=51 // pred_fallthru
          _
        // Predicated region
        $region57: #{tpu_custom_call.1} parent=51 // pred_check
          %p1262 = pneg %p181
        $region58: #{tpu_custom_call.1} parent=51 // pred_check_branch
          %1264 = sbr.rel (%p1262) target = $region60
        $region59: #{tpu_custom_call.1} parent=51 // pred_region
          %s1265 = sand.u32 %s166, 1
          %s1266 = scalar_lea.sflag [#allocation3], %s1265
          %s1267 = sand.u32 %s166, 1
          %s1268 = smul.addr %s1267, 64
          %s1269 = scalar_lea.vmem [#allocation2], %s1268
          %1270 = dma.done %s1266, 1024
        $region60: #{tpu_custom_call.1} parent=51 // pred_fallthru
          _
      $region52: #{tpu_custom_call.1} parent=5 // pred_fallthru
        _
    $region6: #{tpu_custom_call.1} parent=1 // loop_footer
      %s20 = sadd.s32 1, %s16
    $region7: #{tpu_custom_call.1} parent=1 // loop_footer_branch
      %15 = sbr.rel target = $region3
    $region8: #{tpu_custom_call.1} parent=1 // loop_exit
      _
    %1271 = vsyncpa [#allocation3], 1
    %s1272 = scalar_lea.sflag [#allocation3], 1
    %1273 = vsyncpa %s1272, 1

</llo_original>
